<compile_context>
chip_gen: v6e
topology: v6e:2x2x1
jax: 0.10.0
libtpu: 0.0.40
codegen_flags: <defaults>
</compile_context>

<pallas_src>
import functools

import jax
import jax.numpy as jnp
from jax import lax
from jax.experimental import pallas as pl
from jax.experimental.pallas import tpu as pltpu

EPS = 1e-5  # default eps of all five PyTorch norm layers
_MB = 1024 * 1024


def _norm_kernel(x_ref,
                 bn_w_ref, bn_bp_ref,
                 fbn_a_ref, fbn_b_ref,
                 in_w_ref, in_bp_ref,
                 gn_w_ref, gn_bp_ref,
                 ln_w_ref, ln_bp_ref,
                 bn_out, fbn_out, in_out, gn_out, ln_out,
                 bn_a_s, bn_b_s, in_a_s, in_b_s, gn_a_s, gn_b_s):
    B, CPG, H, W = x_ref.shape
    TH = bn_out.shape[2]            # H tile written per grid step
    nh = H // TH
    h = pl.program_id(1)

    # ---- phase 1 (first H tile of each group): one hierarchical stats pass ----
    @pl.when(h == 0)
    def _():
        def body(i, carry):
            s_bc, ss_bc = carry
            start = pl.multiple_of(i * TH, TH)
            xs = x_ref[:, :, pl.ds(start, TH), :].astype(jnp.float32)
            s = jnp.sum(xs, axis=3, keepdims=True)           # (B, CPG, TH, 1)
            ss = jnp.sum(xs * xs, axis=3, keepdims=True)
            s_bc = s_bc + jnp.sum(s, axis=2, keepdims=True)   # (B, CPG, 1, 1)
            ss_bc = ss_bc + jnp.sum(ss, axis=2, keepdims=True)
            return s_bc, ss_bc

        init = (jnp.zeros((B, CPG, 1, 1), jnp.float32),
                jnp.zeros((B, CPG, 1, 1), jnp.float32))
        # fori_loop bounds live temporaries to a single H chunk (vs. an unrolled
        # Python loop that keeps every chunk's f32 temps live simultaneously).
        s_bc, ss_bc = lax.fori_loop(0, nh, body, init,
                                    unroll=max(1, min(2, nh)))

        # InstanceNorm2d(affine=True): per (N, C) over (H, W)
        inv_hw = jnp.float32(1.0 / (H * W))
        mu = s_bc * inv_hw
        var = jnp.maximum(ss_bc * inv_hw - mu * mu, 0.0)
        a = in_w_ref[...] * lax.rsqrt(var + EPS)             # (B, CPG, 1, 1)
        in_a_s[...] = a
        in_b_s[...] = in_bp_ref[...] - mu * a

        # GroupNorm(4, C): per sample over the whole (C/G, H, W) group block
        inv_g = jnp.float32(1.0 / (CPG * H * W))
        s_g = jnp.sum(s_bc, axis=1, keepdims=True)            # (B, 1, 1, 1)
        ss_g = jnp.sum(ss_bc, axis=1, keepdims=True)
        mu = s_g * inv_g
        var = jnp.maximum(ss_g * inv_g - mu * mu, 0.0)
        a = gn_w_ref[...] * lax.rsqrt(var + EPS)              # (B, CPG, 1, 1)
        gn_a_s[...] = a
        gn_b_s[...] = gn_bp_ref[...] - mu * a

        # BatchNorm2d (training mode, biased batch var): per channel over (N, H, W)
        inv_b = jnp.float32(1.0 / (B * H * W))
        s_c = jnp.sum(s_bc, axis=0, keepdims=True)             # (1, CPG, 1, 1)
        ss_c = jnp.sum(ss_bc, axis=0, keepdims=True)
        mu = s_c * inv_b
        var = jnp.maximum(ss_c * inv_b - mu * mu, 0.0)
        a = bn_w_ref[...] * lax.rsqrt(var + EPS)
        bn_a_s[...] = a
        bn_b_s[...] = bn_bp_ref[...] - mu * a
        # TODO(synk): BatchNorm2d running_mean/running_var momentum updates are not
        # produced (forward outputs only, matching the reference module call).

    # ---- phase 2 (every step): fused x * a + b applies on one H tile ----
    start = pl.multiple_of(h * TH, TH)
    xs = x_ref[:, :, pl.ds(start, TH), :].astype(jnp.float32)

    bn_out[...] = (xs * bn_a_s[...] + bn_b_s[...]).astype(bn_out.dtype)
    fbn_out[...] = (xs * fbn_a_ref[...] + fbn_b_ref[...]).astype(fbn_out.dtype)
    in_out[...] = (xs * in_a_s[...] + in_b_s[...]).astype(in_out.dtype)
    gn_out[...] = (xs * gn_a_s[...] + gn_b_s[...]).astype(gn_out.dtype)

    # LayerNorm(W): per-row stats recomputed from the resident tile (two XLU
    # reduces over W — hidden under the HBM writeback), no H-sized scratch.
    inv_w = jnp.float32(1.0 / W)
    s_row = jnp.sum(xs, axis=3, keepdims=True)                 # (B, CPG, TH, 1)
    ss_row = jnp.sum(xs * xs, axis=3, keepdims=True)
    mu = s_row * inv_w
    var = jnp.maximum(ss_row * inv_w - mu * mu, 0.0)
    rstd = lax.rsqrt(var + EPS)
    ln_out[...] = (((xs - mu) * rstd) * ln_w_ref[...]
                   + ln_bp_ref[...]).astype(ln_out.dtype)


def _hw_vmem_capacity_bytes():
    """Per-core VMEM capacity; conservative (v7x 64 MiB/TC) if the query fails."""
    try:
        return int(pltpu.get_tpu_info().vmem_capacity_bytes)
    except Exception:
        return 64 * _MB


def _budget_bytes(B, cpg, H, W, TH, itemsize):
    """Estimated scoped-VMEM demand for a candidate H tile."""
    blk_x = B * cpg * H * W * itemsize       # resident x block (per group)
    blk_out = B * cpg * TH * W * itemsize    # one output tile
    tile_f32 = B * cpg * TH * W * 4          # f32 intermediates in the apply / stats chunk
    small = 2 * _MB                          # params + scale/shift scratch (lane-padded)
    # x double-buffered + 5 outputs double-buffered + live f32 temporaries.
    return 2 * blk_x + 10 * blk_out + 5 * tile_f32 + small


def _pick_h_tile(B, cpg, H, W, itemsize, sub_mult, vmem_cap, headroom):
    """Largest H tile (multiple of sub_mult, dividing H) whose budget fits VMEM."""
    divisors = [t for t in range(sub_mult, H + 1, sub_mult) if H % t == 0]
    if not divisors:
        return H
    limit = vmem_cap - headroom
    fitting = [t for t in divisors
               if _budget_bytes(B, cpg, H, W, t, itemsize) <= limit]
    return max(fitting) if fitting else min(divisors)


@functools.partial(jax.jit, static_argnames=("num_groups",))
def dummy_model_forward(x,
                        bn_w, bn_b,
                        fbn_w, fbn_b, fbn_rm, fbn_rv,
                        in_w, in_b,
                        gn_w, gn_b,
                        ln_w, ln_b,
                        *, num_groups=4):
    B, C, H, W = x.shape
    G = num_groups
    assert C % G == 0
    cpg = C // G

    itemsize = x.dtype.itemsize
    sub_mult = {4: 8, 2: 16, 1: 32}.get(itemsize, 8)   # sublane multiple per dtype

    vmem_cap = _hw_vmem_capacity_bytes()
    headroom = 8 * _MB                                  # Mosaic internal scratch etc.
    if H % sub_mult == 0:
        TH = _pick_h_tile(B, cpg, H, W, itemsize, sub_mult, vmem_cap, headroom)
    else:
        TH = H
    n_h = H // TH

    budget = _budget_bytes(B, cpg, H, W, TH, itemsize)
    vmem_bytes = budget + budget // 4
    vmem_bytes = max(vmem_bytes, 32 * _MB)
    vmem_bytes = int(min(vmem_bytes, vmem_cap - headroom))

    # Frozen-BN running stats folded into per-channel scale/shift in the wrapper.
    fbn_scale = fbn_w * lax.rsqrt(fbn_rv + EPS)
    fbn_shift = fbn_b - fbn_rm * fbn_scale

    def chan(p):
        return p.reshape(1, C, 1, 1).astype(jnp.float32)

    ln_w4 = ln_w.reshape(1, 1, 1, W).astype(jnp.float32)
    ln_b4 = ln_b.reshape(1, 1, 1, W).astype(jnp.float32)

    # x stays resident per group across the inner H-tile axis (fetched once / group).
    x_spec = pl.BlockSpec((B, cpg, H, W), lambda g, h: (0, g, 0, 0))
    chan_spec = pl.BlockSpec((1, cpg, 1, 1), lambda g, h: (0, g, 0, 0))
    ln_spec = pl.BlockSpec((1, 1, 1, W), lambda g, h: (0, 0, 0, 0))
    out_specs = [pl.BlockSpec((B, cpg, TH, W), lambda g, h: (0, g, h, 0))
                 for _ in range(5)]
    out_shape = tuple(jax.ShapeDtypeStruct((B, C, H, W), x.dtype) for _ in range(5))

    scratch_shapes = [
        pltpu.VMEM((1, cpg, 1, 1), jnp.float32),   # BN scale
        pltpu.VMEM((1, cpg, 1, 1), jnp.float32),   # BN shift
        pltpu.VMEM((B, cpg, 1, 1), jnp.float32),   # IN scale
        pltpu.VMEM((B, cpg, 1, 1), jnp.float32),   # IN shift
        pltpu.VMEM((B, cpg, 1, 1), jnp.float32),   # GN scale
        pltpu.VMEM((B, cpg, 1, 1), jnp.float32),   # GN shift
    ]

    return pl.pallas_call(
        _norm_kernel,
        out_shape=out_shape,
        grid_spec=pltpu.PrefetchScalarGridSpec(
            num_scalar_prefetch=0,
            grid=(G, n_h),
            in_specs=[x_spec,
                      chan_spec, chan_spec,     # BatchNorm w, b
                      chan_spec, chan_spec,     # Frozen-BN scale, shift
                      chan_spec, chan_spec,     # InstanceNorm w, b
                      chan_spec, chan_spec,     # GroupNorm w, b
                      ln_spec, ln_spec],        # LayerNorm w, b
            out_specs=out_specs,
            scratch_shapes=scratch_shapes),
        compiler_params=pltpu.CompilerParams(
            dimension_semantics=("parallel", "arbitrary"),
            vmem_limit_bytes=vmem_bytes),
    )(x,
      chan(bn_w), chan(bn_b),
      chan(fbn_scale), chan(fbn_shift),
      chan(in_w), chan(in_b),
      chan(gn_w), chan(gn_b),
      ln_w4, ln_b4)


def _reference(x, bn_w, bn_b, fbn_w, fbn_b, fbn_rm, fbn_rv,
               in_w, in_b, gn_w, gn_b, ln_w, ln_b, num_groups=4):
    """Pure-JAX reference mirroring PyTorch semantics (sanity check)."""
    B, C, H, W = x.shape
    cw = lambda p: p.reshape(1, C, 1, 1)

    mu = jnp.mean(x, axis=(0, 2, 3), keepdims=True)
    var = jnp.mean(jnp.square(x - mu), axis=(0, 2, 3), keepdims=True)
    x1 = (x - mu) / jnp.sqrt(var + EPS) * cw(bn_w) + cw(bn_b)

    scale = fbn_w / jnp.sqrt(fbn_rv + EPS)
    x2 = x * cw(scale) + cw(fbn_b - fbn_rm * scale)

    mu = jnp.mean(x, axis=(2, 3), keepdims=True)
    var = jnp.mean(jnp.square(x - mu), axis=(2, 3), keepdims=True)
    x3 = (x - mu) / jnp.sqrt(var + EPS) * cw(in_w) + cw(in_b)

    xg = x.reshape(B, num_groups, C // num_groups, H, W)
    mu = jnp.mean(xg, axis=(2, 3, 4), keepdims=True)
    var = jnp.mean(jnp.square(xg - mu), axis=(2, 3, 4), keepdims=True)
    x4 = ((xg - mu) / jnp.sqrt(var + EPS)).reshape(B, C, H, W) * cw(gn_w) + cw(gn_b)

    mu = jnp.mean(x, axis=3, keepdims=True)
    var = jnp.mean(jnp.square(x - mu), axis=3, keepdims=True)
    x5 = (x - mu) / jnp.sqrt(var + EPS) * ln_w.reshape(1, 1, 1, W) + ln_b.reshape(1, 1, 1, W)

    return x1, x2, x3, x4, x5


if __name__ == "__main__":
    # Small shapes consistent with the module: C=32 (BatchNorm2d(32), 4 groups of 8),
    # W=256 (LayerNorm(256)); batch and H shrunk from the original (4, 32, 256, 256).
    B, C, H, W = 2, 32, 8, 256

    key = jax.random.PRNGKey(0)
    ks = jax.random.split(key, 16)
    f32 = jnp.float32

    x = jax.random.normal(ks[0], (B, C, H, W), f32)

    bn_w = 1.0 + 0.1 * jax.random.normal(ks[1], (C,), f32)
    bn_b = 0.1 * jax.random.normal(ks[2], (C,), f32)
    fbn_w = 1.0 + 0.1 * jax.random.normal(ks[3], (C,), f32)
    fbn_b = 0.1 * jax.random.normal(ks[4], (C,), f32)
    fbn_rm = 0.1 * jax.random.normal(ks[5], (C,), f32)
    fbn_rv = 1.0 + 0.1 * jax.random.uniform(ks[6], (C,), f32)
    in_w = 1.0 + 0.1 * jax.random.normal(ks[7], (C,), f32)
    in_b = 0.1 * jax.random.normal(ks[8], (C,), f32)
    gn_w = 1.0 + 0.1 * jax.random.normal(ks[9], (C,), f32)
    gn_b = 0.1 * jax.random.normal(ks[10], (C,), f32)
    ln_w = 1.0 + 0.1 * jax.random.normal(ks[11], (W,), f32)
    ln_b = 0.1 * jax.random.normal(ks[12], (W,), f32)

    outs = dummy_model_forward(x, bn_w, bn_b, fbn_w, fbn_b, fbn_rm, fbn_rv,
                               in_w, in_b, gn_w, gn_b, ln_w, ln_b, num_groups=4)
    outs = jax.block_until_ready(outs)

    refs = _reference(x, bn_w, bn_b, fbn_w, fbn_b, fbn_rm, fbn_rv,
                      in_w, in_b, gn_w, gn_b, ln_w, ln_b, num_groups=4)
    names = ("batch_norm", "frozen_batch_norm", "instance_norm", "group_norm", "layer_norm")
    for name, got, want in zip(names, outs, refs):
        assert got.shape == (B, C, H, W) and got.dtype == f32
        if not jnp.allclose(got, want, atol=2e-4, rtol=2e-4):
            raise AssertionError(f"mismatch in {name}")

    print("KERNEL_OK")
</pallas_src>

<mosaic_0001>
module attributes {stable_mosaic.version = 11 : i64} {
  func.func @_norm_kernel(%arg0: i32, %arg1: i32, %arg2: memref<2x8x8x256xf32, #tpu.memory_space<vmem>>, %arg3: memref<1x8x1x1xf32, #tpu.memory_space<vmem>>, %arg4: memref<1x8x1x1xf32, #tpu.memory_space<vmem>>, %arg5: memref<1x8x1x1xf32, #tpu.memory_space<vmem>>, %arg6: memref<1x8x1x1xf32, #tpu.memory_space<vmem>>, %arg7: memref<1x8x1x1xf32, #tpu.memory_space<vmem>>, %arg8: memref<1x8x1x1xf32, #tpu.memory_space<vmem>>, %arg9: memref<1x8x1x1xf32, #tpu.memory_space<vmem>>, %arg10: memref<1x8x1x1xf32, #tpu.memory_space<vmem>>, %arg11: memref<1x1x1x256xf32, #tpu.memory_space<vmem>>, %arg12: memref<1x1x1x256xf32, #tpu.memory_space<vmem>>, %arg13: memref<2x8x8x256xf32, #tpu.memory_space<vmem>>, %arg14: memref<2x8x8x256xf32, #tpu.memory_space<vmem>>, %arg15: memref<2x8x8x256xf32, #tpu.memory_space<vmem>>, %arg16: memref<2x8x8x256xf32, #tpu.memory_space<vmem>>, %arg17: memref<2x8x8x256xf32, #tpu.memory_space<vmem>>, %arg18: memref<1x8x1x1xf32, #tpu.memory_space<vmem>>, %arg19: memref<1x8x1x1xf32, #tpu.memory_space<vmem>>, %arg20: memref<2x8x1x1xf32, #tpu.memory_space<vmem>>, %arg21: memref<2x8x1x1xf32, #tpu.memory_space<vmem>>, %arg22: memref<2x8x1x1xf32, #tpu.memory_space<vmem>>, %arg23: memref<2x8x1x1xf32, #tpu.memory_space<vmem>>) attributes {dimension_semantics = [#tpu.dimension_semantics<parallel>, #tpu.dimension_semantics<arbitrary>], iteration_bounds = array<i64: 4, 1>, scalar_prefetch = 0 : i64, scratch_operands = 6 : i64, tpu.core_type = #tpu.core_type<tc>, window_params = [{transform_indices = @transform_0, window_bounds = array<i64: 2, 8, 8, 256>}, {transform_indices = @transform_1, window_bounds = array<i64: 1, 8, 1, 1>}, {transform_indices = @transform_2, window_bounds = array<i64: 1, 8, 1, 1>}, {transform_indices = @transform_3, window_bounds = array<i64: 1, 8, 1, 1>}, {transform_indices = @transform_4, window_bounds = array<i64: 1, 8, 1, 1>}, {transform_indices = @transform_5, window_bounds = array<i64: 1, 8, 1, 1>}, {transform_indices = @transform_6, window_bounds = array<i64: 1, 8, 1, 1>}, {transform_indices = @transform_7, window_bounds = array<i64: 1, 8, 1, 1>}, {transform_indices = @transform_8, window_bounds = array<i64: 1, 8, 1, 1>}, {pipeline_mode = #tpu.pipeline_mode<synchronous>, transform_indices = @transform_9, window_bounds = array<i64: 1, 1, 1, 256>}, {pipeline_mode = #tpu.pipeline_mode<synchronous>, transform_indices = @transform_10, window_bounds = array<i64: 1, 1, 1, 256>}, {transform_indices = @transform_11, window_bounds = array<i64: 2, 8, 8, 256>}, {transform_indices = @transform_12, window_bounds = array<i64: 2, 8, 8, 256>}, {transform_indices = @transform_13, window_bounds = array<i64: 2, 8, 8, 256>}, {transform_indices = @transform_14, window_bounds = array<i64: 2, 8, 8, 256>}, {transform_indices = @transform_15, window_bounds = array<i64: 2, 8, 8, 256>}]} {
    %c0_i32 = arith.constant 0 : i32
    %0 = arith.cmpi eq, %arg1, %c0_i32 : i32
    %1 = arith.extui %0 : i1 to i32
    %c0_i32_0 = arith.constant 0 : i32
    %2 = arith.cmpi ne, %1, %c0_i32_0 : i32
    scf.if %2 {
      %cst_68 = arith.constant 0.000000e+00 : f32
      %62 = vector.broadcast %cst_68 : f32 to vector<2x8x1x1xf32>
      %cst_69 = arith.constant 0.000000e+00 : f32
      %63 = vector.broadcast %cst_69 : f32 to vector<2x8x1x1xf32>
      %c0_i32_70 = arith.constant 0 : i32
      %c8_i32_71 = arith.constant 8 : i32
      %64 = arith.muli %c0_i32_70, %c8_i32_71 : i32
      %65 = tpu.assume_multiple %64, 8 : i32
      %c0_72 = arith.constant 0 : index
      %c0_73 = arith.constant 0 : index
      %66 = arith.index_cast %65 : i32 to index
      %c0_74 = arith.constant 0 : index
      %67 = vector.load %arg2[%c0_72, %c0_73, %66, %c0_74] : memref<2x8x8x256xf32, #tpu.memory_space<vmem>>, vector<2x8x8x256xf32>
      %cst_75 = arith.constant dense<0.000000e+00> : vector<2x8x8xf32>
      %68 = vector.multi_reduction <add>, %67, %cst_75 [3] : vector<2x8x8x256xf32> to vector<2x8x8xf32>
      %69 = vector.shape_cast %68 : vector<2x8x8xf32> to vector<2x8x8x1xf32>
      %70 = arith.mulf %67, %67 : vector<2x8x8x256xf32>
      %cst_76 = arith.constant dense<0.000000e+00> : vector<2x8x8xf32>
      %71 = vector.multi_reduction <add>, %70, %cst_76 [3] : vector<2x8x8x256xf32> to vector<2x8x8xf32>
      %72 = vector.shape_cast %71 : vector<2x8x8xf32> to vector<2x8x8x1xf32>
      %cst_77 = arith.constant dense<0.000000e+00> : vector<2x8x1xf32>
      %73 = vector.multi_reduction <add>, %69, %cst_77 [2] : vector<2x8x8x1xf32> to vector<2x8x1xf32>
      %74 = vector.shape_cast %73 : vector<2x8x1xf32> to vector<2x8x1x1xf32>
      %75 = arith.addf %62, %74 : vector<2x8x1x1xf32>
      %cst_78 = arith.constant dense<0.000000e+00> : vector<2x8x1xf32>
      %76 = vector.multi_reduction <add>, %72, %cst_78 [2] : vector<2x8x8x1xf32> to vector<2x8x1xf32>
      %77 = vector.shape_cast %76 : vector<2x8x1xf32> to vector<2x8x1x1xf32>
      %78 = arith.addf %63, %77 : vector<2x8x1x1xf32>
      %c1_i32 = arith.constant 1 : i32
      %cst_79 = arith.constant 4.8828125E-4 : f32
      %79 = vector.broadcast %cst_79 : f32 to vector<2x8x1x1xf32>
      %80 = arith.mulf %75, %79 : vector<2x8x1x1xf32>
      %cst_80 = arith.constant 4.8828125E-4 : f32
      %81 = vector.broadcast %cst_80 : f32 to vector<2x8x1x1xf32>
      %82 = arith.mulf %78, %81 : vector<2x8x1x1xf32>
      %83 = arith.mulf %80, %80 : vector<2x8x1x1xf32>
      %84 = arith.subf %82, %83 : vector<2x8x1x1xf32>
      %cst_81 = arith.constant 0.000000e+00 : f32
      %85 = vector.broadcast %cst_81 : f32 to vector<2x8x1x1xf32>
      %86 = arith.maximumf %84, %85 : vector<2x8x1x1xf32>
      %c0_82 = arith.constant 0 : index
      %c0_83 = arith.constant 0 : index
      %c0_84 = arith.constant 0 : index
      %c0_85 = arith.constant 0 : index
      %87 = vector.load %arg7[%c0_82, %c0_83, %c0_84, %c0_85] : memref<1x8x1x1xf32, #tpu.memory_space<vmem>>, vector<1x8x1x1xf32>
      %cst_86 = arith.constant 9.99999974E-6 : f32
      %88 = vector.broadcast %cst_86 : f32 to vector<2x8x1x1xf32>
      %89 = arith.addf %86, %88 : vector<2x8x1x1xf32>
      %90 = math.rsqrt %89 : vector<2x8x1x1xf32>
      %91 = vector.broadcast %87 : vector<1x8x1x1xf32> to vector<2x8x1x1xf32>
      %92 = arith.mulf %91, %90 : vector<2x8x1x1xf32>
      %c0_87 = arith.constant 0 : index
      %c0_88 = arith.constant 0 : index
      %c0_89 = arith.constant 0 : index
      %c0_90 = arith.constant 0 : index
      %93 = vector.load %arg20[%c0_87, %c0_88, %c0_89, %c0_90] : memref<2x8x1x1xf32, #tpu.memory_space<vmem>>, vector<2x8x1x1xf32>
      tpu.vector_store %arg20[%c0_87, %c0_88, %c0_89, %c0_90], %92 {strides = array<i32>} : memref<2x8x1x1xf32, #tpu.memory_space<vmem>>, vector<2x8x1x1xf32>,
      %c0_91 = arith.constant 0 : index
      %c0_92 = arith.constant 0 : index
      %c0_93 = arith.constant 0 : index
      %c0_94 = arith.constant 0 : index
      %94 = vector.load %arg8[%c0_91, %c0_92, %c0_93, %c0_94] : memref<1x8x1x1xf32, #tpu.memory_space<vmem>>, vector<1x8x1x1xf32>
      %95 = arith.mulf %80, %92 : vector<2x8x1x1xf32>
      %96 = vector.broadcast %94 : vector<1x8x1x1xf32> to vector<2x8x1x1xf32>
      %97 = arith.subf %96, %95 : vector<2x8x1x1xf32>
      %c0_95 = arith.constant 0 : index
      %c0_96 = arith.constant 0 : index
      %c0_97 = arith.constant 0 : index
      %c0_98 = arith.constant 0 : index
      %98 = vector.load %arg21[%c0_95, %c0_96, %c0_97, %c0_98] : memref<2x8x1x1xf32, #tpu.memory_space<vmem>>, vector<2x8x1x1xf32>
      tpu.vector_store %arg21[%c0_95, %c0_96, %c0_97, %c0_98], %97 {strides = array<i32>} : memref<2x8x1x1xf32, #tpu.memory_space<vmem>>, vector<2x8x1x1xf32>,
      %cst_99 = arith.constant dense<0.000000e+00> : vector<2x1x1xf32>
      %99 = vector.multi_reduction <add>, %75, %cst_99 [1] : vector<2x8x1x1xf32> to vector<2x1x1xf32>
      %100 = vector.shape_cast %99 : vector<2x1x1xf32> to vector<2x1x1x1xf32>
      %cst_100 = arith.constant dense<0.000000e+00> : vector<2x1x1xf32>
      %101 = vector.multi_reduction <add>, %78, %cst_100 [1] : vector<2x8x1x1xf32> to vector<2x1x1xf32>
      %102 = vector.shape_cast %101 : vector<2x1x1xf32> to vector<2x1x1x1xf32>
      %cst_101 = arith.constant 6.10351563E-5 : f32
      %103 = vector.broadcast %cst_101 : f32 to vector<2x1x1x1xf32>
      %104 = arith.mulf %100, %103 : vector<2x1x1x1xf32>
      %cst_102 = arith.constant 6.10351563E-5 : f32
      %105 = vector.broadcast %cst_102 : f32 to vector<2x1x1x1xf32>
      %106 = arith.mulf %102, %105 : vector<2x1x1x1xf32>
      %107 = arith.mulf %104, %104 : vector<2x1x1x1xf32>
      %108 = arith.subf %106, %107 : vector<2x1x1x1xf32>
      %cst_103 = arith.constant 0.000000e+00 : f32
      %109 = vector.broadcast %cst_103 : f32 to vector<2x1x1x1xf32>
      %110 = arith.maximumf %108, %109 : vector<2x1x1x1xf32>
      %c0_104 = arith.constant 0 : index
      %c0_105 = arith.constant 0 : index
      %c0_106 = arith.constant 0 : index
      %c0_107 = arith.constant 0 : index
      %111 = vector.load %arg9[%c0_104, %c0_105, %c0_106, %c0_107] : memref<1x8x1x1xf32, #tpu.memory_space<vmem>>, vector<1x8x1x1xf32>
      %cst_108 = arith.constant 9.99999974E-6 : f32
      %112 = vector.broadcast %cst_108 : f32 to vector<2x1x1x1xf32>
      %113 = arith.addf %110, %112 : vector<2x1x1x1xf32>
      %114 = math.rsqrt %113 : vector<2x1x1x1xf32>
      %115 = vector.broadcast %111 : vector<1x8x1x1xf32> to vector<2x8x1x1xf32>
      %116 = vector.broadcast %114 : vector<2x1x1x1xf32> to vector<2x8x1x1xf32>
      %117 = arith.mulf %115, %116 : vector<2x8x1x1xf32>
      %c0_109 = arith.constant 0 : index
      %c0_110 = arith.constant 0 : index
      %c0_111 = arith.constant 0 : index
      %c0_112 = arith.constant 0 : index
      %118 = vector.load %arg22[%c0_109, %c0_110, %c0_111, %c0_112] : memref<2x8x1x1xf32, #tpu.memory_space<vmem>>, vector<2x8x1x1xf32>
      tpu.vector_store %arg22[%c0_109, %c0_110, %c0_111, %c0_112], %117 {strides = array<i32>} : memref<2x8x1x1xf32, #tpu.memory_space<vmem>>, vector<2x8x1x1xf32>,
      %c0_113 = arith.constant 0 : index
      %c0_114 = arith.constant 0 : index
      %c0_115 = arith.constant 0 : index
      %c0_116 = arith.constant 0 : index
      %119 = vector.load %arg10[%c0_113, %c0_114, %c0_115, %c0_116] : memref<1x8x1x1xf32, #tpu.memory_space<vmem>>, vector<1x8x1x1xf32>
      %120 = vector.broadcast %104 : vector<2x1x1x1xf32> to vector<2x8x1x1xf32>
      %121 = arith.mulf %120, %117 : vector<2x8x1x1xf32>
      %122 = vector.broadcast %119 : vector<1x8x1x1xf32> to vector<2x8x1x1xf32>
      %123 = arith.subf %122, %121 : vector<2x8x1x1xf32>
      %c0_117 = arith.constant 0 : index
      %c0_118 = arith.constant 0 : index
      %c0_119 = arith.constant 0 : index
      %c0_120 = arith.constant 0 : index
      %124 = vector.load %arg23[%c0_117, %c0_118, %c0_119, %c0_120] : memref<2x8x1x1xf32, #tpu.memory_space<vmem>>, vector<2x8x1x1xf32>
      tpu.vector_store %arg23[%c0_117, %c0_118, %c0_119, %c0_120], %123 {strides = array<i32>} : memref<2x8x1x1xf32, #tpu.memory_space<vmem>>, vector<2x8x1x1xf32>,
      %cst_121 = arith.constant dense<0.000000e+00> : vector<8x1x1xf32>
      %125 = vector.multi_reduction <add>, %75, %cst_121 [0] : vector<2x8x1x1xf32> to vector<8x1x1xf32>
      %126 = vector.shape_cast %125 : vector<8x1x1xf32> to vector<1x8x1x1xf32>
      %cst_122 = arith.constant dense<0.000000e+00> : vector<8x1x1xf32>
      %127 = vector.multi_reduction <add>, %78, %cst_122 [0] : vector<2x8x1x1xf32> to vector<8x1x1xf32>
      %128 = vector.shape_cast %127 : vector<8x1x1xf32> to vector<1x8x1x1xf32>
      %cst_123 = arith.constant 2.44140625E-4 : f32
      %129 = vector.broadcast %cst_123 : f32 to vector<1x8x1x1xf32>
      %130 = arith.mulf %126, %129 : vector<1x8x1x1xf32>
      %cst_124 = arith.constant 2.44140625E-4 : f32
      %131 = vector.broadcast %cst_124 : f32 to vector<1x8x1x1xf32>
      %132 = arith.mulf %128, %131 : vector<1x8x1x1xf32>
      %133 = arith.mulf %130, %130 : vector<1x8x1x1xf32>
      %134 = arith.subf %132, %133 : vector<1x8x1x1xf32>
      %cst_125 = arith.constant 0.000000e+00 : f32
      %135 = vector.broadcast %cst_125 : f32 to vector<1x8x1x1xf32>
      %136 = arith.maximumf %134, %135 : vector<1x8x1x1xf32>
      %c0_126 = arith.constant 0 : index
      %c0_127 = arith.constant 0 : index
      %c0_128 = arith.constant 0 : index
      %c0_129 = arith.constant 0 : index
      %137 = vector.load %arg3[%c0_126, %c0_127, %c0_128, %c0_129] : memref<1x8x1x1xf32, #tpu.memory_space<vmem>>, vector<1x8x1x1xf32>
      %cst_130 = arith.constant 9.99999974E-6 : f32
      %138 = vector.broadcast %cst_130 : f32 to vector<1x8x1x1xf32>
      %139 = arith.addf %136, %138 : vector<1x8x1x1xf32>
      %140 = math.rsqrt %139 : vector<1x8x1x1xf32>
      %141 = arith.mulf %137, %140 : vector<1x8x1x1xf32>
      %c0_131 = arith.constant 0 : index
      %c0_132 = arith.constant 0 : index
      %c0_133 = arith.constant 0 : index
      %c0_134 = arith.constant 0 : index
      %142 = vector.load %arg18[%c0_131, %c0_132, %c0_133, %c0_134] : memref<1x8x1x1xf32, #tpu.memory_space<vmem>>, vector<1x8x1x1xf32>
      tpu.vector_store %arg18[%c0_131, %c0_132, %c0_133, %c0_134], %141 {strides = array<i32>} : memref<1x8x1x1xf32, #tpu.memory_space<vmem>>, vector<1x8x1x1xf32>,
      %c0_135 = arith.constant 0 : index
      %c0_136 = arith.constant 0 : index
      %c0_137 = arith.constant 0 : index
      %c0_138 = arith.constant 0 : index
      %143 = vector.load %arg4[%c0_135, %c0_136, %c0_137, %c0_138] : memref<1x8x1x1xf32, #tpu.memory_space<vmem>>, vector<1x8x1x1xf32>
      %144 = arith.mulf %130, %141 : vector<1x8x1x1xf32>
      %145 = arith.subf %143, %144 : vector<1x8x1x1xf32>
      %c0_139 = arith.constant 0 : index
      %c0_140 = arith.constant 0 : index
      %c0_141 = arith.constant 0 : index
      %c0_142 = arith.constant 0 : index
      %146 = vector.load %arg19[%c0_139, %c0_140, %c0_141, %c0_142] : memref<1x8x1x1xf32, #tpu.memory_space<vmem>>, vector<1x8x1x1xf32>
      tpu.vector_store %arg19[%c0_139, %c0_140, %c0_141, %c0_142], %145 {strides = array<i32>} : memref<1x8x1x1xf32, #tpu.memory_space<vmem>>, vector<1x8x1x1xf32>,
    } else {
    }
    %c8_i32 = arith.constant 8 : i32
    %3 = arith.muli %arg1, %c8_i32 : i32
    %4 = tpu.assume_multiple %3, 8 : i32
    %c0 = arith.constant 0 : index
    %c0_1 = arith.constant 0 : index
    %5 = arith.index_cast %4 : i32 to index
    %c0_2 = arith.constant 0 : index
    %6 = vector.load %arg2[%c0, %c0_1, %5, %c0_2] : memref<2x8x8x256xf32, #tpu.memory_space<vmem>>, vector<2x8x8x256xf32>
    %c0_3 = arith.constant 0 : index
    %c0_4 = arith.constant 0 : index
    %c0_5 = arith.constant 0 : index
    %c0_6 = arith.constant 0 : index
    %7 = vector.load %arg18[%c0_3, %c0_4, %c0_5, %c0_6] : memref<1x8x1x1xf32, #tpu.memory_space<vmem>>, vector<1x8x1x1xf32>
    %8 = vector.broadcast %7 : vector<1x8x1x1xf32> to vector<2x8x8x256xf32>
    %9 = arith.mulf %6, %8 : vector<2x8x8x256xf32>
    %c0_7 = arith.constant 0 : index
    %c0_8 = arith.constant 0 : index
    %c0_9 = arith.constant 0 : index
    %c0_10 = arith.constant 0 : index
    %10 = vector.load %arg19[%c0_7, %c0_8, %c0_9, %c0_10] : memref<1x8x1x1xf32, #tpu.memory_space<vmem>>, vector<1x8x1x1xf32>
    %11 = vector.broadcast %10 : vector<1x8x1x1xf32> to vector<2x8x8x256xf32>
    %12 = arith.addf %9, %11 : vector<2x8x8x256xf32>
    %c0_11 = arith.constant 0 : index
    %c0_12 = arith.constant 0 : index
    %c0_13 = arith.constant 0 : index
    %c0_14 = arith.constant 0 : index
    %13 = vector.load %arg13[%c0_11, %c0_12, %c0_13, %c0_14] : memref<2x8x8x256xf32, #tpu.memory_space<vmem>>, vector<2x8x8x256xf32>
    tpu.vector_store %arg13[%c0_11, %c0_12, %c0_13, %c0_14], %12 {strides = array<i32>} : memref<2x8x8x256xf32, #tpu.memory_space<vmem>>, vector<2x8x8x256xf32>,
    %c0_15 = arith.constant 0 : index
    %c0_16 = arith.constant 0 : index
    %c0_17 = arith.constant 0 : index
    %c0_18 = arith.constant 0 : index
    %14 = vector.load %arg5[%c0_15, %c0_16, %c0_17, %c0_18] : memref<1x8x1x1xf32, #tpu.memory_space<vmem>>, vector<1x8x1x1xf32>
    %15 = vector.broadcast %14 : vector<1x8x1x1xf32> to vector<2x8x8x256xf32>
    %16 = arith.mulf %6, %15 : vector<2x8x8x256xf32>
    %c0_19 = arith.constant 0 : index
    %c0_20 = arith.constant 0 : index
    %c0_21 = arith.constant 0 : index
    %c0_22 = arith.constant 0 : index
    %17 = vector.load %arg6[%c0_19, %c0_20, %c0_21, %c0_22] : memref<1x8x1x1xf32, #tpu.memory_space<vmem>>, vector<1x8x1x1xf32>
    %18 = vector.broadcast %17 : vector<1x8x1x1xf32> to vector<2x8x8x256xf32>
    %19 = arith.addf %16, %18 : vector<2x8x8x256xf32>
    %c0_23 = arith.constant 0 : index
    %c0_24 = arith.constant 0 : index
    %c0_25 = arith.constant 0 : index
    %c0_26 = arith.constant 0 : index
    %20 = vector.load %arg14[%c0_23, %c0_24, %c0_25, %c0_26] : memref<2x8x8x256xf32, #tpu.memory_space<vmem>>, vector<2x8x8x256xf32>
    tpu.vector_store %arg14[%c0_23, %c0_24, %c0_25, %c0_26], %19 {strides = array<i32>} : memref<2x8x8x256xf32, #tpu.memory_space<vmem>>, vector<2x8x8x256xf32>,
    %c0_27 = arith.constant 0 : index
    %c0_28 = arith.constant 0 : index
    %c0_29 = arith.constant 0 : index
    %c0_30 = arith.constant 0 : index
    %21 = vector.load %arg20[%c0_27, %c0_28, %c0_29, %c0_30] : memref<2x8x1x1xf32, #tpu.memory_space<vmem>>, vector<2x8x1x1xf32>
    %22 = vector.broadcast %21 : vector<2x8x1x1xf32> to vector<2x8x8x256xf32>
    %23 = arith.mulf %6, %22 : vector<2x8x8x256xf32>
    %c0_31 = arith.constant 0 : index
    %c0_32 = arith.constant 0 : index
    %c0_33 = arith.constant 0 : index
    %c0_34 = arith.constant 0 : index
    %24 = vector.load %arg21[%c0_31, %c0_32, %c0_33, %c0_34] : memref<2x8x1x1xf32, #tpu.memory_space<vmem>>, vector<2x8x1x1xf32>
    %25 = vector.broadcast %24 : vector<2x8x1x1xf32> to vector<2x8x8x256xf32>
    %26 = arith.addf %23, %25 : vector<2x8x8x256xf32>
    %c0_35 = arith.constant 0 : index
    %c0_36 = arith.constant 0 : index
    %c0_37 = arith.constant 0 : index
    %c0_38 = arith.constant 0 : index
    %27 = vector.load %arg15[%c0_35, %c0_36, %c0_37, %c0_38] : memref<2x8x8x256xf32, #tpu.memory_space<vmem>>, vector<2x8x8x256xf32>
    tpu.vector_store %arg15[%c0_35, %c0_36, %c0_37, %c0_38], %26 {strides = array<i32>} : memref<2x8x8x256xf32, #tpu.memory_space<vmem>>, vector<2x8x8x256xf32>,
    %c0_39 = arith.constant 0 : index
    %c0_40 = arith.constant 0 : index
    %c0_41 = arith.constant 0 : index
    %c0_42 = arith.constant 0 : index
    %28 = vector.load %arg22[%c0_39, %c0_40, %c0_41, %c0_42] : memref<2x8x1x1xf32, #tpu.memory_space<vmem>>, vector<2x8x1x1xf32>
    %29 = vector.broadcast %28 : vector<2x8x1x1xf32> to vector<2x8x8x256xf32>
    %30 = arith.mulf %6, %29 : vector<2x8x8x256xf32>
    %c0_43 = arith.constant 0 : index
    %c0_44 = arith.constant 0 : index
    %c0_45 = arith.constant 0 : index
    %c0_46 = arith.constant 0 : index
    %31 = vector.load %arg23[%c0_43, %c0_44, %c0_45, %c0_46] : memref<2x8x1x1xf32, #tpu.memory_space<vmem>>, vector<2x8x1x1xf32>
    %32 = vector.broadcast %31 : vector<2x8x1x1xf32> to vector<2x8x8x256xf32>
    %33 = arith.addf %30, %32 : vector<2x8x8x256xf32>
    %c0_47 = arith.constant 0 : index
    %c0_48 = arith.constant 0 : index
    %c0_49 = arith.constant 0 : index
    %c0_50 = arith.constant 0 : index
    %34 = vector.load %arg16[%c0_47, %c0_48, %c0_49, %c0_50] : memref<2x8x8x256xf32, #tpu.memory_space<vmem>>, vector<2x8x8x256xf32>
    tpu.vector_store %arg16[%c0_47, %c0_48, %c0_49, %c0_50], %33 {strides = array<i32>} : memref<2x8x8x256xf32, #tpu.memory_space<vmem>>, vector<2x8x8x256xf32>,
    %cst = arith.constant dense<0.000000e+00> : vector<2x8x8xf32>
    %35 = vector.multi_reduction <add>, %6, %cst [3] : vector<2x8x8x256xf32> to vector<2x8x8xf32>
    %36 = vector.shape_cast %35 : vector<2x8x8xf32> to vector<2x8x8x1xf32>
    %37 = arith.mulf %6, %6 : vector<2x8x8x256xf32>
    %cst_51 = arith.constant dense<0.000000e+00> : vector<2x8x8xf32>
    %38 = vector.multi_reduction <add>, %37, %cst_51 [3] : vector<2x8x8x256xf32> to vector<2x8x8xf32>
    %39 = vector.shape_cast %38 : vector<2x8x8xf32> to vector<2x8x8x1xf32>
    %cst_52 = arith.constant 3.906250e-03 : f32
    %40 = vector.broadcast %cst_52 : f32 to vector<2x8x8x1xf32>
    %41 = arith.mulf %36, %40 : vector<2x8x8x1xf32>
    %cst_53 = arith.constant 3.906250e-03 : f32
    %42 = vector.broadcast %cst_53 : f32 to vector<2x8x8x1xf32>
    %43 = arith.mulf %39, %42 : vector<2x8x8x1xf32>
    %44 = arith.mulf %41, %41 : vector<2x8x8x1xf32>
    %45 = arith.subf %43, %44 : vector<2x8x8x1xf32>
    %cst_54 = arith.constant 0.000000e+00 : f32
    %46 = vector.broadcast %cst_54 : f32 to vector<2x8x8x1xf32>
    %47 = arith.maximumf %45, %46 : vector<2x8x8x1xf32>
    %cst_55 = arith.constant 9.99999974E-6 : f32
    %48 = vector.broadcast %cst_55 : f32 to vector<2x8x8x1xf32>
    %49 = arith.addf %47, %48 : vector<2x8x8x1xf32>
    %50 = math.rsqrt %49 : vector<2x8x8x1xf32>
    %51 = vector.broadcast %41 : vector<2x8x8x1xf32> to vector<2x8x8x256xf32>
    %52 = arith.subf %6, %51 : vector<2x8x8x256xf32>
    %53 = vector.broadcast %50 : vector<2x8x8x1xf32> to vector<2x8x8x256xf32>
    %54 = arith.mulf %52, %53 : vector<2x8x8x256xf32>
    %c0_56 = arith.constant 0 : index
    %c0_57 = arith.constant 0 : index
    %c0_58 = arith.constant 0 : index
    %c0_59 = arith.constant 0 : index
    %55 = vector.load %arg11[%c0_56, %c0_57, %c0_58, %c0_59] : memref<1x1x1x256xf32, #tpu.memory_space<vmem>>, vector<1x1x1x256xf32>
    %56 = vector.broadcast %55 : vector<1x1x1x256xf32> to vector<2x8x8x256xf32>
    %57 = arith.mulf %54, %56 : vector<2x8x8x256xf32>
    %c0_60 = arith.constant 0 : index
    %c0_61 = arith.constant 0 : index
    %c0_62 = arith.constant 0 : index
    %c0_63 = arith.constant 0 : index
    %58 = vector.load %arg12[%c0_60, %c0_61, %c0_62, %c0_63] : memref<1x1x1x256xf32, #tpu.memory_space<vmem>>, vector<1x1x1x256xf32>
    %59 = vector.broadcast %58 : vector<1x1x1x256xf32> to vector<2x8x8x256xf32>
    %60 = arith.addf %57, %59 : vector<2x8x8x256xf32>
    %c0_64 = arith.constant 0 : index
    %c0_65 = arith.constant 0 : index
    %c0_66 = arith.constant 0 : index
    %c0_67 = arith.constant 0 : index
    %61 = vector.load %arg17[%c0_64, %c0_65, %c0_66, %c0_67] : memref<2x8x8x256xf32, #tpu.memory_space<vmem>>, vector<2x8x8x256xf32>
    tpu.vector_store %arg17[%c0_64, %c0_65, %c0_66, %c0_67], %60 {strides = array<i32>} : memref<2x8x8x256xf32, #tpu.memory_space<vmem>>, vector<2x8x8x256xf32>,
    return
  }
  func.func @transform_0(%arg0: i32, %arg1: i32) -> (i32, i32, i32, i32) {
    %c0_i32 = arith.constant 0 : i32
    %c0_i32_0 = arith.constant 0 : i32
    %c0_i32_1 = arith.constant 0 : i32
    %c0_i32_2 = arith.constant 0 : i32
    return %c0_i32, %arg0, %c0_i32_0, %c0_i32_1 : i32, i32, i32, i32
  }
  func.func @transform_1(%arg0: i32, %arg1: i32) -> (i32, i32, i32, i32) {
    %c0_i32 = arith.constant 0 : i32
    %c0_i32_0 = arith.constant 0 : i32
    %c0_i32_1 = arith.constant 0 : i32
    %c0_i32_2 = arith.constant 0 : i32
    return %c0_i32, %arg0, %c0_i32_0, %c0_i32_1 : i32, i32, i32, i32
  }
  func.func @transform_2(%arg0: i32, %arg1: i32) -> (i32, i32, i32, i32) {
    %c0_i32 = arith.constant 0 : i32
    %c0_i32_0 = arith.constant 0 : i32
    %c0_i32_1 = arith.constant 0 : i32
    %c0_i32_2 = arith.constant 0 : i32
    return %c0_i32, %arg0, %c0_i32_0, %c0_i32_1 : i32, i32, i32, i32
  }
  func.func @transform_3(%arg0: i32, %arg1: i32) -> (i32, i32, i32, i32) {
    %c0_i32 = arith.constant 0 : i32
    %c0_i32_0 = arith.constant 0 : i32
    %c0_i32_1 = arith.constant 0 : i32
    %c0_i32_2 = arith.constant 0 : i32
    return %c0_i32, %arg0, %c0_i32_0, %c0_i32_1 : i32, i32, i32, i32
  }
  func.func @transform_4(%arg0: i32, %arg1: i32) -> (i32, i32, i32, i32) {
    %c0_i32 = arith.constant 0 : i32
    %c0_i32_0 = arith.constant 0 : i32
    %c0_i32_1 = arith.constant 0 : i32
    %c0_i32_2 = arith.constant 0 : i32
    return %c0_i32, %arg0, %c0_i32_0, %c0_i32_1 : i32, i32, i32, i32
  }
  func.func @transform_5(%arg0: i32, %arg1: i32) -> (i32, i32, i32, i32) {
    %c0_i32 = arith.constant 0 : i32
    %c0_i32_0 = arith.constant 0 : i32
    %c0_i32_1 = arith.constant 0 : i32
    %c0_i32_2 = arith.constant 0 : i32
    return %c0_i32, %arg0, %c0_i32_0, %c0_i32_1 : i32, i32, i32, i32
  }
  func.func @transform_6(%arg0: i32, %arg1: i32) -> (i32, i32, i32, i32) {
    %c0_i32 = arith.constant 0 : i32
    %c0_i32_0 = arith.constant 0 : i32
    %c0_i32_1 = arith.constant 0 : i32
    %c0_i32_2 = arith.constant 0 : i32
    return %c0_i32, %arg0, %c0_i32_0, %c0_i32_1 : i32, i32, i32, i32
  }
  func.func @transform_7(%arg0: i32, %arg1: i32) -> (i32, i32, i32, i32) {
    %c0_i32 = arith.constant 0 : i32
    %c0_i32_0 = arith.constant 0 : i32
    %c0_i32_1 = arith.constant 0 : i32
    %c0_i32_2 = arith.constant 0 : i32
    return %c0_i32, %arg0, %c0_i32_0, %c0_i32_1 : i32, i32, i32, i32
  }
  func.func @transform_8(%arg0: i32, %arg1: i32) -> (i32, i32, i32, i32) {
    %c0_i32 = arith.constant 0 : i32
    %c0_i32_0 = arith.constant 0 : i32
    %c0_i32_1 = arith.constant 0 : i32
    %c0_i32_2 = arith.constant 0 : i32
    return %c0_i32, %arg0, %c0_i32_0, %c0_i32_1 : i32, i32, i32, i32
  }
  func.func @transform_9(%arg0: i32, %arg1: i32) -> (i32, i32, i32, i32) {
    %c0_i32 = arith.constant 0 : i32
    %c0_i32_0 = arith.constant 0 : i32
    %c0_i32_1 = arith.constant 0 : i32
    %c0_i32_2 = arith.constant 0 : i32
    %c0_i32_3 = arith.constant 0 : i32
    return %c0_i32, %c0_i32_0, %c0_i32_1, %c0_i32_2 : i32, i32, i32, i32
  }
  func.func @transform_10(%arg0: i32, %arg1: i32) -> (i32, i32, i32, i32) {
    %c0_i32 = arith.constant 0 : i32
    %c0_i32_0 = arith.constant 0 : i32
    %c0_i32_1 = arith.constant 0 : i32
    %c0_i32_2 = arith.constant 0 : i32
    %c0_i32_3 = arith.constant 0 : i32
    return %c0_i32, %c0_i32_0, %c0_i32_1, %c0_i32_2 : i32, i32, i32, i32
  }
  func.func @transform_11(%arg0: i32, %arg1: i32) -> (i32, i32, i32, i32) {
    %c0_i32 = arith.constant 0 : i32
    %c0_i32_0 = arith.constant 0 : i32
    %c0_i32_1 = arith.constant 0 : i32
    return %c0_i32, %arg0, %arg1, %c0_i32_0 : i32, i32, i32, i32
  }
  func.func @transform_12(%arg0: i32, %arg1: i32) -> (i32, i32, i32, i32) {
    %c0_i32 = arith.constant 0 : i32
    %c0_i32_0 = arith.constant 0 : i32
    %c0_i32_1 = arith.constant 0 : i32
    return %c0_i32, %arg0, %arg1, %c0_i32_0 : i32, i32, i32, i32
  }
  func.func @transform_13(%arg0: i32, %arg1: i32) -> (i32, i32, i32, i32) {
    %c0_i32 = arith.constant 0 : i32
    %c0_i32_0 = arith.constant 0 : i32
    %c0_i32_1 = arith.constant 0 : i32
    return %c0_i32, %arg0, %arg1, %c0_i32_0 : i32, i32, i32, i32
  }
  func.func @transform_14(%arg0: i32, %arg1: i32) -> (i32, i32, i32, i32) {
    %c0_i32 = arith.constant 0 : i32
    %c0_i32_0 = arith.constant 0 : i32
    %c0_i32_1 = arith.constant 0 : i32
    return %c0_i32, %arg0, %arg1, %c0_i32_0 : i32, i32, i32, i32
  }
  func.func @transform_15(%arg0: i32, %arg1: i32) -> (i32, i32, i32, i32) {
    %c0_i32 = arith.constant 0 : i32
    %c0_i32_0 = arith.constant 0 : i32
    %c0_i32_1 = arith.constant 0 : i32
    return %c0_i32, %arg0, %arg1, %c0_i32_0 : i32, i32, i32, i32
  }
}

</mosaic_0001>

<llo_original>
// kernel: dummy_model_forward.1
$region0: #{dummy_model_forward.1}
  #allocation0 [shape = 'u32[]', space=smem, size = 0x4, offset = 0x4, fixed_abs, tag = 'smem constant byte address 0x4 - core index']
  #allocation1 [shape = 'u32[144,128]{1,0:T(1,128)}', space=vmem, size = 0x12000, scoped, tag = 'internal scratch']
  #allocation2 [shape = 'f32[1,8,1,1]{3,2,1,0:T(1,128)}', space=vmem, size = 0x1000, scoped, tag = 'scratch operand']
  #allocation3 [shape = 'f32[1,8,1,1]{3,2,1,0:T(1,128)}', space=vmem, size = 0x1000, scoped, tag = 'scratch operand']
  #allocation4 [shape = 'f32[2,8,1,1]{3,2,1,0:T(1,128)}', space=vmem, size = 0x2000, scoped, tag = 'scratch operand']
  #allocation5 [shape = 'f32[2,8,1,1]{3,2,1,0:T(1,128)}', space=vmem, size = 0x2000, scoped, tag = 'scratch operand']
  #allocation6 [shape = 'f32[2,8,1,1]{3,2,1,0:T(1,128)}', space=vmem, size = 0x2000, scoped, tag = 'scratch operand']
  #allocation7 [shape = 'f32[2,8,1,1]{3,2,1,0:T(1,128)}', space=vmem, size = 0x2000, scoped, tag = 'scratch operand']
  #allocation18 [shape = 's32[]', space=sflag, size = 0x4, offset = 0, fixed_abs, tag = 'sflag constant byte address 0x0 - dummy sync flag']
  #allocation20 [shape = 's32[]', space=sflag, size = 0x4, offset = 0, fixed_abs, tag = 'sflag constant byte address 0x0 - dummy sync flag']
  #allocation22 [shape = 's32[]', space=sflag, size = 0x4, offset = 0, fixed_abs, tag = 'sflag constant byte address 0x0 - dummy sync flag']
  #allocation24 [shape = 's32[]', space=sflag, size = 0x4, offset = 0, fixed_abs, tag = 'sflag constant byte address 0x0 - dummy sync flag']
  #allocation26 [shape = 's32[]', space=sflag, size = 0x4, offset = 0, fixed_abs, tag = 'sflag constant byte address 0x0 - dummy sync flag']
  #allocation28 [shape = 's32[]', space=sflag, size = 0x4, offset = 0, fixed_abs, tag = 'sflag constant byte address 0x0 - dummy sync flag']
  %s0 = inlined_call_operand.hbm [shape: f32[2,32,8,256], index: 0, kind: input, shape index: {}]
  %s1 = inlined_call_operand.vmem [shape: f32[1,32,1,1], index: 1, kind: input, shape index: {}]
  %s2 = inlined_call_operand.vmem [shape: f32[1,32,1,1], index: 2, kind: input, shape index: {}]
  %s3 = inlined_call_operand.vmem [shape: f32[1,32,1,1], index: 3, kind: input, shape index: {}]
  %s4 = inlined_call_operand.vmem [shape: f32[1,32,1,1], index: 4, kind: input, shape index: {}]
  %s5 = inlined_call_operand.vmem [shape: f32[1,32,1,1], index: 5, kind: input, shape index: {}]
  %s6 = inlined_call_operand.vmem [shape: f32[1,32,1,1], index: 6, kind: input, shape index: {}]
  %s7 = inlined_call_operand.vmem [shape: f32[1,32,1,1], index: 7, kind: input, shape index: {}]
  %s8 = inlined_call_operand.vmem [shape: f32[1,32,1,1], index: 8, kind: input, shape index: {}]
  %s9 = inlined_call_operand.vmem [shape: f32[1,1,1,256], index: 9, kind: input, shape index: {}]
  %s10 = inlined_call_operand.vmem [shape: f32[1,1,1,256], index: 10, kind: input, shape index: {}]
  %s11 = inlined_call_operand.hbm [shape: f32[2,32,8,256], index: 11, kind: output, shape index: {0}]
  %s12 = inlined_call_operand.hbm [shape: f32[2,32,8,256], index: 12, kind: output, shape index: {1}]
  %s13 = inlined_call_operand.hbm [shape: f32[2,32,8,256], index: 13, kind: output, shape index: {2}]
  %s14 = inlined_call_operand.hbm [shape: f32[2,32,8,256], index: 14, kind: output, shape index: {3}]
  %s15 = inlined_call_operand.hbm [shape: f32[2,32,8,256], index: 15, kind: output, shape index: {4}]
  %16 = xla_tuple %s11, %s12, %s13, %s14, %s15
  %s17 = sld [smem:[#allocation0]]
  $region117: #{dummy_model_forward.1} parent=0
    _
  %s19 = ssub.s32 1, %s17
  %s20 = scalar_select 0, %s19, %s17
  $region1: #{dummy_model_forward.1} parent=0
    #allocation8 [shape = 'u8[262144]{0}', space=vmem, size = 0x40000, scoped, tag = 'input window, operand 0']
    #allocation9 [shape = 's32[2]{0}', space=sflag, size = 0x8, scoped, tag = 'scoped memory for dummy_model_forward.1']
    #allocation10 [shape = 's32[2]{0}', space=sflag, size = 0x8, scoped, tag = 'scoped memory for dummy_model_forward.1']
    #allocation11 [shape = 'u8[262144]{0}', space=vmem, size = 0x40000, scoped, tag = 'output window, operand 0']
    #allocation12 [shape = 'u8[262144]{0}', space=vmem, size = 0x40000, scoped, tag = 'output window, operand 1']
    #allocation13 [shape = 's32[2]{0}', space=sflag, size = 0x8, scoped, tag = 'scoped memory for dummy_model_forward.1']
    #allocation14 [shape = 'u8[262144]{0}', space=vmem, size = 0x40000, scoped, tag = 'output window, operand 2']
    #allocation15 [shape = 'u8[262144]{0}', space=vmem, size = 0x40000, scoped, tag = 'output window, operand 3']
    #allocation16 [shape = 's32[2]{0}', space=sflag, size = 0x8, scoped, tag = 'scoped memory for dummy_model_forward.1']
    #allocation17 [shape = 'u8[262144]{0}', space=vmem, size = 0x40000, scoped, tag = 'output window, operand 4']
    %21 = vsyncpa [#allocation9], 0
    %s22 = scalar_lea.sflag [#allocation9], 1
    %23 = vsyncpa %s22, 0
    %24 = vsyncpa [#allocation10], 0
    %s25 = scalar_lea.sflag [#allocation10], 1
    %26 = vsyncpa %s25, 0
    %27 = vsyncpa [#allocation13], 0
    %s28 = scalar_lea.sflag [#allocation13], 1
    %29 = vsyncpa %s28, 0
    %30 = vsyncpa [#allocation16], 0
    %s31 = scalar_lea.sflag [#allocation16], 1
    %32 = vsyncpa %s31, 0
    loop: start=0, step=1, limit=6
    $region2: #{dummy_model_forward.1} parent=1 // loop_pre_header
      _
    $region3: #{dummy_model_forward.1} parent=1 // loop_header
      %s34 = sphi 0, %s38
      %p35 = scmp.ge.s32.totalorder %s34, 6
      %s41 = sphi 0, %s53
      %s42 = sphi 0, %s49
      %s43 = sphi 0, %s41
      %s44 = sphi 0, %s42
      %s45 = sphi 0, %s43
      %s46 = sphi 0, %s44
      %s56 = sphi 0, %s58
      %s59 = sphi 0, %s56
      %s60 = sphi 0, %s59
      %s76 = sphi 0, %s60
      %s82 = sphi 0, %s84
      %s85 = sphi 0, %s82
      %s86 = sphi 0, %s85
      %s102 = sphi 0, %s86
      %s108 = sphi 0, %s110
      %s111 = sphi 0, %s108
      %s112 = sphi 0, %s111
      %s128 = sphi 0, %s112
      %s134 = sphi 0, %s136
      %s137 = sphi 0, %s134
      %s138 = sphi 0, %s137
      %s154 = sphi 0, %s138
      %s160 = sphi 0, %s162
      %s163 = sphi 0, %s160
      %s164 = sphi 0, %s163
      %s180 = sphi 0, %s164
      %s186 = sphi 0, %s188
      %s189 = sphi 0, %s186
      %s190 = sphi 0, %s189
      %s206 = sphi 0, %s190
      %s212 = sphi 0, %s214
      %s215 = sphi 0, %s212
      %s216 = sphi 0, %s215
      %s232 = sphi 0, %s216
      %s238 = sphi 0, %s240
      %s241 = sphi 0, %s238
      %s242 = sphi 0, %s241
      %s258 = sphi 0, %s242
      %s264 = sphi 0, %s266
      %s267 = sphi 0, %s264
      %s268 = sphi 0, %s267
      %s284 = sphi 0, %s268
      %s288 = sphi 0, %s288
      %s290 = sphi 0, %s288
      %s291 = sphi 0, %s290
      %s305 = sphi 0, %s291
      %s309 = sphi 0, %s309
      %s311 = sphi 0, %s309
      %s312 = sphi 0, %s311
      %s326 = sphi 0, %s312
      %s334 = sphi 0, %s336
      %s337 = sphi 0, %s334
      %s338 = sphi 0, %s337
      %s354 = sphi 0, %s338
      %s362 = sphi 0, %s364
      %s365 = sphi 0, %s362
      %s366 = sphi 0, %s365
      %s382 = sphi 0, %s366
      %s390 = sphi 0, %s392
      %s393 = sphi 0, %s390
      %s394 = sphi 0, %s393
      %s410 = sphi 0, %s394
      %s418 = sphi 0, %s420
      %s421 = sphi 0, %s418
      %s422 = sphi 0, %s421
      %s438 = sphi 0, %s422
      %s446 = sphi 0, %s448
      %s449 = sphi 0, %s446
      %s450 = sphi 0, %s449
      %s466 = sphi 0, %s450
    $region4: #{dummy_model_forward.1} parent=1 // loop_header_branch
      %37 = sbr.rel (%p35) target = $region8
    $region5: #{dummy_model_forward.1} parent=1 // loop_body
      %s39 = ssub.s32 %s34, 1
      %s40 = ssub.s32 %s34, 2
      %s47 = sadd.s32 1, %s42
      %p48 = scmp.ge.s32.totalorder %s47, 1
      %s49 = scalar_select %p48, 0, %s47
      %s50 = sadd.s32 1, %s41
      %s51 = scalar_select %p48, %s50, %s41
      %p52 = scmp.ge.s32.totalorder %s51, 4
      %s53 = scalar_select %p52, 0, %s51
      %s54 = ssub.s32 %s41, %s53
      %p55 = scmp.eq.s32.totalorder %s54, 0
      %s57 = sadd.s32 %s56, 1
      %s58 = scalar_select %p55, %s56, %s57
      %p61 = pneg %p55
      %p62 = scmp.eq.s32.totalorder %s34, 3
      %p63 = por %p61, %p62
      %p64 = scmp.ne.s32.totalorder %s56, %s59
      %p65 = scmp.eq.s32.totalorder %s34, 0
      %p66 = por %p64, %p65
      %p67 = scmp.ne.s32.totalorder %s56, %s59
      %p68 = scmp.eq.s32.totalorder %s39, 3
      %p69 = por %p67, %p68
      %p70 = scmp.ne.s32.totalorder %s59, %s60
      %p71 = scmp.eq.s32.totalorder %s39, 0
      %p72 = por %p70, %p71
      %p73 = scmp.ne.s32.totalorder %s59, %s60
      %p74 = scmp.eq.s32.totalorder %s40, 3
      %p75 = por %p73, %p74
      %p77 = scmp.ne.s32.totalorder %s60, %s76
      %p78 = scmp.eq.s32.totalorder %s40, 0
      %p79 = por %p77, %p78
      %s80 = ssub.s32 %s41, %s53
      %p81 = scmp.eq.s32.totalorder %s80, 0
      %s83 = sadd.s32 %s82, 1
      %s84 = scalar_select %p81, %s82, %s83
      %p87 = pneg %p81
      %p88 = scmp.eq.s32.totalorder %s34, 3
      %p89 = por %p87, %p88
      %p90 = scmp.ne.s32.totalorder %s82, %s85
      %p91 = scmp.eq.s32.totalorder %s34, 0
      %p92 = por %p90, %p91
      %p93 = scmp.ne.s32.totalorder %s82, %s85
      %p94 = scmp.eq.s32.totalorder %s39, 3
      %p95 = por %p93, %p94
      %p96 = scmp.ne.s32.totalorder %s85, %s86
      %p97 = scmp.eq.s32.totalorder %s39, 0
      %p98 = por %p96, %p97
      %p99 = scmp.ne.s32.totalorder %s85, %s86
      %p100 = scmp.eq.s32.totalorder %s40, 3
      %p101 = por %p99, %p100
      %p103 = scmp.ne.s32.totalorder %s86, %s102
      %p104 = scmp.eq.s32.totalorder %s40, 0
      %p105 = por %p103, %p104
      %s106 = ssub.s32 %s41, %s53
      %p107 = scmp.eq.s32.totalorder %s106, 0
      %s109 = sadd.s32 %s108, 1
      %s110 = scalar_select %p107, %s108, %s109
      %p113 = pneg %p107
      %p114 = scmp.eq.s32.totalorder %s34, 3
      %p115 = por %p113, %p114
      %p116 = scmp.ne.s32.totalorder %s108, %s111
      %p117 = scmp.eq.s32.totalorder %s34, 0
      %p118 = por %p116, %p117
      %p119 = scmp.ne.s32.totalorder %s108, %s111
      %p120 = scmp.eq.s32.totalorder %s39, 3
      %p121 = por %p119, %p120
      %p122 = scmp.ne.s32.totalorder %s111, %s112
      %p123 = scmp.eq.s32.totalorder %s39, 0
      %p124 = por %p122, %p123
      %p125 = scmp.ne.s32.totalorder %s111, %s112
      %p126 = scmp.eq.s32.totalorder %s40, 3
      %p127 = por %p125, %p126
      %p129 = scmp.ne.s32.totalorder %s112, %s128
      %p130 = scmp.eq.s32.totalorder %s40, 0
      %p131 = por %p129, %p130
      %s132 = ssub.s32 %s41, %s53
      %p133 = scmp.eq.s32.totalorder %s132, 0
      %s135 = sadd.s32 %s134, 1
      %s136 = scalar_select %p133, %s134, %s135
      %p139 = pneg %p133
      %p140 = scmp.eq.s32.totalorder %s34, 3
      %p141 = por %p139, %p140
      %p142 = scmp.ne.s32.totalorder %s134, %s137
      %p143 = scmp.eq.s32.totalorder %s34, 0
      %p144 = por %p142, %p143
      %p145 = scmp.ne.s32.totalorder %s134, %s137
      %p146 = scmp.eq.s32.totalorder %s39, 3
      %p147 = por %p145, %p146
      %p148 = scmp.ne.s32.totalorder %s137, %s138
      %p149 = scmp.eq.s32.totalorder %s39, 0
      %p150 = por %p148, %p149
      %p151 = scmp.ne.s32.totalorder %s137, %s138
      %p152 = scmp.eq.s32.totalorder %s40, 3
      %p153 = por %p151, %p152
      %p155 = scmp.ne.s32.totalorder %s138, %s154
      %p156 = scmp.eq.s32.totalorder %s40, 0
      %p157 = por %p155, %p156
      %s158 = ssub.s32 %s41, %s53
      %p159 = scmp.eq.s32.totalorder %s158, 0
      %s161 = sadd.s32 %s160, 1
      %s162 = scalar_select %p159, %s160, %s161
      %p165 = pneg %p159
      %p166 = scmp.eq.s32.totalorder %s34, 3
      %p167 = por %p165, %p166
      %p168 = scmp.ne.s32.totalorder %s160, %s163
      %p169 = scmp.eq.s32.totalorder %s34, 0
      %p170 = por %p168, %p169
      %p171 = scmp.ne.s32.totalorder %s160, %s163
      %p172 = scmp.eq.s32.totalorder %s39, 3
      %p173 = por %p171, %p172
      %p174 = scmp.ne.s32.totalorder %s163, %s164
      %p175 = scmp.eq.s32.totalorder %s39, 0
      %p176 = por %p174, %p175
      %p177 = scmp.ne.s32.totalorder %s163, %s164
      %p178 = scmp.eq.s32.totalorder %s40, 3
      %p179 = por %p177, %p178
      %p181 = scmp.ne.s32.totalorder %s164, %s180
      %p182 = scmp.eq.s32.totalorder %s40, 0
      %p183 = por %p181, %p182
      %s184 = ssub.s32 %s41, %s53
      %p185 = scmp.eq.s32.totalorder %s184, 0
      %s187 = sadd.s32 %s186, 1
      %s188 = scalar_select %p185, %s186, %s187
      %p191 = pneg %p185
      %p192 = scmp.eq.s32.totalorder %s34, 3
      %p193 = por %p191, %p192
      %p194 = scmp.ne.s32.totalorder %s186, %s189
      %p195 = scmp.eq.s32.totalorder %s34, 0
      %p196 = por %p194, %p195
      %p197 = scmp.ne.s32.totalorder %s186, %s189
      %p198 = scmp.eq.s32.totalorder %s39, 3
      %p199 = por %p197, %p198
      %p200 = scmp.ne.s32.totalorder %s189, %s190
      %p201 = scmp.eq.s32.totalorder %s39, 0
      %p202 = por %p200, %p201
      %p203 = scmp.ne.s32.totalorder %s189, %s190
      %p204 = scmp.eq.s32.totalorder %s40, 3
      %p205 = por %p203, %p204
      %p207 = scmp.ne.s32.totalorder %s190, %s206
      %p208 = scmp.eq.s32.totalorder %s40, 0
      %p209 = por %p207, %p208
      %s210 = ssub.s32 %s41, %s53
      %p211 = scmp.eq.s32.totalorder %s210, 0
      %s213 = sadd.s32 %s212, 1
      %s214 = scalar_select %p211, %s212, %s213
      %p217 = pneg %p211
      %p218 = scmp.eq.s32.totalorder %s34, 3
      %p219 = por %p217, %p218
      %p220 = scmp.ne.s32.totalorder %s212, %s215
      %p221 = scmp.eq.s32.totalorder %s34, 0
      %p222 = por %p220, %p221
      %p223 = scmp.ne.s32.totalorder %s212, %s215
      %p224 = scmp.eq.s32.totalorder %s39, 3
      %p225 = por %p223, %p224
      %p226 = scmp.ne.s32.totalorder %s215, %s216
      %p227 = scmp.eq.s32.totalorder %s39, 0
      %p228 = por %p226, %p227
      %p229 = scmp.ne.s32.totalorder %s215, %s216
      %p230 = scmp.eq.s32.totalorder %s40, 3
      %p231 = por %p229, %p230
      %p233 = scmp.ne.s32.totalorder %s216, %s232
      %p234 = scmp.eq.s32.totalorder %s40, 0
      %p235 = por %p233, %p234
      %s236 = ssub.s32 %s41, %s53
      %p237 = scmp.eq.s32.totalorder %s236, 0
      %s239 = sadd.s32 %s238, 1
      %s240 = scalar_select %p237, %s238, %s239
      %p243 = pneg %p237
      %p244 = scmp.eq.s32.totalorder %s34, 3
      %p245 = por %p243, %p244
      %p246 = scmp.ne.s32.totalorder %s238, %s241
      %p247 = scmp.eq.s32.totalorder %s34, 0
      %p248 = por %p246, %p247
      %p249 = scmp.ne.s32.totalorder %s238, %s241
      %p250 = scmp.eq.s32.totalorder %s39, 3
      %p251 = por %p249, %p250
      %p252 = scmp.ne.s32.totalorder %s241, %s242
      %p253 = scmp.eq.s32.totalorder %s39, 0
      %p254 = por %p252, %p253
      %p255 = scmp.ne.s32.totalorder %s241, %s242
      %p256 = scmp.eq.s32.totalorder %s40, 3
      %p257 = por %p255, %p256
      %p259 = scmp.ne.s32.totalorder %s242, %s258
      %p260 = scmp.eq.s32.totalorder %s40, 0
      %p261 = por %p259, %p260
      %s262 = ssub.s32 %s41, %s53
      %p263 = scmp.eq.s32.totalorder %s262, 0
      %s265 = sadd.s32 %s264, 1
      %s266 = scalar_select %p263, %s264, %s265
      %p269 = pneg %p263
      %p270 = scmp.eq.s32.totalorder %s34, 3
      %p271 = por %p269, %p270
      %p272 = scmp.ne.s32.totalorder %s264, %s267
      %p273 = scmp.eq.s32.totalorder %s34, 0
      %p274 = por %p272, %p273
      %p275 = scmp.ne.s32.totalorder %s264, %s267
      %p276 = scmp.eq.s32.totalorder %s39, 3
      %p277 = por %p275, %p276
      %p278 = scmp.ne.s32.totalorder %s267, %s268
      %p279 = scmp.eq.s32.totalorder %s39, 0
      %p280 = por %p278, %p279
      %p281 = scmp.ne.s32.totalorder %s267, %s268
      %p282 = scmp.eq.s32.totalorder %s40, 3
      %p283 = por %p281, %p282
      %p285 = scmp.ne.s32.totalorder %s268, %s284
      %p286 = scmp.eq.s32.totalorder %s40, 0
      %p287 = por %p285, %p286
      %s289 = sadd.s32 %s288, 1
      %p292 = scmp.eq.s32.totalorder %s34, 3
      %p293 = scmp.ne.s32.totalorder %s288, %s290
      %p294 = scmp.eq.s32.totalorder %s34, 0
      %p295 = por %p293, %p294
      %p296 = scmp.ne.s32.totalorder %s288, %s290
      %p297 = scmp.eq.s32.totalorder %s39, 3
      %p298 = por %p296, %p297
      %p299 = scmp.ne.s32.totalorder %s290, %s291
      %p300 = scmp.eq.s32.totalorder %s39, 0
      %p301 = por %p299, %p300
      %p302 = scmp.ne.s32.totalorder %s290, %s291
      %p303 = scmp.eq.s32.totalorder %s40, 3
      %p304 = por %p302, %p303
      %p306 = scmp.ne.s32.totalorder %s291, %s305
      %p307 = scmp.eq.s32.totalorder %s40, 0
      %p308 = por %p306, %p307
      %s310 = sadd.s32 %s309, 1
      %p313 = scmp.eq.s32.totalorder %s34, 3
      %p314 = scmp.ne.s32.totalorder %s309, %s311
      %p315 = scmp.eq.s32.totalorder %s34, 0
      %p316 = por %p314, %p315
      %p317 = scmp.ne.s32.totalorder %s309, %s311
      %p318 = scmp.eq.s32.totalorder %s39, 3
      %p319 = por %p317, %p318
      %p320 = scmp.ne.s32.totalorder %s311, %s312
      %p321 = scmp.eq.s32.totalorder %s39, 0
      %p322 = por %p320, %p321
      %p323 = scmp.ne.s32.totalorder %s311, %s312
      %p324 = scmp.eq.s32.totalorder %s40, 3
      %p325 = por %p323, %p324
      %p327 = scmp.ne.s32.totalorder %s312, %s326
      %p328 = scmp.eq.s32.totalorder %s40, 0
      %p329 = por %p327, %p328
      %s330 = ssub.s32 %s41, %s53
      %s331 = ssub.s32 %s42, %s49
      %s332 = sor.u32 %s330, %s331
      %p333 = scmp.eq.s32.totalorder %s332, 0
      %s335 = sadd.s32 %s334, 1
      %s336 = scalar_select %p333, %s334, %s335
      %p339 = pneg %p333
      %p340 = scmp.eq.s32.totalorder %s34, 3
      %p341 = por %p339, %p340
      %p342 = scmp.ne.s32.totalorder %s334, %s337
      %p343 = scmp.eq.s32.totalorder %s34, 0
      %p344 = por %p342, %p343
      %p345 = scmp.ne.s32.totalorder %s334, %s337
      %p346 = scmp.eq.s32.totalorder %s39, 3
      %p347 = por %p345, %p346
      %p348 = scmp.ne.s32.totalorder %s337, %s338
      %p349 = scmp.eq.s32.totalorder %s39, 0
      %p350 = por %p348, %p349
      %p351 = scmp.ne.s32.totalorder %s337, %s338
      %p352 = scmp.eq.s32.totalorder %s40, 3
      %p353 = por %p351, %p352
      %p355 = scmp.ne.s32.totalorder %s338, %s354
      %p356 = scmp.eq.s32.totalorder %s40, 0
      %p357 = por %p355, %p356
      %s358 = ssub.s32 %s41, %s53
      %s359 = ssub.s32 %s42, %s49
      %s360 = sor.u32 %s358, %s359
      %p361 = scmp.eq.s32.totalorder %s360, 0
      %s363 = sadd.s32 %s362, 1
      %s364 = scalar_select %p361, %s362, %s363
      %p367 = pneg %p361
      %p368 = scmp.eq.s32.totalorder %s34, 3
      %p369 = por %p367, %p368
      %p370 = scmp.ne.s32.totalorder %s362, %s365
      %p371 = scmp.eq.s32.totalorder %s34, 0
      %p372 = por %p370, %p371
      %p373 = scmp.ne.s32.totalorder %s362, %s365
      %p374 = scmp.eq.s32.totalorder %s39, 3
      %p375 = por %p373, %p374
      %p376 = scmp.ne.s32.totalorder %s365, %s366
      %p377 = scmp.eq.s32.totalorder %s39, 0
      %p378 = por %p376, %p377
      %p379 = scmp.ne.s32.totalorder %s365, %s366
      %p380 = scmp.eq.s32.totalorder %s40, 3
      %p381 = por %p379, %p380
      %p383 = scmp.ne.s32.totalorder %s366, %s382
      %p384 = scmp.eq.s32.totalorder %s40, 0
      %p385 = por %p383, %p384
      %s386 = ssub.s32 %s41, %s53
      %s387 = ssub.s32 %s42, %s49
      %s388 = sor.u32 %s386, %s387
      %p389 = scmp.eq.s32.totalorder %s388, 0
      %s391 = sadd.s32 %s390, 1
      %s392 = scalar_select %p389, %s390, %s391
      %p395 = pneg %p389
      %p396 = scmp.eq.s32.totalorder %s34, 3
      %p397 = por %p395, %p396
      %p398 = scmp.ne.s32.totalorder %s390, %s393
      %p399 = scmp.eq.s32.totalorder %s34, 0
      %p400 = por %p398, %p399
      %p401 = scmp.ne.s32.totalorder %s390, %s393
      %p402 = scmp.eq.s32.totalorder %s39, 3
      %p403 = por %p401, %p402
      %p404 = scmp.ne.s32.totalorder %s393, %s394
      %p405 = scmp.eq.s32.totalorder %s39, 0
      %p406 = por %p404, %p405
      %p407 = scmp.ne.s32.totalorder %s393, %s394
      %p408 = scmp.eq.s32.totalorder %s40, 3
      %p409 = por %p407, %p408
      %p411 = scmp.ne.s32.totalorder %s394, %s410
      %p412 = scmp.eq.s32.totalorder %s40, 0
      %p413 = por %p411, %p412
      %s414 = ssub.s32 %s41, %s53
      %s415 = ssub.s32 %s42, %s49
      %s416 = sor.u32 %s414, %s415
      %p417 = scmp.eq.s32.totalorder %s416, 0
      %s419 = sadd.s32 %s418, 1
      %s420 = scalar_select %p417, %s418, %s419
      %p423 = pneg %p417
      %p424 = scmp.eq.s32.totalorder %s34, 3
      %p425 = por %p423, %p424
      %p426 = scmp.ne.s32.totalorder %s418, %s421
      %p427 = scmp.eq.s32.totalorder %s34, 0
      %p428 = por %p426, %p427
      %p429 = scmp.ne.s32.totalorder %s418, %s421
      %p430 = scmp.eq.s32.totalorder %s39, 3
      %p431 = por %p429, %p430
      %p432 = scmp.ne.s32.totalorder %s421, %s422
      %p433 = scmp.eq.s32.totalorder %s39, 0
      %p434 = por %p432, %p433
      %p435 = scmp.ne.s32.totalorder %s421, %s422
      %p436 = scmp.eq.s32.totalorder %s40, 3
      %p437 = por %p435, %p436
      %p439 = scmp.ne.s32.totalorder %s422, %s438
      %p440 = scmp.eq.s32.totalorder %s40, 0
      %p441 = por %p439, %p440
      %s442 = ssub.s32 %s41, %s53
      %s443 = ssub.s32 %s42, %s49
      %s444 = sor.u32 %s442, %s443
      %p445 = scmp.eq.s32.totalorder %s444, 0
      %s447 = sadd.s32 %s446, 1
      %s448 = scalar_select %p445, %s446, %s447
      %p451 = pneg %p445
      %p452 = scmp.eq.s32.totalorder %s34, 3
      %p453 = por %p451, %p452
      %p454 = scmp.ne.s32.totalorder %s446, %s449
      %p455 = scmp.eq.s32.totalorder %s34, 0
      %p456 = por %p454, %p455
      %p457 = scmp.ne.s32.totalorder %s446, %s449
      %p458 = scmp.eq.s32.totalorder %s39, 3
      %p459 = por %p457, %p458
      %p460 = scmp.ne.s32.totalorder %s449, %s450
      %p461 = scmp.eq.s32.totalorder %s39, 0
      %p462 = por %p460, %p461
      %p463 = scmp.ne.s32.totalorder %s449, %s450
      %p464 = scmp.eq.s32.totalorder %s40, 3
      %p465 = por %p463, %p464
      %p467 = scmp.ne.s32.totalorder %s450, %s466
      %p468 = scmp.eq.s32.totalorder %s40, 0
      %p469 = por %p467, %p468
      %p470 = scmp.le.s32.totalorder 1, %s34
      %p471 = scmp.lt.s32.totalorder %s34, 5
      %p472 = pnand %p470, %p471
      %p473 = pneg %p472
      // Predicated region
      $region9: #{dummy_model_forward.1} parent=5 // pred_check
        _
      $region10: #{dummy_model_forward.1} parent=5 // pred_check_branch
        %475 = sbr.rel (%p472) target = $region12
      $region11: #{dummy_model_forward.1} parent=5 // pred_region
        %s476 = ssub.s32 %s34, 1
        // Predicated region
        $region13: #{dummy_model_forward.1} parent=11 // pred_check
          %p477 = pneg %p301
        $region14: #{dummy_model_forward.1} parent=11 // pred_check_branch
          %479 = sbr.rel (%p477) target = $region16
        $region15: #{dummy_model_forward.1} parent=11 // pred_region
          _
        $region16: #{dummy_model_forward.1} parent=11 // pred_fallthru
          _
        // Predicated region
        $region17: #{dummy_model_forward.1} parent=11 // pred_check
          %p480 = pneg %p322
        $region18: #{dummy_model_forward.1} parent=11 // pred_check_branch
          %482 = sbr.rel (%p480) target = $region20
        $region19: #{dummy_model_forward.1} parent=11 // pred_region
          _
        $region20: #{dummy_model_forward.1} parent=11 // pred_fallthru
          _
      $region12: #{dummy_model_forward.1} parent=5 // pred_fallthru
        _
      %p483 = scmp.lt.s32.totalorder %s34, 4
      // Predicated region
      $region21: #{dummy_model_forward.1} parent=5 // pred_check
        %p484 = pneg %p483
      $region22: #{dummy_model_forward.1} parent=5 // pred_check_branch
        %486 = sbr.rel (%p484) target = $region24
      $region23: #{dummy_model_forward.1} parent=5 // pred_region
        // Predicated region
        $region25: #{dummy_model_forward.1} parent=23 // pred_check
          %p487 = pneg %p66
        $region26: #{dummy_model_forward.1} parent=23 // pred_check_branch
          %489 = sbr.rel (%p487) target = $region28
        $region27: #{dummy_model_forward.1} parent=23 // pred_region
          #allocation19 [shape = 'u32[6]{0}', space=smem, size = 0x18, scoped, tag = 'DMA stride descriptor']
          %s490 = sand.u32 %s56, 1
          %s491 = scalar_lea.sflag [#allocation9], %s490
          %s492 = sand.u32 %s56, 1
          %s493 = smul.addr %s492, 256
          %s494 = scalar_lea.vmem [#allocation8], %s493
          %s495 = smul.u32 8, %s41
          %s497 = ssub.s32 4096, 4096
          %498 = vsyncadd %s491, %s497
          %s499 = smul.addr %s495, 2
          %s500 = smul.addr %s499, 128
          %s501 = scalar_lea.hbm %s0, %s500
          %s503 = sshll.u32 1, 14
          %s504 = sxor.u32 4294967295, %s503
          %s506 = sld [smem:[#allocation0]]
          %s507 = sadd.s32 2, %s506
          %s509 = sshll.u32 7, 26
          %s510 = sxor.u32 4294967295, %s509
          %s511 = sand.u32 0, %s510
          %s512 = sshll.u32 %s507, 26
          %s513 = sor.u32 %s511, %s512
          %s514 = sshll.u32 %s494, 4
          %s515 = int_to_ptr.vmem [resolvable:$true] %s514
          %521 = sst [smem:[#allocation19]] 8192
          %s522 = scalar_lea.smem [#allocation19], 1
          %523 = sst [smem:[%s522]] 2048
          %s524 = scalar_lea.smem [#allocation19], 2
          %525 = sst [smem:[%s524]] 8
          %s526 = scalar_lea.smem [#allocation19], 3
          %527 = sst [smem:[%s526]] 256
          %s528 = scalar_lea.smem [#allocation19], 4
          %529 = sst [smem:[%s528]] 256
          %s530 = scalar_lea.smem [#allocation19], 5
          %531 = sst [smem:[%s530]] 16
          %533 = dma.general %s501, 4096, %s515, %s491, 131072, [#allocation19], %s513, 0
        $region28: #{dummy_model_forward.1} parent=23 // pred_fallthru
          _
        // Predicated region
        $region29: #{dummy_model_forward.1} parent=23 // pred_check
          %p534 = pneg %p92
        $region30: #{dummy_model_forward.1} parent=23 // pred_check_branch
          %536 = sbr.rel (%p534) target = $region32
        $region31: #{dummy_model_forward.1} parent=23 // pred_region
          %s537 = smul.u32 8, %s41
          %p538 = scmp.lt.s32.totalorder %s537, 31
          %s539 = scalar_select %p538, %s537, 31
          %s540 = scalar_lea.vmem %s1, %s539
          %s541 = smul.u32 8, %s41
        $region32: #{dummy_model_forward.1} parent=23 // pred_fallthru
          _
        // Predicated region
        $region33: #{dummy_model_forward.1} parent=23 // pred_check
          %p542 = pneg %p118
        $region34: #{dummy_model_forward.1} parent=23 // pred_check_branch
          %544 = sbr.rel (%p542) target = $region36
        $region35: #{dummy_model_forward.1} parent=23 // pred_region
          %s545 = smul.u32 8, %s41
          %p546 = scmp.lt.s32.totalorder %s545, 31
          %s547 = scalar_select %p546, %s545, 31
          %s548 = scalar_lea.vmem %s2, %s547
          %s549 = smul.u32 8, %s41
        $region36: #{dummy_model_forward.1} parent=23 // pred_fallthru
          _
        // Predicated region
        $region37: #{dummy_model_forward.1} parent=23 // pred_check
          %p550 = pneg %p144
        $region38: #{dummy_model_forward.1} parent=23 // pred_check_branch
          %552 = sbr.rel (%p550) target = $region40
        $region39: #{dummy_model_forward.1} parent=23 // pred_region
          %s553 = smul.u32 8, %s41
          %p554 = scmp.lt.s32.totalorder %s553, 31
          %s555 = scalar_select %p554, %s553, 31
          %s556 = scalar_lea.vmem %s3, %s555
          %s557 = smul.u32 8, %s41
        $region40: #{dummy_model_forward.1} parent=23 // pred_fallthru
          _
        // Predicated region
        $region41: #{dummy_model_forward.1} parent=23 // pred_check
          %p558 = pneg %p170
        $region42: #{dummy_model_forward.1} parent=23 // pred_check_branch
          %560 = sbr.rel (%p558) target = $region44
        $region43: #{dummy_model_forward.1} parent=23 // pred_region
          %s561 = smul.u32 8, %s41
          %p562 = scmp.lt.s32.totalorder %s561, 31
          %s563 = scalar_select %p562, %s561, 31
          %s564 = scalar_lea.vmem %s4, %s563
          %s565 = smul.u32 8, %s41
        $region44: #{dummy_model_forward.1} parent=23 // pred_fallthru
          _
        // Predicated region
        $region45: #{dummy_model_forward.1} parent=23 // pred_check
          %p566 = pneg %p196
        $region46: #{dummy_model_forward.1} parent=23 // pred_check_branch
          %568 = sbr.rel (%p566) target = $region48
        $region47: #{dummy_model_forward.1} parent=23 // pred_region
          %s569 = smul.u32 8, %s41
          %p570 = scmp.lt.s32.totalorder %s569, 31
          %s571 = scalar_select %p570, %s569, 31
          %s572 = scalar_lea.vmem %s5, %s571
          %s573 = smul.u32 8, %s41
        $region48: #{dummy_model_forward.1} parent=23 // pred_fallthru
          _
        // Predicated region
        $region49: #{dummy_model_forward.1} parent=23 // pred_check
          %p574 = pneg %p222
        $region50: #{dummy_model_forward.1} parent=23 // pred_check_branch
          %576 = sbr.rel (%p574) target = $region52
        $region51: #{dummy_model_forward.1} parent=23 // pred_region
          %s577 = smul.u32 8, %s41
          %p578 = scmp.lt.s32.totalorder %s577, 31
          %s579 = scalar_select %p578, %s577, 31
          %s580 = scalar_lea.vmem %s6, %s579
          %s581 = smul.u32 8, %s41
        $region52: #{dummy_model_forward.1} parent=23 // pred_fallthru
          _
        // Predicated region
        $region53: #{dummy_model_forward.1} parent=23 // pred_check
          %p582 = pneg %p248
        $region54: #{dummy_model_forward.1} parent=23 // pred_check_branch
          %584 = sbr.rel (%p582) target = $region56
        $region55: #{dummy_model_forward.1} parent=23 // pred_region
          %s585 = smul.u32 8, %s41
          %p586 = scmp.lt.s32.totalorder %s585, 31
          %s587 = scalar_select %p586, %s585, 31
          %s588 = scalar_lea.vmem %s7, %s587
          %s589 = smul.u32 8, %s41
        $region56: #{dummy_model_forward.1} parent=23 // pred_fallthru
          _
        // Predicated region
        $region57: #{dummy_model_forward.1} parent=23 // pred_check
          %p590 = pneg %p274
        $region58: #{dummy_model_forward.1} parent=23 // pred_check_branch
          %592 = sbr.rel (%p590) target = $region60
        $region59: #{dummy_model_forward.1} parent=23 // pred_region
          %s593 = smul.u32 8, %s41
          %p594 = scmp.lt.s32.totalorder %s593, 31
          %s595 = scalar_select %p594, %s593, 31
          %s596 = scalar_lea.vmem %s8, %s595
          %s597 = smul.u32 8, %s41
        $region60: #{dummy_model_forward.1} parent=23 // pred_fallthru
          _
      $region24: #{dummy_model_forward.1} parent=5 // pred_fallthru
        _
      %p598 = scmp.le.s32.totalorder 1, %s34
      %p599 = scmp.lt.s32.totalorder %s34, 5
      %p600 = pnand %p598, %p599
      %p601 = pneg %p600
      // Predicated region
      $region61: #{dummy_model_forward.1} parent=5 // pred_check
        _
      $region62: #{dummy_model_forward.1} parent=5 // pred_check_branch
        %603 = sbr.rel (%p600) target = $region64
      $region63: #{dummy_model_forward.1} parent=5 // pred_region
        %s604 = ssub.s32 %s34, 1
        %s605 = sand.u32 %s59, 1
        %s606 = scalar_lea.sflag [#allocation9], %s605
        %s607 = sand.u32 %s59, 1
        %s608 = smul.addr %s607, 256
        %s609 = scalar_lea.vmem [#allocation8], %s608
        // Predicated region
        $region65: #{dummy_model_forward.1} parent=63 // pred_check
          %p610 = pneg %p72
        $region66: #{dummy_model_forward.1} parent=63 // pred_check_branch
          %612 = sbr.rel (%p610) target = $region68
        $region67: #{dummy_model_forward.1} parent=63 // pred_region
          %613 = dma.done %s606, 4096
        $region68: #{dummy_model_forward.1} parent=63 // pred_fallthru
          _
        %s614 = sand.u32 %s59, 1
        %s615 = scalar_lea.sflag [#allocation9], %s614
        %s616 = sand.u32 %s59, 1
        %s617 = smul.addr %s616, 256
        %s618 = scalar_lea.vmem [#allocation8], %s617
        %p619 = pneg %p72
        %p620 = pneg %p69
        %s621 = smul.u32 8, %s43
        %p622 = scmp.lt.s32.totalorder %s621, 31
        %s623 = scalar_select %p622, %s621, 31
        %s624 = scalar_lea.vmem %s1, %s623
        %p625 = pneg %p98
        %p626 = pneg %p95
        %s627 = smul.u32 8, %s43
        %p628 = scmp.lt.s32.totalorder %s627, 31
        %s629 = scalar_select %p628, %s627, 31
        %s630 = scalar_lea.vmem %s2, %s629
        %p631 = pneg %p124
        %p632 = pneg %p121
        %s633 = smul.u32 8, %s43
        %p634 = scmp.lt.s32.totalorder %s633, 31
        %s635 = scalar_select %p634, %s633, 31
        %s636 = scalar_lea.vmem %s3, %s635
        %p637 = pneg %p150
        %p638 = pneg %p147
        %s639 = smul.u32 8, %s43
        %p640 = scmp.lt.s32.totalorder %s639, 31
        %s641 = scalar_select %p640, %s639, 31
        %s642 = scalar_lea.vmem %s4, %s641
        %p643 = pneg %p176
        %p644 = pneg %p173
        %s645 = smul.u32 8, %s43
        %p646 = scmp.lt.s32.totalorder %s645, 31
        %s647 = scalar_select %p646, %s645, 31
        %s648 = scalar_lea.vmem %s5, %s647
        %p649 = pneg %p202
        %p650 = pneg %p199
        %s651 = smul.u32 8, %s43
        %p652 = scmp.lt.s32.totalorder %s651, 31
        %s653 = scalar_select %p652, %s651, 31
        %s654 = scalar_lea.vmem %s6, %s653
        %p655 = pneg %p228
        %p656 = pneg %p225
        %s657 = smul.u32 8, %s43
        %p658 = scmp.lt.s32.totalorder %s657, 31
        %s659 = scalar_select %p658, %s657, 31
        %s660 = scalar_lea.vmem %s7, %s659
        %p661 = pneg %p254
        %p662 = pneg %p251
        %s663 = smul.u32 8, %s43
        %p664 = scmp.lt.s32.totalorder %s663, 31
        %s665 = scalar_select %p664, %s663, 31
        %s666 = scalar_lea.vmem %s8, %s665
        %p667 = pneg %p280
        %p668 = pneg %p277
        %p669 = pneg %p301
        %p670 = pneg %p298
        %p671 = pneg %p322
        %p672 = pneg %p319
        %p673 = pneg %p350
        %p674 = pneg %p347
        %s675 = sand.u32 %s337, 1
        %s676 = scalar_lea.sflag [#allocation10], %s675
        %s677 = sand.u32 %s337, 1
        %s678 = smul.addr %s677, 256
        %s679 = scalar_lea.vmem [#allocation11], %s678
        %p680 = pneg %p378
        %p681 = pneg %p375
        %s682 = sand.u32 %s39, 1
        %s683 = scalar_lea.sflag [#allocation13], %s682
        %s684 = sand.u32 %s365, 1
        %s685 = smul.addr %s684, 256
        %s686 = scalar_lea.vmem [#allocation12], %s685
        %p687 = pneg %p406
        %p688 = pneg %p403
        %s689 = sand.u32 %s39, 1
        %s690 = scalar_lea.sflag [#allocation13], %s689
        %s691 = sand.u32 %s393, 1
        %s692 = smul.addr %s691, 256
        %s693 = scalar_lea.vmem [#allocation14], %s692
        %p694 = pneg %p434
        %p695 = pneg %p431
        %s696 = sand.u32 %s39, 1
        %s697 = scalar_lea.sflag [#allocation16], %s696
        %s698 = sand.u32 %s421, 1
        %s699 = smul.addr %s698, 256
        %s700 = scalar_lea.vmem [#allocation15], %s699
        %p701 = pneg %p462
        %p702 = pneg %p459
        %s703 = sand.u32 %s39, 1
        %s704 = scalar_lea.sflag [#allocation16], %s703
        %s705 = sand.u32 %s449, 1
        %s706 = smul.addr %s705, 256
        %s707 = scalar_lea.vmem [#allocation17], %s706
        %s708 = smul.u32 8, %s43
        %s709 = smul.u32 8, %s43
        %p710 = scmp.lt.s32.totalorder %s709, 31
        %s711 = scalar_select %p710, %s709, 31
        %s712 = scalar_lea.vmem %s1, %s711
        %s713 = smul.u32 8, %s43
        %s714 = smul.u32 8, %s43
        %p715 = scmp.lt.s32.totalorder %s714, 31
        %s716 = scalar_select %p715, %s714, 31
        %s717 = scalar_lea.vmem %s2, %s716
        %s718 = smul.u32 8, %s43
        %s719 = smul.u32 8, %s43
        %p720 = scmp.lt.s32.totalorder %s719, 31
        %s721 = scalar_select %p720, %s719, 31
        %s722 = scalar_lea.vmem %s3, %s721
        %s723 = smul.u32 8, %s43
        %s724 = smul.u32 8, %s43
        %p725 = scmp.lt.s32.totalorder %s724, 31
        %s726 = scalar_select %p725, %s724, 31
        %s727 = scalar_lea.vmem %s4, %s726
        %s728 = smul.u32 8, %s43
        %s729 = smul.u32 8, %s43
        %p730 = scmp.lt.s32.totalorder %s729, 31
        %s731 = scalar_select %p730, %s729, 31
        %s732 = scalar_lea.vmem %s5, %s731
        %s733 = smul.u32 8, %s43
        %s734 = smul.u32 8, %s43
        %p735 = scmp.lt.s32.totalorder %s734, 31
        %s736 = scalar_select %p735, %s734, 31
        %s737 = scalar_lea.vmem %s6, %s736
        %s738 = smul.u32 8, %s43
        %s739 = smul.u32 8, %s43
        %p740 = scmp.lt.s32.totalorder %s739, 31
        %s741 = scalar_select %p740, %s739, 31
        %s742 = scalar_lea.vmem %s7, %s741
        %s743 = smul.u32 8, %s43
        %s744 = smul.u32 8, %s43
        %p745 = scmp.lt.s32.totalorder %s744, 31
        %s746 = scalar_select %p745, %s744, 31
        %s747 = scalar_lea.vmem %s8, %s746
        %s748 = smul.u32 8, %s43
        %s749 = smul.u32 8, %s43
        %s750 = smul.u32 8, %s43
        %s751 = smul.u32 8, %s43
        %s752 = smul.u32 8, %s43
        %s753 = smul.u32 8, %s43
        %p754 = scmp.eq.s32.totalorder %s44, 0
        // Predicated region
        $region69: #{dummy_model_forward.1} parent=63 // pred_check
          %p755 = pneg %p754
        $region70: #{dummy_model_forward.1} parent=63 // pred_check_branch
          %757 = sbr.rel (%p755) target = $region72
        $region71: #{dummy_model_forward.1} parent=63 // pred_region
          %s758 = smul.u32 0, 2
          %s759 = smul.addr %s758, 8
          %s760 = scalar_lea.vmem %s609, %s759 [#allocation8]
          %v761 = vld [vmem:[%s760] sm:$0xff]
          %v762 = vld [vmem:[%s760 + $0x8] sm:$0xff]
          %v763 = vld [vmem:[%s760 + $0x10] sm:$0xff]
          %v764 = vld [vmem:[%s760 + $0x18] sm:$0xff]
          %v765 = vld [vmem:[%s760 + $0x20] sm:$0xff]
          %v766 = vld [vmem:[%s760 + $0x28] sm:$0xff]
          %v767 = vld [vmem:[%s760 + $0x30] sm:$0xff]
          %v768 = vld [vmem:[%s760 + $0x38] sm:$0xff]
          %v769 = vld [vmem:[%s760 + $0x40] sm:$0xff]
          %v770 = vld [vmem:[%s760 + $0x48] sm:$0xff]
          %v771 = vld [vmem:[%s760 + $0x50] sm:$0xff]
          %v772 = vld [vmem:[%s760 + $0x58] sm:$0xff]
          %v773 = vld [vmem:[%s760 + $0x60] sm:$0xff]
          %v774 = vld [vmem:[%s760 + $0x68] sm:$0xff]
          %v775 = vld [vmem:[%s760 + $0x70] sm:$0xff]
          %v776 = vld [vmem:[%s760 + $0x78] sm:$0xff]
          %v777 = vld [vmem:[%s760 + $0x80] sm:$0xff]
          %v778 = vld [vmem:[%s760 + $0x88] sm:$0xff]
          %v779 = vld [vmem:[%s760 + $0x90] sm:$0xff]
          %v780 = vld [vmem:[%s760 + $0x98] sm:$0xff]
          %v781 = vld [vmem:[%s760 + $0xa0] sm:$0xff]
          %v782 = vld [vmem:[%s760 + $0xa8] sm:$0xff]
          %v783 = vld [vmem:[%s760 + $0xb0] sm:$0xff]
          %v784 = vld [vmem:[%s760 + $0xb8] sm:$0xff]
          %v785 = vld [vmem:[%s760 + $0xc0] sm:$0xff]
          %v786 = vld [vmem:[%s760 + $0xc8] sm:$0xff]
          %v787 = vld [vmem:[%s760 + $0xd0] sm:$0xff]
          %v788 = vld [vmem:[%s760 + $0xd8] sm:$0xff]
          %v789 = vld [vmem:[%s760 + $0xe0] sm:$0xff]
          %v790 = vld [vmem:[%s760 + $0xe8] sm:$0xff]
          %v791 = vld [vmem:[%s760 + $0xf0] sm:$0xff]
          %v792 = vld [vmem:[%s760 + $0xf8] sm:$0xff]
          %v793 = vadd.f32 %v761, %v762
          %794 = vadd.xlane.f32.xlu0 %v793
          %v795 = vpop.xlane.xlu0 %794
          %v796 = vadd.f32 %v763, %v764
          %797 = vadd.xlane.f32.xlu0 %v796
          %v798 = vpop.xlane.xlu0 %797
          %v799 = vadd.f32 %v765, %v766
          %800 = vadd.xlane.f32.xlu0 %v799
          %v801 = vpop.xlane.xlu0 %800
          %v802 = vadd.f32 %v767, %v768
          %803 = vadd.xlane.f32.xlu0 %v802
          %v804 = vpop.xlane.xlu0 %803
          %v805 = vadd.f32 %v769, %v770
          %806 = vadd.xlane.f32.xlu0 %v805
          %v807 = vpop.xlane.xlu0 %806
          %v808 = vadd.f32 %v771, %v772
          %809 = vadd.xlane.f32.xlu0 %v808
          %v810 = vpop.xlane.xlu0 %809
          %v811 = vadd.f32 %v773, %v774
          %812 = vadd.xlane.f32.xlu0 %v811
          %v813 = vpop.xlane.xlu0 %812
          %v814 = vadd.f32 %v775, %v776
          %815 = vadd.xlane.f32.xlu0 %v814
          %v816 = vpop.xlane.xlu0 %815
          %v817 = vadd.f32 %v777, %v778
          %818 = vadd.xlane.f32.xlu0 %v817
          %v819 = vpop.xlane.xlu0 %818
          %v820 = vadd.f32 %v779, %v780
          %821 = vadd.xlane.f32.xlu0 %v820
          %v822 = vpop.xlane.xlu0 %821
          %v823 = vadd.f32 %v781, %v782
          %824 = vadd.xlane.f32.xlu0 %v823
          %v825 = vpop.xlane.xlu0 %824
          %v826 = vadd.f32 %v783, %v784
          %827 = vadd.xlane.f32.xlu0 %v826
          %v828 = vpop.xlane.xlu0 %827
          %v829 = vadd.f32 %v785, %v786
          %830 = vadd.xlane.f32.xlu0 %v829
          %v831 = vpop.xlane.xlu0 %830
          %v832 = vadd.f32 %v787, %v788
          %833 = vadd.xlane.f32.xlu0 %v832
          %v834 = vpop.xlane.xlu0 %833
          %v835 = vadd.f32 %v789, %v790
          %836 = vadd.xlane.f32.xlu0 %v835
          %v837 = vpop.xlane.xlu0 %836
          %v838 = vadd.f32 %v791, %v792
          %839 = vadd.xlane.f32.xlu0 %v838
          %v840 = vpop.xlane.xlu0 %839
          %v841 = vmul.f32 %v761, %v761
          %v842 = vmul.f32 %v762, %v762
          %v843 = vmul.f32 %v763, %v763
          %v844 = vmul.f32 %v764, %v764
          %v845 = vmul.f32 %v765, %v765
          %v846 = vmul.f32 %v766, %v766
          %v847 = vmul.f32 %v767, %v767
          %v848 = vmul.f32 %v768, %v768
          %v849 = vmul.f32 %v769, %v769
          %v850 = vmul.f32 %v770, %v770
          %v851 = vmul.f32 %v771, %v771
          %v852 = vmul.f32 %v772, %v772
          %v853 = vmul.f32 %v773, %v773
          %v854 = vmul.f32 %v774, %v774
          %v855 = vmul.f32 %v775, %v775
          %v856 = vmul.f32 %v776, %v776
          %v857 = vmul.f32 %v777, %v777
          %v858 = vmul.f32 %v778, %v778
          %v859 = vmul.f32 %v779, %v779
          %v860 = vmul.f32 %v780, %v780
          %v861 = vmul.f32 %v781, %v781
          %v862 = vmul.f32 %v782, %v782
          %v863 = vmul.f32 %v783, %v783
          %v864 = vmul.f32 %v784, %v784
          %v865 = vmul.f32 %v785, %v785
          %v866 = vmul.f32 %v786, %v786
          %v867 = vmul.f32 %v787, %v787
          %v868 = vmul.f32 %v788, %v788
          %v869 = vmul.f32 %v789, %v789
          %v870 = vmul.f32 %v790, %v790
          %v871 = vmul.f32 %v791, %v791
          %v872 = vmul.f32 %v792, %v792
          %v873 = vadd.f32 %v841, %v842
          %874 = vadd.xlane.f32.xlu0 %v873
          %v875 = vpop.xlane.xlu0 %874
          %v876 = vadd.f32 %v843, %v844
          %877 = vadd.xlane.f32.xlu0 %v876
          %v878 = vpop.xlane.xlu0 %877
          %v879 = vadd.f32 %v845, %v846
          %880 = vadd.xlane.f32.xlu0 %v879
          %v881 = vpop.xlane.xlu0 %880
          %v882 = vadd.f32 %v847, %v848
          %883 = vadd.xlane.f32.xlu0 %v882
          %v884 = vpop.xlane.xlu0 %883
          %v885 = vadd.f32 %v849, %v850
          %886 = vadd.xlane.f32.xlu0 %v885
          %v887 = vpop.xlane.xlu0 %886
          %v888 = vadd.f32 %v851, %v852
          %889 = vadd.xlane.f32.xlu0 %v888
          %v890 = vpop.xlane.xlu0 %889
          %v891 = vadd.f32 %v853, %v854
          %892 = vadd.xlane.f32.xlu0 %v891
          %v893 = vpop.xlane.xlu0 %892
          %v894 = vadd.f32 %v855, %v856
          %895 = vadd.xlane.f32.xlu0 %v894
          %v896 = vpop.xlane.xlu0 %895
          %v897 = vadd.f32 %v857, %v858
          %898 = vadd.xlane.f32.xlu0 %v897
          %v899 = vpop.xlane.xlu0 %898
          %v900 = vadd.f32 %v859, %v860
          %901 = vadd.xlane.f32.xlu0 %v900
          %v902 = vpop.xlane.xlu0 %901
          %v903 = vadd.f32 %v861, %v862
          %904 = vadd.xlane.f32.xlu0 %v903
          %v905 = vpop.xlane.xlu0 %904
          %v906 = vadd.f32 %v863, %v864
          %907 = vadd.xlane.f32.xlu0 %v906
          %v908 = vpop.xlane.xlu0 %907
          %v909 = vadd.f32 %v865, %v866
          %910 = vadd.xlane.f32.xlu0 %v909
          %v911 = vpop.xlane.xlu0 %910
          %v912 = vadd.f32 %v867, %v868
          %913 = vadd.xlane.f32.xlu0 %v912
          %v914 = vpop.xlane.xlu0 %913
          %v915 = vadd.f32 %v869, %v870
          %916 = vadd.xlane.f32.xlu0 %v915
          %v917 = vpop.xlane.xlu0 %916
          %v918 = vadd.f32 %v871, %v872
          %919 = vadd.xlane.f32.xlu0 %v918
          %v920 = vpop.xlane.xlu0 %919
          %v921 = vrot.slane %v795, 4
          %v922 = vadd.f32 %v795, %v921
          %v923 = vrot.slane %v922, 2
          %v924 = vadd.f32 %v922, %v923
          %v925 = vrot.slane %v924, 1
          %v926 = vadd.f32 %v924, %v925
          %v927 = vrot.slane %v798, 4
          %v928 = vadd.f32 %v798, %v927
          %v929 = vrot.slane %v928, 2
          %v930 = vadd.f32 %v928, %v929
          %v931 = vrot.slane %v930, 1
          %v932 = vadd.f32 %v930, %v931
          %v933 = vrot.slane %v801, 4
          %v934 = vadd.f32 %v801, %v933
          %v935 = vrot.slane %v934, 2
          %v936 = vadd.f32 %v934, %v935
          %v937 = vrot.slane %v936, 1
          %v938 = vadd.f32 %v936, %v937
          %v939 = vrot.slane %v804, 4
          %v940 = vadd.f32 %v804, %v939
          %v941 = vrot.slane %v940, 2
          %v942 = vadd.f32 %v940, %v941
          %v943 = vrot.slane %v942, 1
          %v944 = vadd.f32 %v942, %v943
          %v945 = vrot.slane %v807, 4
          %v946 = vadd.f32 %v807, %v945
          %v947 = vrot.slane %v946, 2
          %v948 = vadd.f32 %v946, %v947
          %v949 = vrot.slane %v948, 1
          %v950 = vadd.f32 %v948, %v949
          %v951 = vrot.slane %v810, 4
          %v952 = vadd.f32 %v810, %v951
          %v953 = vrot.slane %v952, 2
          %v954 = vadd.f32 %v952, %v953
          %v955 = vrot.slane %v954, 1
          %v956 = vadd.f32 %v954, %v955
          %v957 = vrot.slane %v813, 4
          %v958 = vadd.f32 %v813, %v957
          %v959 = vrot.slane %v958, 2
          %v960 = vadd.f32 %v958, %v959
          %v961 = vrot.slane %v960, 1
          %v962 = vadd.f32 %v960, %v961
          %v963 = vrot.slane %v816, 4
          %v964 = vadd.f32 %v816, %v963
          %v965 = vrot.slane %v964, 2
          %v966 = vadd.f32 %v964, %v965
          %v967 = vrot.slane %v966, 1
          %v968 = vadd.f32 %v966, %v967
          %v969 = vrot.slane %v819, 4
          %v970 = vadd.f32 %v819, %v969
          %v971 = vrot.slane %v970, 2
          %v972 = vadd.f32 %v970, %v971
          %v973 = vrot.slane %v972, 1
          %v974 = vadd.f32 %v972, %v973
          %v975 = vrot.slane %v822, 4
          %v976 = vadd.f32 %v822, %v975
          %v977 = vrot.slane %v976, 2
          %v978 = vadd.f32 %v976, %v977
          %v979 = vrot.slane %v978, 1
          %v980 = vadd.f32 %v978, %v979
          %v981 = vrot.slane %v825, 4
          %v982 = vadd.f32 %v825, %v981
          %v983 = vrot.slane %v982, 2
          %v984 = vadd.f32 %v982, %v983
          %v985 = vrot.slane %v984, 1
          %v986 = vadd.f32 %v984, %v985
          %v987 = vrot.slane %v828, 4
          %v988 = vadd.f32 %v828, %v987
          %v989 = vrot.slane %v988, 2
          %v990 = vadd.f32 %v988, %v989
          %v991 = vrot.slane %v990, 1
          %v992 = vadd.f32 %v990, %v991
          %v993 = vrot.slane %v831, 4
          %v994 = vadd.f32 %v831, %v993
          %v995 = vrot.slane %v994, 2
          %v996 = vadd.f32 %v994, %v995
          %v997 = vrot.slane %v996, 1
          %v998 = vadd.f32 %v996, %v997
          %v999 = vrot.slane %v834, 4
          %v1000 = vadd.f32 %v834, %v999
          %v1001 = vrot.slane %v1000, 2
          %v1002 = vadd.f32 %v1000, %v1001
          %v1003 = vrot.slane %v1002, 1
          %v1004 = vadd.f32 %v1002, %v1003
          %v1005 = vrot.slane %v837, 4
          %v1006 = vadd.f32 %v837, %v1005
          %v1007 = vrot.slane %v1006, 2
          %v1008 = vadd.f32 %v1006, %v1007
          %v1009 = vrot.slane %v1008, 1
          %v1010 = vadd.f32 %v1008, %v1009
          %v1011 = vrot.slane %v840, 4
          %v1012 = vadd.f32 %v840, %v1011
          %v1013 = vrot.slane %v1012, 2
          %v1014 = vadd.f32 %v1012, %v1013
          %v1015 = vrot.slane %v1014, 1
          %v1016 = vadd.f32 %v1014, %v1015
          %v1017 = vadd.f32 %v926, 0.0
          %v1018 = vadd.f32 %v932, 0.0
          %v1019 = vadd.f32 %v938, 0.0
          %v1020 = vadd.f32 %v944, 0.0
          %v1021 = vadd.f32 %v950, 0.0
          %v1022 = vadd.f32 %v956, 0.0
          %v1023 = vadd.f32 %v962, 0.0
          %v1024 = vadd.f32 %v968, 0.0
          %v1025 = vadd.f32 %v974, 0.0
          %v1026 = vadd.f32 %v980, 0.0
          %v1027 = vadd.f32 %v986, 0.0
          %v1028 = vadd.f32 %v992, 0.0
          %v1029 = vadd.f32 %v998, 0.0
          %v1030 = vadd.f32 %v1004, 0.0
          %v1031 = vadd.f32 %v1010, 0.0
          %v1032 = vadd.f32 %v1016, 0.0
          %v1033 = vrot.slane %v875, 4
          %v1034 = vadd.f32 %v875, %v1033
          %v1035 = vrot.slane %v1034, 2
          %v1036 = vadd.f32 %v1034, %v1035
          %v1037 = vrot.slane %v1036, 1
          %v1038 = vadd.f32 %v1036, %v1037
          %v1039 = vrot.slane %v878, 4
          %v1040 = vadd.f32 %v878, %v1039
          %v1041 = vrot.slane %v1040, 2
          %v1042 = vadd.f32 %v1040, %v1041
          %v1043 = vrot.slane %v1042, 1
          %v1044 = vadd.f32 %v1042, %v1043
          %v1045 = vrot.slane %v881, 4
          %v1046 = vadd.f32 %v881, %v1045
          %v1047 = vrot.slane %v1046, 2
          %v1048 = vadd.f32 %v1046, %v1047
          %v1049 = vrot.slane %v1048, 1
          %v1050 = vadd.f32 %v1048, %v1049
          %v1051 = vrot.slane %v884, 4
          %v1052 = vadd.f32 %v884, %v1051
          %v1053 = vrot.slane %v1052, 2
          %v1054 = vadd.f32 %v1052, %v1053
          %v1055 = vrot.slane %v1054, 1
          %v1056 = vadd.f32 %v1054, %v1055
          %v1057 = vrot.slane %v887, 4
          %v1058 = vadd.f32 %v887, %v1057
          %v1059 = vrot.slane %v1058, 2
          %v1060 = vadd.f32 %v1058, %v1059
          %v1061 = vrot.slane %v1060, 1
          %v1062 = vadd.f32 %v1060, %v1061
          %v1063 = vrot.slane %v890, 4
          %v1064 = vadd.f32 %v890, %v1063
          %v1065 = vrot.slane %v1064, 2
          %v1066 = vadd.f32 %v1064, %v1065
          %v1067 = vrot.slane %v1066, 1
          %v1068 = vadd.f32 %v1066, %v1067
          %v1069 = vrot.slane %v893, 4
          %v1070 = vadd.f32 %v893, %v1069
          %v1071 = vrot.slane %v1070, 2
          %v1072 = vadd.f32 %v1070, %v1071
          %v1073 = vrot.slane %v1072, 1
          %v1074 = vadd.f32 %v1072, %v1073
          %v1075 = vrot.slane %v896, 4
          %v1076 = vadd.f32 %v896, %v1075
          %v1077 = vrot.slane %v1076, 2
          %v1078 = vadd.f32 %v1076, %v1077
          %v1079 = vrot.slane %v1078, 1
          %v1080 = vadd.f32 %v1078, %v1079
          %v1081 = vrot.slane %v899, 4
          %v1082 = vadd.f32 %v899, %v1081
          %v1083 = vrot.slane %v1082, 2
          %v1084 = vadd.f32 %v1082, %v1083
          %v1085 = vrot.slane %v1084, 1
          %v1086 = vadd.f32 %v1084, %v1085
          %v1087 = vrot.slane %v902, 4
          %v1088 = vadd.f32 %v902, %v1087
          %v1089 = vrot.slane %v1088, 2
          %v1090 = vadd.f32 %v1088, %v1089
          %v1091 = vrot.slane %v1090, 1
          %v1092 = vadd.f32 %v1090, %v1091
          %v1093 = vrot.slane %v905, 4
          %v1094 = vadd.f32 %v905, %v1093
          %v1095 = vrot.slane %v1094, 2
          %v1096 = vadd.f32 %v1094, %v1095
          %v1097 = vrot.slane %v1096, 1
          %v1098 = vadd.f32 %v1096, %v1097
          %v1099 = vrot.slane %v908, 4
          %v1100 = vadd.f32 %v908, %v1099
          %v1101 = vrot.slane %v1100, 2
          %v1102 = vadd.f32 %v1100, %v1101
          %v1103 = vrot.slane %v1102, 1
          %v1104 = vadd.f32 %v1102, %v1103
          %v1105 = vrot.slane %v911, 4
          %v1106 = vadd.f32 %v911, %v1105
          %v1107 = vrot.slane %v1106, 2
          %v1108 = vadd.f32 %v1106, %v1107
          %v1109 = vrot.slane %v1108, 1
          %v1110 = vadd.f32 %v1108, %v1109
          %v1111 = vrot.slane %v914, 4
          %v1112 = vadd.f32 %v914, %v1111
          %v1113 = vrot.slane %v1112, 2
          %v1114 = vadd.f32 %v1112, %v1113
          %v1115 = vrot.slane %v1114, 1
          %v1116 = vadd.f32 %v1114, %v1115
          %v1117 = vrot.slane %v917, 4
          %v1118 = vadd.f32 %v917, %v1117
          %v1119 = vrot.slane %v1118, 2
          %v1120 = vadd.f32 %v1118, %v1119
          %v1121 = vrot.slane %v1120, 1
          %v1122 = vadd.f32 %v1120, %v1121
          %v1123 = vrot.slane %v920, 4
          %v1124 = vadd.f32 %v920, %v1123
          %v1125 = vrot.slane %v1124, 2
          %v1126 = vadd.f32 %v1124, %v1125
          %v1127 = vrot.slane %v1126, 1
          %v1128 = vadd.f32 %v1126, %v1127
          %v1129 = vadd.f32 %v1038, 0.0
          %v1130 = vadd.f32 %v1044, 0.0
          %v1131 = vadd.f32 %v1050, 0.0
          %v1132 = vadd.f32 %v1056, 0.0
          %v1133 = vadd.f32 %v1062, 0.0
          %v1134 = vadd.f32 %v1068, 0.0
          %v1135 = vadd.f32 %v1074, 0.0
          %v1136 = vadd.f32 %v1080, 0.0
          %v1137 = vadd.f32 %v1086, 0.0
          %v1138 = vadd.f32 %v1092, 0.0
          %v1139 = vadd.f32 %v1098, 0.0
          %v1140 = vadd.f32 %v1104, 0.0
          %v1141 = vadd.f32 %v1110, 0.0
          %v1142 = vadd.f32 %v1116, 0.0
          %v1143 = vadd.f32 %v1122, 0.0
          %v1144 = vadd.f32 %v1128, 0.0
          %v1145 = vmul.f32 %v1017, 0.00048828125
          %v1146 = vmul.f32 %v1018, 0.00048828125
          %v1147 = vmul.f32 %v1019, 0.00048828125
          %v1148 = vmul.f32 %v1020, 0.00048828125
          %v1149 = vmul.f32 %v1021, 0.00048828125
          %v1150 = vmul.f32 %v1022, 0.00048828125
          %v1151 = vmul.f32 %v1023, 0.00048828125
          %v1152 = vmul.f32 %v1024, 0.00048828125
          %v1153 = vmul.f32 %v1025, 0.00048828125
          %v1154 = vmul.f32 %v1026, 0.00048828125
          %v1155 = vmul.f32 %v1027, 0.00048828125
          %v1156 = vmul.f32 %v1028, 0.00048828125
          %v1157 = vmul.f32 %v1029, 0.00048828125
          %v1158 = vmul.f32 %v1030, 0.00048828125
          %v1159 = vmul.f32 %v1031, 0.00048828125
          %v1160 = vmul.f32 %v1032, 0.00048828125
          %v1161 = vmul.f32 %v1129, 0.00048828125
          %v1162 = vmul.f32 %v1130, 0.00048828125
          %v1163 = vmul.f32 %v1131, 0.00048828125
          %v1164 = vmul.f32 %v1132, 0.00048828125
          %v1165 = vmul.f32 %v1133, 0.00048828125
          %v1166 = vmul.f32 %v1134, 0.00048828125
          %v1167 = vmul.f32 %v1135, 0.00048828125
          %v1168 = vmul.f32 %v1136, 0.00048828125
          %v1169 = vmul.f32 %v1137, 0.00048828125
          %v1170 = vmul.f32 %v1138, 0.00048828125
          %v1171 = vmul.f32 %v1139, 0.00048828125
          %v1172 = vmul.f32 %v1140, 0.00048828125
          %v1173 = vmul.f32 %v1141, 0.00048828125
          %v1174 = vmul.f32 %v1142, 0.00048828125
          %v1175 = vmul.f32 %v1143, 0.00048828125
          %v1176 = vmul.f32 %v1144, 0.00048828125
          %v1177 = vmul.f32 %v1145, %v1145
          %v1178 = vmul.f32 %v1146, %v1146
          %v1179 = vmul.f32 %v1147, %v1147
          %v1180 = vmul.f32 %v1148, %v1148
          %v1181 = vmul.f32 %v1149, %v1149
          %v1182 = vmul.f32 %v1150, %v1150
          %v1183 = vmul.f32 %v1151, %v1151
          %v1184 = vmul.f32 %v1152, %v1152
          %v1185 = vmul.f32 %v1153, %v1153
          %v1186 = vmul.f32 %v1154, %v1154
          %v1187 = vmul.f32 %v1155, %v1155
          %v1188 = vmul.f32 %v1156, %v1156
          %v1189 = vmul.f32 %v1157, %v1157
          %v1190 = vmul.f32 %v1158, %v1158
          %v1191 = vmul.f32 %v1159, %v1159
          %v1192 = vmul.f32 %v1160, %v1160
          %v1193 = vsub.f32 %v1161, %v1177
          %v1194 = vsub.f32 %v1162, %v1178
          %v1195 = vsub.f32 %v1163, %v1179
          %v1196 = vsub.f32 %v1164, %v1180
          %v1197 = vsub.f32 %v1165, %v1181
          %v1198 = vsub.f32 %v1166, %v1182
          %v1199 = vsub.f32 %v1167, %v1183
          %v1200 = vsub.f32 %v1168, %v1184
          %v1201 = vsub.f32 %v1169, %v1185
          %v1202 = vsub.f32 %v1170, %v1186
          %v1203 = vsub.f32 %v1171, %v1187
          %v1204 = vsub.f32 %v1172, %v1188
          %v1205 = vsub.f32 %v1173, %v1189
          %v1206 = vsub.f32 %v1174, %v1190
          %v1207 = vsub.f32 %v1175, %v1191
          %v1208 = vsub.f32 %v1176, %v1192
          %v1209 = vmax.f32 %v1193, 0.0
          %v1210 = vmax.f32 %v1194, 0.0
          %v1211 = vmax.f32 %v1195, 0.0
          %v1212 = vmax.f32 %v1196, 0.0
          %v1213 = vmax.f32 %v1197, 0.0
          %v1214 = vmax.f32 %v1198, 0.0
          %v1215 = vmax.f32 %v1199, 0.0
          %v1216 = vmax.f32 %v1200, 0.0
          %v1217 = vmax.f32 %v1201, 0.0
          %v1218 = vmax.f32 %v1202, 0.0
          %v1219 = vmax.f32 %v1203, 0.0
          %v1220 = vmax.f32 %v1204, 0.0
          %v1221 = vmax.f32 %v1205, 0.0
          %v1222 = vmax.f32 %v1206, 0.0
          %v1223 = vmax.f32 %v1207, 0.0
          %v1224 = vmax.f32 %v1208, 0.0
          %v1225 = vld [vmem:[%s732] sm:$0x1]
          %v1226 = vld [vmem:[%s732 + $0x1] sm:$0x1]
          %v1227 = vld [vmem:[%s732 + $0x2] sm:$0x1]
          %v1228 = vld [vmem:[%s732 + $0x3] sm:$0x1]
          %v1229 = vld [vmem:[%s732 + $0x4] sm:$0x1]
          %v1230 = vld [vmem:[%s732 + $0x5] sm:$0x1]
          %v1231 = vld [vmem:[%s732 + $0x6] sm:$0x1]
          %v1232 = vld [vmem:[%s732 + $0x7] sm:$0x1]
          %v1233 = vadd.f32 %v1209, 1e-05
          %v1234 = vadd.f32 %v1210, 1e-05
          %v1235 = vadd.f32 %v1211, 1e-05
          %v1236 = vadd.f32 %v1212, 1e-05
          %v1237 = vadd.f32 %v1213, 1e-05
          %v1238 = vadd.f32 %v1214, 1e-05
          %v1239 = vadd.f32 %v1215, 1e-05
          %v1240 = vadd.f32 %v1216, 1e-05
          %v1241 = vadd.f32 %v1217, 1e-05
          %v1242 = vadd.f32 %v1218, 1e-05
          %v1243 = vadd.f32 %v1219, 1e-05
          %v1244 = vadd.f32 %v1220, 1e-05
          %v1245 = vadd.f32 %v1221, 1e-05
          %v1246 = vadd.f32 %v1222, 1e-05
          %v1247 = vadd.f32 %v1223, 1e-05
          %v1248 = vadd.f32 %v1224, 1e-05
          %v1249 = vrsqrt.pop %v1233
          %v1250 = vrsqrt.pop %v1234
          %v1251 = vrsqrt.pop %v1235
          %v1252 = vrsqrt.pop %v1236
          %v1253 = vrsqrt.pop %v1237
          %v1254 = vrsqrt.pop %v1238
          %v1255 = vrsqrt.pop %v1239
          %v1256 = vrsqrt.pop %v1240
          %v1257 = vrsqrt.pop %v1241
          %v1258 = vrsqrt.pop %v1242
          %v1259 = vrsqrt.pop %v1243
          %v1260 = vrsqrt.pop %v1244
          %v1261 = vrsqrt.pop %v1245
          %v1262 = vrsqrt.pop %v1246
          %v1263 = vrsqrt.pop %v1247
          %v1264 = vrsqrt.pop %v1248
          %v1265 = vmul.f32 %v1225, %v1249
          %v1266 = vmul.f32 %v1226, %v1250
          %v1267 = vmul.f32 %v1227, %v1251
          %v1268 = vmul.f32 %v1228, %v1252
          %v1269 = vmul.f32 %v1229, %v1253
          %v1270 = vmul.f32 %v1230, %v1254
          %v1271 = vmul.f32 %v1231, %v1255
          %v1272 = vmul.f32 %v1232, %v1256
          %v1273 = vmul.f32 %v1225, %v1257
          %v1274 = vmul.f32 %v1226, %v1258
          %v1275 = vmul.f32 %v1227, %v1259
          %v1276 = vmul.f32 %v1228, %v1260
          %v1277 = vmul.f32 %v1229, %v1261
          %v1278 = vmul.f32 %v1230, %v1262
          %v1279 = vmul.f32 %v1231, %v1263
          %v1280 = vmul.f32 %v1232, %v1264
          %vm1281 = vcmask 0
          %1282 = vst.msk [vmem:[#allocation4] sm:$0x1] %vm1281, %v1265
          %1283 = vst.msk [vmem:[#allocation4 + $0x1] sm:$0x1] %vm1281, %v1266
          %1284 = vst.msk [vmem:[#allocation4 + $0x2] sm:$0x1] %vm1281, %v1267
          %1285 = vst.msk [vmem:[#allocation4 + $0x3] sm:$0x1] %vm1281, %v1268
          %1286 = vst.msk [vmem:[#allocation4 + $0x4] sm:$0x1] %vm1281, %v1269
          %1287 = vst.msk [vmem:[#allocation4 + $0x5] sm:$0x1] %vm1281, %v1270
          %1288 = vst.msk [vmem:[#allocation4 + $0x6] sm:$0x1] %vm1281, %v1271
          %1289 = vst.msk [vmem:[#allocation4 + $0x7] sm:$0x1] %vm1281, %v1272
          %1290 = vst.msk [vmem:[#allocation4 + $0x8] sm:$0x1] %vm1281, %v1273
          %1291 = vst.msk [vmem:[#allocation4 + $0x9] sm:$0x1] %vm1281, %v1274
          %1292 = vst.msk [vmem:[#allocation4 + $0xa] sm:$0x1] %vm1281, %v1275
          %1293 = vst.msk [vmem:[#allocation4 + $0xb] sm:$0x1] %vm1281, %v1276
          %1294 = vst.msk [vmem:[#allocation4 + $0xc] sm:$0x1] %vm1281, %v1277
          %1295 = vst.msk [vmem:[#allocation4 + $0xd] sm:$0x1] %vm1281, %v1278
          %1296 = vst.msk [vmem:[#allocation4 + $0xe] sm:$0x1] %vm1281, %v1279
          %1297 = vst.msk [vmem:[#allocation4 + $0xf] sm:$0x1] %vm1281, %v1280
          %v1298 = vld [vmem:[%s737] sm:$0x1]
          %v1299 = vld [vmem:[%s737 + $0x1] sm:$0x1]
          %v1300 = vld [vmem:[%s737 + $0x2] sm:$0x1]
          %v1301 = vld [vmem:[%s737 + $0x3] sm:$0x1]
          %v1302 = vld [vmem:[%s737 + $0x4] sm:$0x1]
          %v1303 = vld [vmem:[%s737 + $0x5] sm:$0x1]
          %v1304 = vld [vmem:[%s737 + $0x6] sm:$0x1]
          %v1305 = vld [vmem:[%s737 + $0x7] sm:$0x1]
          %v1306 = vmul.f32 %v1145, %v1265
          %v1307 = vmul.f32 %v1146, %v1266
          %v1308 = vmul.f32 %v1147, %v1267
          %v1309 = vmul.f32 %v1148, %v1268
          %v1310 = vmul.f32 %v1149, %v1269
          %v1311 = vmul.f32 %v1150, %v1270
          %v1312 = vmul.f32 %v1151, %v1271
          %v1313 = vmul.f32 %v1152, %v1272
          %v1314 = vmul.f32 %v1153, %v1273
          %v1315 = vmul.f32 %v1154, %v1274
          %v1316 = vmul.f32 %v1155, %v1275
          %v1317 = vmul.f32 %v1156, %v1276
          %v1318 = vmul.f32 %v1157, %v1277
          %v1319 = vmul.f32 %v1158, %v1278
          %v1320 = vmul.f32 %v1159, %v1279
          %v1321 = vmul.f32 %v1160, %v1280
          %v1322 = vsub.f32 %v1298, %v1306
          %v1323 = vsub.f32 %v1299, %v1307
          %v1324 = vsub.f32 %v1300, %v1308
          %v1325 = vsub.f32 %v1301, %v1309
          %v1326 = vsub.f32 %v1302, %v1310
          %v1327 = vsub.f32 %v1303, %v1311
          %v1328 = vsub.f32 %v1304, %v1312
          %v1329 = vsub.f32 %v1305, %v1313
          %v1330 = vsub.f32 %v1298, %v1314
          %v1331 = vsub.f32 %v1299, %v1315
          %v1332 = vsub.f32 %v1300, %v1316
          %v1333 = vsub.f32 %v1301, %v1317
          %v1334 = vsub.f32 %v1302, %v1318
          %v1335 = vsub.f32 %v1303, %v1319
          %v1336 = vsub.f32 %v1304, %v1320
          %v1337 = vsub.f32 %v1305, %v1321
          %1338 = vst.msk [vmem:[#allocation5] sm:$0x1] %vm1281, %v1322
          %1339 = vst.msk [vmem:[#allocation5 + $0x1] sm:$0x1] %vm1281, %v1323
          %1340 = vst.msk [vmem:[#allocation5 + $0x2] sm:$0x1] %vm1281, %v1324
          %1341 = vst.msk [vmem:[#allocation5 + $0x3] sm:$0x1] %vm1281, %v1325
          %1342 = vst.msk [vmem:[#allocation5 + $0x4] sm:$0x1] %vm1281, %v1326
          %1343 = vst.msk [vmem:[#allocation5 + $0x5] sm:$0x1] %vm1281, %v1327
          %1344 = vst.msk [vmem:[#allocation5 + $0x6] sm:$0x1] %vm1281, %v1328
          %1345 = vst.msk [vmem:[#allocation5 + $0x7] sm:$0x1] %vm1281, %v1329
          %1346 = vst.msk [vmem:[#allocation5 + $0x8] sm:$0x1] %vm1281, %v1330
          %1347 = vst.msk [vmem:[#allocation5 + $0x9] sm:$0x1] %vm1281, %v1331
          %1348 = vst.msk [vmem:[#allocation5 + $0xa] sm:$0x1] %vm1281, %v1332
          %1349 = vst.msk [vmem:[#allocation5 + $0xb] sm:$0x1] %vm1281, %v1333
          %1350 = vst.msk [vmem:[#allocation5 + $0xc] sm:$0x1] %vm1281, %v1334
          %1351 = vst.msk [vmem:[#allocation5 + $0xd] sm:$0x1] %vm1281, %v1335
          %1352 = vst.msk [vmem:[#allocation5 + $0xe] sm:$0x1] %vm1281, %v1336
          %1353 = vst.msk [vmem:[#allocation5 + $0xf] sm:$0x1] %vm1281, %v1337
          %v1354 = vadd.f32 %v1017, %v1018
          %v1355 = vadd.f32 %v1354, %v1019
          %v1356 = vadd.f32 %v1355, %v1020
          %v1357 = vadd.f32 %v1356, %v1021
          %v1358 = vadd.f32 %v1357, %v1022
          %v1359 = vadd.f32 %v1358, %v1023
          %v1360 = vadd.f32 %v1359, %v1024
          %v1361 = vadd.f32 %v1025, %v1026
          %v1362 = vadd.f32 %v1361, %v1027
          %v1363 = vadd.f32 %v1362, %v1028
          %v1364 = vadd.f32 %v1363, %v1029
          %v1365 = vadd.f32 %v1364, %v1030
          %v1366 = vadd.f32 %v1365, %v1031
          %v1367 = vadd.f32 %v1366, %v1032
          %v1368 = vadd.f32 %v1129, %v1130
          %v1369 = vadd.f32 %v1368, %v1131
          %v1370 = vadd.f32 %v1369, %v1132
          %v1371 = vadd.f32 %v1370, %v1133
          %v1372 = vadd.f32 %v1371, %v1134
          %v1373 = vadd.f32 %v1372, %v1135
          %v1374 = vadd.f32 %v1373, %v1136
          %v1375 = vadd.f32 %v1137, %v1138
          %v1376 = vadd.f32 %v1375, %v1139
          %v1377 = vadd.f32 %v1376, %v1140
          %v1378 = vadd.f32 %v1377, %v1141
          %v1379 = vadd.f32 %v1378, %v1142
          %v1380 = vadd.f32 %v1379, %v1143
          %v1381 = vadd.f32 %v1380, %v1144
          %v1382 = vmul.f32 %v1360, 6.1035156e-05
          %v1383 = vmul.f32 %v1367, 6.1035156e-05
          %v1384 = vmul.f32 %v1374, 6.1035156e-05
          %v1385 = vmul.f32 %v1381, 6.1035156e-05
          %v1386 = vmul.f32 %v1382, %v1382
          %v1387 = vmul.f32 %v1383, %v1383
          %v1388 = vsub.f32 %v1384, %v1386
          %v1389 = vsub.f32 %v1385, %v1387
          %v1390 = vmax.f32 %v1388, 0.0
          %v1391 = vmax.f32 %v1389, 0.0
          %v1392 = vld [vmem:[%s742] sm:$0x1]
          %v1393 = vld [vmem:[%s742 + $0x1] sm:$0x1]
          %v1394 = vld [vmem:[%s742 + $0x2] sm:$0x1]
          %v1395 = vld [vmem:[%s742 + $0x3] sm:$0x1]
          %v1396 = vld [vmem:[%s742 + $0x4] sm:$0x1]
          %v1397 = vld [vmem:[%s742 + $0x5] sm:$0x1]
          %v1398 = vld [vmem:[%s742 + $0x6] sm:$0x1]
          %v1399 = vld [vmem:[%s742 + $0x7] sm:$0x1]
          %v1400 = vadd.f32 %v1390, 1e-05
          %v1401 = vadd.f32 %v1391, 1e-05
          %v1402 = vrsqrt.pop %v1400
          %v1403 = vrsqrt.pop %v1401
          %v1404 = vmul.f32 %v1392, %v1402
          %v1405 = vmul.f32 %v1393, %v1402
          %v1406 = vmul.f32 %v1394, %v1402
          %v1407 = vmul.f32 %v1395, %v1402
          %v1408 = vmul.f32 %v1396, %v1402
          %v1409 = vmul.f32 %v1397, %v1402
          %v1410 = vmul.f32 %v1398, %v1402
          %v1411 = vmul.f32 %v1399, %v1402
          %v1412 = vmul.f32 %v1392, %v1403
          %v1413 = vmul.f32 %v1393, %v1403
          %v1414 = vmul.f32 %v1394, %v1403
          %v1415 = vmul.f32 %v1395, %v1403
          %v1416 = vmul.f32 %v1396, %v1403
          %v1417 = vmul.f32 %v1397, %v1403
          %v1418 = vmul.f32 %v1398, %v1403
          %v1419 = vmul.f32 %v1399, %v1403
          %1420 = vst.msk [vmem:[#allocation6] sm:$0x1] %vm1281, %v1404
          %1421 = vst.msk [vmem:[#allocation6 + $0x1] sm:$0x1] %vm1281, %v1405
          %1422 = vst.msk [vmem:[#allocation6 + $0x2] sm:$0x1] %vm1281, %v1406
          %1423 = vst.msk [vmem:[#allocation6 + $0x3] sm:$0x1] %vm1281, %v1407
          %1424 = vst.msk [vmem:[#allocation6 + $0x4] sm:$0x1] %vm1281, %v1408
          %1425 = vst.msk [vmem:[#allocation6 + $0x5] sm:$0x1] %vm1281, %v1409
          %1426 = vst.msk [vmem:[#allocation6 + $0x6] sm:$0x1] %vm1281, %v1410
          %1427 = vst.msk [vmem:[#allocation6 + $0x7] sm:$0x1] %vm1281, %v1411
          %1428 = vst.msk [vmem:[#allocation6 + $0x8] sm:$0x1] %vm1281, %v1412
          %1429 = vst.msk [vmem:[#allocation6 + $0x9] sm:$0x1] %vm1281, %v1413
          %1430 = vst.msk [vmem:[#allocation6 + $0xa] sm:$0x1] %vm1281, %v1414
          %1431 = vst.msk [vmem:[#allocation6 + $0xb] sm:$0x1] %vm1281, %v1415
          %1432 = vst.msk [vmem:[#allocation6 + $0xc] sm:$0x1] %vm1281, %v1416
          %1433 = vst.msk [vmem:[#allocation6 + $0xd] sm:$0x1] %vm1281, %v1417
          %1434 = vst.msk [vmem:[#allocation6 + $0xe] sm:$0x1] %vm1281, %v1418
          %1435 = vst.msk [vmem:[#allocation6 + $0xf] sm:$0x1] %vm1281, %v1419
          %v1436 = vld [vmem:[%s747] sm:$0x1]
          %v1437 = vld [vmem:[%s747 + $0x1] sm:$0x1]
          %v1438 = vld [vmem:[%s747 + $0x2] sm:$0x1]
          %v1439 = vld [vmem:[%s747 + $0x3] sm:$0x1]
          %v1440 = vld [vmem:[%s747 + $0x4] sm:$0x1]
          %v1441 = vld [vmem:[%s747 + $0x5] sm:$0x1]
          %v1442 = vld [vmem:[%s747 + $0x6] sm:$0x1]
          %v1443 = vld [vmem:[%s747 + $0x7] sm:$0x1]
          %v1444 = vmul.f32 %v1382, %v1404
          %v1445 = vmul.f32 %v1382, %v1405
          %v1446 = vmul.f32 %v1382, %v1406
          %v1447 = vmul.f32 %v1382, %v1407
          %v1448 = vmul.f32 %v1382, %v1408
          %v1449 = vmul.f32 %v1382, %v1409
          %v1450 = vmul.f32 %v1382, %v1410
          %v1451 = vmul.f32 %v1382, %v1411
          %v1452 = vmul.f32 %v1383, %v1412
          %v1453 = vmul.f32 %v1383, %v1413
          %v1454 = vmul.f32 %v1383, %v1414
          %v1455 = vmul.f32 %v1383, %v1415
          %v1456 = vmul.f32 %v1383, %v1416
          %v1457 = vmul.f32 %v1383, %v1417
          %v1458 = vmul.f32 %v1383, %v1418
          %v1459 = vmul.f32 %v1383, %v1419
          %v1460 = vsub.f32 %v1436, %v1444
          %v1461 = vsub.f32 %v1437, %v1445
          %v1462 = vsub.f32 %v1438, %v1446
          %v1463 = vsub.f32 %v1439, %v1447
          %v1464 = vsub.f32 %v1440, %v1448
          %v1465 = vsub.f32 %v1441, %v1449
          %v1466 = vsub.f32 %v1442, %v1450
          %v1467 = vsub.f32 %v1443, %v1451
          %v1468 = vsub.f32 %v1436, %v1452
          %v1469 = vsub.f32 %v1437, %v1453
          %v1470 = vsub.f32 %v1438, %v1454
          %v1471 = vsub.f32 %v1439, %v1455
          %v1472 = vsub.f32 %v1440, %v1456
          %v1473 = vsub.f32 %v1441, %v1457
          %v1474 = vsub.f32 %v1442, %v1458
          %v1475 = vsub.f32 %v1443, %v1459
          %1476 = vst.msk [vmem:[#allocation7] sm:$0x1] %vm1281, %v1460
          %1477 = vst.msk [vmem:[#allocation7 + $0x1] sm:$0x1] %vm1281, %v1461
          %1478 = vst.msk [vmem:[#allocation7 + $0x2] sm:$0x1] %vm1281, %v1462
          %1479 = vst.msk [vmem:[#allocation7 + $0x3] sm:$0x1] %vm1281, %v1463
          %1480 = vst.msk [vmem:[#allocation7 + $0x4] sm:$0x1] %vm1281, %v1464
          %1481 = vst.msk [vmem:[#allocation7 + $0x5] sm:$0x1] %vm1281, %v1465
          %1482 = vst.msk [vmem:[#allocation7 + $0x6] sm:$0x1] %vm1281, %v1466
          %1483 = vst.msk [vmem:[#allocation7 + $0x7] sm:$0x1] %vm1281, %v1467
          %1484 = vst.msk [vmem:[#allocation7 + $0x8] sm:$0x1] %vm1281, %v1468
          %1485 = vst.msk [vmem:[#allocation7 + $0x9] sm:$0x1] %vm1281, %v1469
          %1486 = vst.msk [vmem:[#allocation7 + $0xa] sm:$0x1] %vm1281, %v1470
          %1487 = vst.msk [vmem:[#allocation7 + $0xb] sm:$0x1] %vm1281, %v1471
          %1488 = vst.msk [vmem:[#allocation7 + $0xc] sm:$0x1] %vm1281, %v1472
          %1489 = vst.msk [vmem:[#allocation7 + $0xd] sm:$0x1] %vm1281, %v1473
          %1490 = vst.msk [vmem:[#allocation7 + $0xe] sm:$0x1] %vm1281, %v1474
          %1491 = vst.msk [vmem:[#allocation7 + $0xf] sm:$0x1] %vm1281, %v1475
          %v1492 = vadd.f32 %v1017, %v1025
          %v1493 = vadd.f32 %v1018, %v1026
          %v1494 = vadd.f32 %v1019, %v1027
          %v1495 = vadd.f32 %v1020, %v1028
          %v1496 = vadd.f32 %v1021, %v1029
          %v1497 = vadd.f32 %v1022, %v1030
          %v1498 = vadd.f32 %v1023, %v1031
          %v1499 = vadd.f32 %v1024, %v1032
          %v1500 = vadd.f32 %v1129, %v1137
          %v1501 = vadd.f32 %v1130, %v1138
          %v1502 = vadd.f32 %v1131, %v1139
          %v1503 = vadd.f32 %v1132, %v1140
          %v1504 = vadd.f32 %v1133, %v1141
          %v1505 = vadd.f32 %v1134, %v1142
          %v1506 = vadd.f32 %v1135, %v1143
          %v1507 = vadd.f32 %v1136, %v1144
          %v1508 = vmul.f32 %v1492, 0.00024414063
          %v1509 = vmul.f32 %v1493, 0.00024414063
          %v1510 = vmul.f32 %v1494, 0.00024414063
          %v1511 = vmul.f32 %v1495, 0.00024414063
          %v1512 = vmul.f32 %v1496, 0.00024414063
          %v1513 = vmul.f32 %v1497, 0.00024414063
          %v1514 = vmul.f32 %v1498, 0.00024414063
          %v1515 = vmul.f32 %v1499, 0.00024414063
          %v1516 = vmul.f32 %v1500, 0.00024414063
          %v1517 = vmul.f32 %v1501, 0.00024414063
          %v1518 = vmul.f32 %v1502, 0.00024414063
          %v1519 = vmul.f32 %v1503, 0.00024414063
          %v1520 = vmul.f32 %v1504, 0.00024414063
          %v1521 = vmul.f32 %v1505, 0.00024414063
          %v1522 = vmul.f32 %v1506, 0.00024414063
          %v1523 = vmul.f32 %v1507, 0.00024414063
          %v1524 = vmul.f32 %v1508, %v1508
          %v1525 = vmul.f32 %v1509, %v1509
          %v1526 = vmul.f32 %v1510, %v1510
          %v1527 = vmul.f32 %v1511, %v1511
          %v1528 = vmul.f32 %v1512, %v1512
          %v1529 = vmul.f32 %v1513, %v1513
          %v1530 = vmul.f32 %v1514, %v1514
          %v1531 = vmul.f32 %v1515, %v1515
          %v1532 = vsub.f32 %v1516, %v1524
          %v1533 = vsub.f32 %v1517, %v1525
          %v1534 = vsub.f32 %v1518, %v1526
          %v1535 = vsub.f32 %v1519, %v1527
          %v1536 = vsub.f32 %v1520, %v1528
          %v1537 = vsub.f32 %v1521, %v1529
          %v1538 = vsub.f32 %v1522, %v1530
          %v1539 = vsub.f32 %v1523, %v1531
          %v1540 = vmax.f32 %v1532, 0.0
          %v1541 = vmax.f32 %v1533, 0.0
          %v1542 = vmax.f32 %v1534, 0.0
          %v1543 = vmax.f32 %v1535, 0.0
          %v1544 = vmax.f32 %v1536, 0.0
          %v1545 = vmax.f32 %v1537, 0.0
          %v1546 = vmax.f32 %v1538, 0.0
          %v1547 = vmax.f32 %v1539, 0.0
          %v1548 = vld [vmem:[%s712] sm:$0x1]
          %v1549 = vld [vmem:[%s712 + $0x1] sm:$0x1]
          %v1550 = vld [vmem:[%s712 + $0x2] sm:$0x1]
          %v1551 = vld [vmem:[%s712 + $0x3] sm:$0x1]
          %v1552 = vld [vmem:[%s712 + $0x4] sm:$0x1]
          %v1553 = vld [vmem:[%s712 + $0x5] sm:$0x1]
          %v1554 = vld [vmem:[%s712 + $0x6] sm:$0x1]
          %v1555 = vld [vmem:[%s712 + $0x7] sm:$0x1]
          %v1556 = vadd.f32 %v1540, 1e-05
          %v1557 = vadd.f32 %v1541, 1e-05
          %v1558 = vadd.f32 %v1542, 1e-05
          %v1559 = vadd.f32 %v1543, 1e-05
          %v1560 = vadd.f32 %v1544, 1e-05
          %v1561 = vadd.f32 %v1545, 1e-05
          %v1562 = vadd.f32 %v1546, 1e-05
          %v1563 = vadd.f32 %v1547, 1e-05
          %v1564 = vrsqrt.pop %v1556
          %v1565 = vrsqrt.pop %v1557
          %v1566 = vrsqrt.pop %v1558
          %v1567 = vrsqrt.pop %v1559
          %v1568 = vrsqrt.pop %v1560
          %v1569 = vrsqrt.pop %v1561
          %v1570 = vrsqrt.pop %v1562
          %v1571 = vrsqrt.pop %v1563
          %v1572 = vmul.f32 %v1548, %v1564
          %v1573 = vmul.f32 %v1549, %v1565
          %v1574 = vmul.f32 %v1550, %v1566
          %v1575 = vmul.f32 %v1551, %v1567
          %v1576 = vmul.f32 %v1552, %v1568
          %v1577 = vmul.f32 %v1553, %v1569
          %v1578 = vmul.f32 %v1554, %v1570
          %v1579 = vmul.f32 %v1555, %v1571
          %1580 = vst.msk [vmem:[#allocation2] sm:$0x1] %vm1281, %v1572
          %1581 = vst.msk [vmem:[#allocation2 + $0x1] sm:$0x1] %vm1281, %v1573
          %1582 = vst.msk [vmem:[#allocation2 + $0x2] sm:$0x1] %vm1281, %v1574
          %1583 = vst.msk [vmem:[#allocation2 + $0x3] sm:$0x1] %vm1281, %v1575
          %1584 = vst.msk [vmem:[#allocation2 + $0x4] sm:$0x1] %vm1281, %v1576
          %1585 = vst.msk [vmem:[#allocation2 + $0x5] sm:$0x1] %vm1281, %v1577
          %1586 = vst.msk [vmem:[#allocation2 + $0x6] sm:$0x1] %vm1281, %v1578
          %1587 = vst.msk [vmem:[#allocation2 + $0x7] sm:$0x1] %vm1281, %v1579
          %v1588 = vld [vmem:[%s717] sm:$0x1]
          %v1589 = vld [vmem:[%s717 + $0x1] sm:$0x1]
          %v1590 = vld [vmem:[%s717 + $0x2] sm:$0x1]
          %v1591 = vld [vmem:[%s717 + $0x3] sm:$0x1]
          %v1592 = vld [vmem:[%s717 + $0x4] sm:$0x1]
          %v1593 = vld [vmem:[%s717 + $0x5] sm:$0x1]
          %v1594 = vld [vmem:[%s717 + $0x6] sm:$0x1]
          %v1595 = vld [vmem:[%s717 + $0x7] sm:$0x1]
          %v1596 = vmul.f32 %v1508, %v1572
          %v1597 = vmul.f32 %v1509, %v1573
          %v1598 = vmul.f32 %v1510, %v1574
          %v1599 = vmul.f32 %v1511, %v1575
          %v1600 = vmul.f32 %v1512, %v1576
          %v1601 = vmul.f32 %v1513, %v1577
          %v1602 = vmul.f32 %v1514, %v1578
          %v1603 = vmul.f32 %v1515, %v1579
          %v1604 = vsub.f32 %v1588, %v1596
          %v1605 = vsub.f32 %v1589, %v1597
          %v1606 = vsub.f32 %v1590, %v1598
          %v1607 = vsub.f32 %v1591, %v1599
          %v1608 = vsub.f32 %v1592, %v1600
          %v1609 = vsub.f32 %v1593, %v1601
          %v1610 = vsub.f32 %v1594, %v1602
          %v1611 = vsub.f32 %v1595, %v1603
          %1612 = vst.msk [vmem:[#allocation3] sm:$0x1] %vm1281, %v1604
          %1613 = vst.msk [vmem:[#allocation3 + $0x1] sm:$0x1] %vm1281, %v1605
          %1614 = vst.msk [vmem:[#allocation3 + $0x2] sm:$0x1] %vm1281, %v1606
          %1615 = vst.msk [vmem:[#allocation3 + $0x3] sm:$0x1] %vm1281, %v1607
          %1616 = vst.msk [vmem:[#allocation3 + $0x4] sm:$0x1] %vm1281, %v1608
          %1617 = vst.msk [vmem:[#allocation3 + $0x5] sm:$0x1] %vm1281, %v1609
          %1618 = vst.msk [vmem:[#allocation3 + $0x6] sm:$0x1] %vm1281, %v1610
          %1619 = vst.msk [vmem:[#allocation3 + $0x7] sm:$0x1] %vm1281, %v1611
        $region72: #{dummy_model_forward.1} parent=63 // pred_fallthru
          _
        %s1620 = smul.u32 %s44, 8
        %s1621 = sshra.s32 %s1620, 3
        %s1622 = sand.u32 %s1620, 7
        %s1623 = smul.u32 %s1621, 2
        %s1624 = smul.addr %s1623, 8
        %s1625 = scalar_lea.vmem %s609, %s1624 [#allocation8]
        %v1626 = vld [vmem:[%s1625] sm:$0xff]
        %v1627 = vld [vmem:[%s1625 + $0x8] sm:$0xff]
        %v1628 = vld [vmem:[%s1625 + $0x10] sm:$0xff]
        %v1629 = vld [vmem:[%s1625 + $0x18] sm:$0xff]
        %v1630 = vld [vmem:[%s1625 + $0x20] sm:$0xff]
        %v1631 = vld [vmem:[%s1625 + $0x28] sm:$0xff]
        %v1632 = vld [vmem:[%s1625 + $0x30] sm:$0xff]
        %v1633 = vld [vmem:[%s1625 + $0x38] sm:$0xff]
        %v1634 = vld [vmem:[%s1625 + $0x40] sm:$0xff]
        %v1635 = vld [vmem:[%s1625 + $0x48] sm:$0xff]
        %v1636 = vld [vmem:[%s1625 + $0x50] sm:$0xff]
        %v1637 = vld [vmem:[%s1625 + $0x58] sm:$0xff]
        %v1638 = vld [vmem:[%s1625 + $0x60] sm:$0xff]
        %v1639 = vld [vmem:[%s1625 + $0x68] sm:$0xff]
        %v1640 = vld [vmem:[%s1625 + $0x70] sm:$0xff]
        %v1641 = vld [vmem:[%s1625 + $0x78] sm:$0xff]
        %v1642 = vld [vmem:[%s1625 + $0x80] sm:$0xff]
        %v1643 = vld [vmem:[%s1625 + $0x88] sm:$0xff]
        %v1644 = vld [vmem:[%s1625 + $0x90] sm:$0xff]
        %v1645 = vld [vmem:[%s1625 + $0x98] sm:$0xff]
        %v1646 = vld [vmem:[%s1625 + $0xa0] sm:$0xff]
        %v1647 = vld [vmem:[%s1625 + $0xa8] sm:$0xff]
        %v1648 = vld [vmem:[%s1625 + $0xb0] sm:$0xff]
        %v1649 = vld [vmem:[%s1625 + $0xb8] sm:$0xff]
        %v1650 = vld [vmem:[%s1625 + $0xc0] sm:$0xff]
        %v1651 = vld [vmem:[%s1625 + $0xc8] sm:$0xff]
        %v1652 = vld [vmem:[%s1625 + $0xd0] sm:$0xff]
        %v1653 = vld [vmem:[%s1625 + $0xd8] sm:$0xff]
        %v1654 = vld [vmem:[%s1625 + $0xe0] sm:$0xff]
        %v1655 = vld [vmem:[%s1625 + $0xe8] sm:$0xff]
        %v1656 = vld [vmem:[%s1625 + $0xf0] sm:$0xff]
        %v1657 = vld [vmem:[%s1625 + $0xf8] sm:$0xff]
        %v1658 = vld [vmem:[#allocation2] sm:$0x1]
        %v1659 = vld [vmem:[#allocation2 + $0x1] sm:$0x1]
        %v1660 = vld [vmem:[#allocation2 + $0x2] sm:$0x1]
        %v1661 = vld [vmem:[#allocation2 + $0x3] sm:$0x1]
        %v1662 = vld [vmem:[#allocation2 + $0x4] sm:$0x1]
        %v1663 = vld [vmem:[#allocation2 + $0x5] sm:$0x1]
        %v1664 = vld [vmem:[#allocation2 + $0x6] sm:$0x1]
        %v1665 = vld [vmem:[#allocation2 + $0x7] sm:$0x1]
        %v1674 = vlaneseq
        %v1675 = vshrl.u32 %v1674, 7
        %v1676 = vsub.s32 0, %v1675
        %v1677 = vrot.slane %v1658, %v1676
        %v1678 = vlaneseq
        %v1679 = vshrl.u32 %v1678, 7
        %v1680 = vsub.s32 0, %v1679
        %v1681 = vrot.slane %v1659, %v1680
        %v1682 = vlaneseq
        %v1683 = vshrl.u32 %v1682, 7
        %v1684 = vsub.s32 0, %v1683
        %v1685 = vrot.slane %v1660, %v1684
        %v1686 = vlaneseq
        %v1687 = vshrl.u32 %v1686, 7
        %v1688 = vsub.s32 0, %v1687
        %v1689 = vrot.slane %v1661, %v1688
        %v1690 = vlaneseq
        %v1691 = vshrl.u32 %v1690, 7
        %v1692 = vsub.s32 0, %v1691
        %v1693 = vrot.slane %v1662, %v1692
        %v1694 = vlaneseq
        %v1695 = vshrl.u32 %v1694, 7
        %v1696 = vsub.s32 0, %v1695
        %v1697 = vrot.slane %v1663, %v1696
        %v1698 = vlaneseq
        %v1699 = vshrl.u32 %v1698, 7
        %v1700 = vsub.s32 0, %v1699
        %v1701 = vrot.slane %v1664, %v1700
        %v1702 = vlaneseq
        %v1703 = vshrl.u32 %v1702, 7
        %v1704 = vsub.s32 0, %v1703
        %v1705 = vrot.slane %v1665, %v1704
        %1706 = vset.pattern.permute.xlu0 0
        %1707 = vperm.xlu0 %1706, %v1677
        %v1708 = vpop.permute.xlu0 %1707
        %1710 = vset.pattern.permute.xlu0 0
        %1711 = vperm.xlu0 %1710, %v1681
        %v1712 = vpop.permute.xlu0 %1711
        %1714 = vset.pattern.permute.xlu0 0
        %1715 = vperm.xlu0 %1714, %v1685
        %v1716 = vpop.permute.xlu0 %1715
        %1718 = vset.pattern.permute.xlu0 0
        %1719 = vperm.xlu0 %1718, %v1689
        %v1720 = vpop.permute.xlu0 %1719
        %1722 = vset.pattern.permute.xlu0 0
        %1723 = vperm.xlu0 %1722, %v1693
        %v1724 = vpop.permute.xlu0 %1723
        %1726 = vset.pattern.permute.xlu0 0
        %1727 = vperm.xlu0 %1726, %v1697
        %v1728 = vpop.permute.xlu0 %1727
        %1730 = vset.pattern.permute.xlu0 0
        %1731 = vperm.xlu0 %1730, %v1701
        %v1732 = vpop.permute.xlu0 %1731
        %1734 = vset.pattern.permute.xlu0 0
        %1735 = vperm.xlu0 %1734, %v1705
        %v1736 = vpop.permute.xlu0 %1735
        %v1738 = vmul.f32 %v1626, %v1708
        %v1739 = vmul.f32 %v1627, %v1708
        %v1740 = vmul.f32 %v1628, %v1712
        %v1741 = vmul.f32 %v1629, %v1712
        %v1742 = vmul.f32 %v1630, %v1716
        %v1743 = vmul.f32 %v1631, %v1716
        %v1744 = vmul.f32 %v1632, %v1720
        %v1745 = vmul.f32 %v1633, %v1720
        %v1746 = vmul.f32 %v1634, %v1724
        %v1747 = vmul.f32 %v1635, %v1724
        %v1748 = vmul.f32 %v1636, %v1728
        %v1749 = vmul.f32 %v1637, %v1728
        %v1750 = vmul.f32 %v1638, %v1732
        %v1751 = vmul.f32 %v1639, %v1732
        %v1752 = vmul.f32 %v1640, %v1736
        %v1753 = vmul.f32 %v1641, %v1736
        %v1754 = vmul.f32 %v1642, %v1708
        %v1755 = vmul.f32 %v1643, %v1708
        %v1756 = vmul.f32 %v1644, %v1712
        %v1757 = vmul.f32 %v1645, %v1712
        %v1758 = vmul.f32 %v1646, %v1716
        %v1759 = vmul.f32 %v1647, %v1716
        %v1760 = vmul.f32 %v1648, %v1720
        %v1761 = vmul.f32 %v1649, %v1720
        %v1762 = vmul.f32 %v1650, %v1724
        %v1763 = vmul.f32 %v1651, %v1724
        %v1764 = vmul.f32 %v1652, %v1728
        %v1765 = vmul.f32 %v1653, %v1728
        %v1766 = vmul.f32 %v1654, %v1732
        %v1767 = vmul.f32 %v1655, %v1732
        %v1768 = vmul.f32 %v1656, %v1736
        %v1769 = vmul.f32 %v1657, %v1736
        %v1770 = vld [vmem:[#allocation3] sm:$0x1]
        %v1771 = vld [vmem:[#allocation3 + $0x1] sm:$0x1]
        %v1772 = vld [vmem:[#allocation3 + $0x2] sm:$0x1]
        %v1773 = vld [vmem:[#allocation3 + $0x3] sm:$0x1]
        %v1774 = vld [vmem:[#allocation3 + $0x4] sm:$0x1]
        %v1775 = vld [vmem:[#allocation3 + $0x5] sm:$0x1]
        %v1776 = vld [vmem:[#allocation3 + $0x6] sm:$0x1]
        %v1777 = vld [vmem:[#allocation3 + $0x7] sm:$0x1]
        %v1786 = vlaneseq
        %v1787 = vshrl.u32 %v1786, 7
        %v1788 = vsub.s32 0, %v1787
        %v1789 = vrot.slane %v1770, %v1788
        %v1790 = vlaneseq
        %v1791 = vshrl.u32 %v1790, 7
        %v1792 = vsub.s32 0, %v1791
        %v1793 = vrot.slane %v1771, %v1792
        %v1794 = vlaneseq
        %v1795 = vshrl.u32 %v1794, 7
        %v1796 = vsub.s32 0, %v1795
        %v1797 = vrot.slane %v1772, %v1796
        %v1798 = vlaneseq
        %v1799 = vshrl.u32 %v1798, 7
        %v1800 = vsub.s32 0, %v1799
        %v1801 = vrot.slane %v1773, %v1800
        %v1802 = vlaneseq
        %v1803 = vshrl.u32 %v1802, 7
        %v1804 = vsub.s32 0, %v1803
        %v1805 = vrot.slane %v1774, %v1804
        %v1806 = vlaneseq
        %v1807 = vshrl.u32 %v1806, 7
        %v1808 = vsub.s32 0, %v1807
        %v1809 = vrot.slane %v1775, %v1808
        %v1810 = vlaneseq
        %v1811 = vshrl.u32 %v1810, 7
        %v1812 = vsub.s32 0, %v1811
        %v1813 = vrot.slane %v1776, %v1812
        %v1814 = vlaneseq
        %v1815 = vshrl.u32 %v1814, 7
        %v1816 = vsub.s32 0, %v1815
        %v1817 = vrot.slane %v1777, %v1816
        %1818 = vset.pattern.permute.xlu0 0
        %1819 = vperm.xlu0 %1818, %v1789
        %v1820 = vpop.permute.xlu0 %1819
        %1822 = vset.pattern.permute.xlu0 0
        %1823 = vperm.xlu0 %1822, %v1793
        %v1824 = vpop.permute.xlu0 %1823
        %1826 = vset.pattern.permute.xlu0 0
        %1827 = vperm.xlu0 %1826, %v1797
        %v1828 = vpop.permute.xlu0 %1827
        %1830 = vset.pattern.permute.xlu0 0
        %1831 = vperm.xlu0 %1830, %v1801
        %v1832 = vpop.permute.xlu0 %1831
        %1834 = vset.pattern.permute.xlu0 0
        %1835 = vperm.xlu0 %1834, %v1805
        %v1836 = vpop.permute.xlu0 %1835
        %1838 = vset.pattern.permute.xlu0 0
        %1839 = vperm.xlu0 %1838, %v1809
        %v1840 = vpop.permute.xlu0 %1839
        %1842 = vset.pattern.permute.xlu0 0
        %1843 = vperm.xlu0 %1842, %v1813
        %v1844 = vpop.permute.xlu0 %1843
        %1846 = vset.pattern.permute.xlu0 0
        %1847 = vperm.xlu0 %1846, %v1817
        %v1848 = vpop.permute.xlu0 %1847
        %v1850 = vadd.f32 %v1738, %v1820
        %v1851 = vadd.f32 %v1739, %v1820
        %v1852 = vadd.f32 %v1740, %v1824
        %v1853 = vadd.f32 %v1741, %v1824
        %v1854 = vadd.f32 %v1742, %v1828
        %v1855 = vadd.f32 %v1743, %v1828
        %v1856 = vadd.f32 %v1744, %v1832
        %v1857 = vadd.f32 %v1745, %v1832
        %v1858 = vadd.f32 %v1746, %v1836
        %v1859 = vadd.f32 %v1747, %v1836
        %v1860 = vadd.f32 %v1748, %v1840
        %v1861 = vadd.f32 %v1749, %v1840
        %v1862 = vadd.f32 %v1750, %v1844
        %v1863 = vadd.f32 %v1751, %v1844
        %v1864 = vadd.f32 %v1752, %v1848
        %v1865 = vadd.f32 %v1753, %v1848
        %v1866 = vadd.f32 %v1754, %v1820
        %v1867 = vadd.f32 %v1755, %v1820
        %v1868 = vadd.f32 %v1756, %v1824
        %v1869 = vadd.f32 %v1757, %v1824
        %v1870 = vadd.f32 %v1758, %v1828
        %v1871 = vadd.f32 %v1759, %v1828
        %v1872 = vadd.f32 %v1760, %v1832
        %v1873 = vadd.f32 %v1761, %v1832
        %v1874 = vadd.f32 %v1762, %v1836
        %v1875 = vadd.f32 %v1763, %v1836
        %v1876 = vadd.f32 %v1764, %v1840
        %v1877 = vadd.f32 %v1765, %v1840
        %v1878 = vadd.f32 %v1766, %v1844
        %v1879 = vadd.f32 %v1767, %v1844
        %v1880 = vadd.f32 %v1768, %v1848
        %v1881 = vadd.f32 %v1769, %v1848
        %1882 = vst [vmem:[%s679] sm:$0xff] %v1850
        %1883 = vst [vmem:[%s679 + $0x8] sm:$0xff] %v1851
        %1884 = vst [vmem:[%s679 + $0x10] sm:$0xff] %v1852
        %1885 = vst [vmem:[%s679 + $0x18] sm:$0xff] %v1853
        %1886 = vst [vmem:[%s679 + $0x20] sm:$0xff] %v1854
        %1887 = vst [vmem:[%s679 + $0x28] sm:$0xff] %v1855
        %1888 = vst [vmem:[%s679 + $0x30] sm:$0xff] %v1856
        %1889 = vst [vmem:[%s679 + $0x38] sm:$0xff] %v1857
        %1890 = vst [vmem:[%s679 + $0x40] sm:$0xff] %v1858
        %1891 = vst [vmem:[%s679 + $0x48] sm:$0xff] %v1859
        %1892 = vst [vmem:[%s679 + $0x50] sm:$0xff] %v1860
        %1893 = vst [vmem:[%s679 + $0x58] sm:$0xff] %v1861
        %1894 = vst [vmem:[%s679 + $0x60] sm:$0xff] %v1862
        %1895 = vst [vmem:[%s679 + $0x68] sm:$0xff] %v1863
        %1896 = vst [vmem:[%s679 + $0x70] sm:$0xff] %v1864
        %1897 = vst [vmem:[%s679 + $0x78] sm:$0xff] %v1865
        %1898 = vst [vmem:[%s679 + $0x80] sm:$0xff] %v1866
        %1899 = vst [vmem:[%s679 + $0x88] sm:$0xff] %v1867
        %1900 = vst [vmem:[%s679 + $0x90] sm:$0xff] %v1868
        %1901 = vst [vmem:[%s679 + $0x98] sm:$0xff] %v1869
        %1902 = vst [vmem:[%s679 + $0xa0] sm:$0xff] %v1870
        %1903 = vst [vmem:[%s679 + $0xa8] sm:$0xff] %v1871
        %1904 = vst [vmem:[%s679 + $0xb0] sm:$0xff] %v1872
        %1905 = vst [vmem:[%s679 + $0xb8] sm:$0xff] %v1873
        %1906 = vst [vmem:[%s679 + $0xc0] sm:$0xff] %v1874
        %1907 = vst [vmem:[%s679 + $0xc8] sm:$0xff] %v1875
        %1908 = vst [vmem:[%s679 + $0xd0] sm:$0xff] %v1876
        %1909 = vst [vmem:[%s679 + $0xd8] sm:$0xff] %v1877
        %1910 = vst [vmem:[%s679 + $0xe0] sm:$0xff] %v1878
        %1911 = vst [vmem:[%s679 + $0xe8] sm:$0xff] %v1879
        %1912 = vst [vmem:[%s679 + $0xf0] sm:$0xff] %v1880
        %1913 = vst [vmem:[%s679 + $0xf8] sm:$0xff] %v1881
        %v1914 = vld [vmem:[%s722] sm:$0x1]
        %v1915 = vld [vmem:[%s722 + $0x1] sm:$0x1]
        %v1916 = vld [vmem:[%s722 + $0x2] sm:$0x1]
        %v1917 = vld [vmem:[%s722 + $0x3] sm:$0x1]
        %v1918 = vld [vmem:[%s722 + $0x4] sm:$0x1]
        %v1919 = vld [vmem:[%s722 + $0x5] sm:$0x1]
        %v1920 = vld [vmem:[%s722 + $0x6] sm:$0x1]
        %v1921 = vld [vmem:[%s722 + $0x7] sm:$0x1]
        %v1930 = vlaneseq
        %v1931 = vshrl.u32 %v1930, 7
        %v1932 = vsub.s32 0, %v1931
        %v1933 = vrot.slane %v1914, %v1932
        %v1934 = vlaneseq
        %v1935 = vshrl.u32 %v1934, 7
        %v1936 = vsub.s32 0, %v1935
        %v1937 = vrot.slane %v1915, %v1936
        %v1938 = vlaneseq
        %v1939 = vshrl.u32 %v1938, 7
        %v1940 = vsub.s32 0, %v1939
        %v1941 = vrot.slane %v1916, %v1940
        %v1942 = vlaneseq
        %v1943 = vshrl.u32 %v1942, 7
        %v1944 = vsub.s32 0, %v1943
        %v1945 = vrot.slane %v1917, %v1944
        %v1946 = vlaneseq
        %v1947 = vshrl.u32 %v1946, 7
        %v1948 = vsub.s32 0, %v1947
        %v1949 = vrot.slane %v1918, %v1948
        %v1950 = vlaneseq
        %v1951 = vshrl.u32 %v1950, 7
        %v1952 = vsub.s32 0, %v1951
        %v1953 = vrot.slane %v1919, %v1952
        %v1954 = vlaneseq
        %v1955 = vshrl.u32 %v1954, 7
        %v1956 = vsub.s32 0, %v1955
        %v1957 = vrot.slane %v1920, %v1956
        %v1958 = vlaneseq
        %v1959 = vshrl.u32 %v1958, 7
        %v1960 = vsub.s32 0, %v1959
        %v1961 = vrot.slane %v1921, %v1960
        %1962 = vset.pattern.permute.xlu0 0
        %1963 = vperm.xlu0 %1962, %v1933
        %v1964 = vpop.permute.xlu0 %1963
        %1966 = vset.pattern.permute.xlu0 0
        %1967 = vperm.xlu0 %1966, %v1937
        %v1968 = vpop.permute.xlu0 %1967
        %1970 = vset.pattern.permute.xlu0 0
        %1971 = vperm.xlu0 %1970, %v1941
        %v1972 = vpop.permute.xlu0 %1971
        %1974 = vset.pattern.permute.xlu0 0
        %1975 = vperm.xlu0 %1974, %v1945
        %v1976 = vpop.permute.xlu0 %1975
        %1978 = vset.pattern.permute.xlu0 0
        %1979 = vperm.xlu0 %1978, %v1949
        %v1980 = vpop.permute.xlu0 %1979
        %1982 = vset.pattern.permute.xlu0 0
        %1983 = vperm.xlu0 %1982, %v1953
        %v1984 = vpop.permute.xlu0 %1983
        %1986 = vset.pattern.permute.xlu0 0
        %1987 = vperm.xlu0 %1986, %v1957
        %v1988 = vpop.permute.xlu0 %1987
        %1990 = vset.pattern.permute.xlu0 0
        %1991 = vperm.xlu0 %1990, %v1961
        %v1992 = vpop.permute.xlu0 %1991
        %v1994 = vmul.f32 %v1626, %v1964
        %v1995 = vmul.f32 %v1627, %v1964
        %v1996 = vmul.f32 %v1628, %v1968
        %v1997 = vmul.f32 %v1629, %v1968
        %v1998 = vmul.f32 %v1630, %v1972
        %v1999 = vmul.f32 %v1631, %v1972
        %v2000 = vmul.f32 %v1632, %v1976
        %v2001 = vmul.f32 %v1633, %v1976
        %v2002 = vmul.f32 %v1634, %v1980
        %v2003 = vmul.f32 %v1635, %v1980
        %v2004 = vmul.f32 %v1636, %v1984
        %v2005 = vmul.f32 %v1637, %v1984
        %v2006 = vmul.f32 %v1638, %v1988
        %v2007 = vmul.f32 %v1639, %v1988
        %v2008 = vmul.f32 %v1640, %v1992
        %v2009 = vmul.f32 %v1641, %v1992
        %v2010 = vmul.f32 %v1642, %v1964
        %v2011 = vmul.f32 %v1643, %v1964
        %v2012 = vmul.f32 %v1644, %v1968
        %v2013 = vmul.f32 %v1645, %v1968
        %v2014 = vmul.f32 %v1646, %v1972
        %v2015 = vmul.f32 %v1647, %v1972
        %v2016 = vmul.f32 %v1648, %v1976
        %v2017 = vmul.f32 %v1649, %v1976
        %v2018 = vmul.f32 %v1650, %v1980
        %v2019 = vmul.f32 %v1651, %v1980
        %v2020 = vmul.f32 %v1652, %v1984
        %v2021 = vmul.f32 %v1653, %v1984
        %v2022 = vmul.f32 %v1654, %v1988
        %v2023 = vmul.f32 %v1655, %v1988
        %v2024 = vmul.f32 %v1656, %v1992
        %v2025 = vmul.f32 %v1657, %v1992
        %v2026 = vld [vmem:[%s727] sm:$0x1]
        %v2027 = vld [vmem:[%s727 + $0x1] sm:$0x1]
        %v2028 = vld [vmem:[%s727 + $0x2] sm:$0x1]
        %v2029 = vld [vmem:[%s727 + $0x3] sm:$0x1]
        %v2030 = vld [vmem:[%s727 + $0x4] sm:$0x1]
        %v2031 = vld [vmem:[%s727 + $0x5] sm:$0x1]
        %v2032 = vld [vmem:[%s727 + $0x6] sm:$0x1]
        %v2033 = vld [vmem:[%s727 + $0x7] sm:$0x1]
        %v2042 = vlaneseq
        %v2043 = vshrl.u32 %v2042, 7
        %v2044 = vsub.s32 0, %v2043
        %v2045 = vrot.slane %v2026, %v2044
        %v2046 = vlaneseq
        %v2047 = vshrl.u32 %v2046, 7
        %v2048 = vsub.s32 0, %v2047
        %v2049 = vrot.slane %v2027, %v2048
        %v2050 = vlaneseq
        %v2051 = vshrl.u32 %v2050, 7
        %v2052 = vsub.s32 0, %v2051
        %v2053 = vrot.slane %v2028, %v2052
        %v2054 = vlaneseq
        %v2055 = vshrl.u32 %v2054, 7
        %v2056 = vsub.s32 0, %v2055
        %v2057 = vrot.slane %v2029, %v2056
        %v2058 = vlaneseq
        %v2059 = vshrl.u32 %v2058, 7
        %v2060 = vsub.s32 0, %v2059
        %v2061 = vrot.slane %v2030, %v2060
        %v2062 = vlaneseq
        %v2063 = vshrl.u32 %v2062, 7
        %v2064 = vsub.s32 0, %v2063
        %v2065 = vrot.slane %v2031, %v2064
        %v2066 = vlaneseq
        %v2067 = vshrl.u32 %v2066, 7
        %v2068 = vsub.s32 0, %v2067
        %v2069 = vrot.slane %v2032, %v2068
        %v2070 = vlaneseq
        %v2071 = vshrl.u32 %v2070, 7
        %v2072 = vsub.s32 0, %v2071
        %v2073 = vrot.slane %v2033, %v2072
        %2074 = vset.pattern.permute.xlu0 0
        %2075 = vperm.xlu0 %2074, %v2045
        %v2076 = vpop.permute.xlu0 %2075
        %2078 = vset.pattern.permute.xlu0 0
        %2079 = vperm.xlu0 %2078, %v2049
        %v2080 = vpop.permute.xlu0 %2079
        %2082 = vset.pattern.permute.xlu0 0
        %2083 = vperm.xlu0 %2082, %v2053
        %v2084 = vpop.permute.xlu0 %2083
        %2086 = vset.pattern.permute.xlu0 0
        %2087 = vperm.xlu0 %2086, %v2057
        %v2088 = vpop.permute.xlu0 %2087
        %2090 = vset.pattern.permute.xlu0 0
        %2091 = vperm.xlu0 %2090, %v2061
        %v2092 = vpop.permute.xlu0 %2091
        %2094 = vset.pattern.permute.xlu0 0
        %2095 = vperm.xlu0 %2094, %v2065
        %v2096 = vpop.permute.xlu0 %2095
        %2098 = vset.pattern.permute.xlu0 0
        %2099 = vperm.xlu0 %2098, %v2069
        %v2100 = vpop.permute.xlu0 %2099
        %2102 = vset.pattern.permute.xlu0 0
        %2103 = vperm.xlu0 %2102, %v2073
        %v2104 = vpop.permute.xlu0 %2103
        %v2106 = vadd.f32 %v1994, %v2076
        %v2107 = vadd.f32 %v1995, %v2076
        %v2108 = vadd.f32 %v1996, %v2080
        %v2109 = vadd.f32 %v1997, %v2080
        %v2110 = vadd.f32 %v1998, %v2084
        %v2111 = vadd.f32 %v1999, %v2084
        %v2112 = vadd.f32 %v2000, %v2088
        %v2113 = vadd.f32 %v2001, %v2088
        %v2114 = vadd.f32 %v2002, %v2092
        %v2115 = vadd.f32 %v2003, %v2092
        %v2116 = vadd.f32 %v2004, %v2096
        %v2117 = vadd.f32 %v2005, %v2096
        %v2118 = vadd.f32 %v2006, %v2100
        %v2119 = vadd.f32 %v2007, %v2100
        %v2120 = vadd.f32 %v2008, %v2104
        %v2121 = vadd.f32 %v2009, %v2104
        %v2122 = vadd.f32 %v2010, %v2076
        %v2123 = vadd.f32 %v2011, %v2076
        %v2124 = vadd.f32 %v2012, %v2080
        %v2125 = vadd.f32 %v2013, %v2080
        %v2126 = vadd.f32 %v2014, %v2084
        %v2127 = vadd.f32 %v2015, %v2084
        %v2128 = vadd.f32 %v2016, %v2088
        %v2129 = vadd.f32 %v2017, %v2088
        %v2130 = vadd.f32 %v2018, %v2092
        %v2131 = vadd.f32 %v2019, %v2092
        %v2132 = vadd.f32 %v2020, %v2096
        %v2133 = vadd.f32 %v2021, %v2096
        %v2134 = vadd.f32 %v2022, %v2100
        %v2135 = vadd.f32 %v2023, %v2100
        %v2136 = vadd.f32 %v2024, %v2104
        %v2137 = vadd.f32 %v2025, %v2104
        %2138 = vst [vmem:[%s686] sm:$0xff] %v2106
        %2139 = vst [vmem:[%s686 + $0x8] sm:$0xff] %v2107
        %2140 = vst [vmem:[%s686 + $0x10] sm:$0xff] %v2108
        %2141 = vst [vmem:[%s686 + $0x18] sm:$0xff] %v2109
        %2142 = vst [vmem:[%s686 + $0x20] sm:$0xff] %v2110
        %2143 = vst [vmem:[%s686 + $0x28] sm:$0xff] %v2111
        %2144 = vst [vmem:[%s686 + $0x30] sm:$0xff] %v2112
        %2145 = vst [vmem:[%s686 + $0x38] sm:$0xff] %v2113
        %2146 = vst [vmem:[%s686 + $0x40] sm:$0xff] %v2114
        %2147 = vst [vmem:[%s686 + $0x48] sm:$0xff] %v2115
        %2148 = vst [vmem:[%s686 + $0x50] sm:$0xff] %v2116
        %2149 = vst [vmem:[%s686 + $0x58] sm:$0xff] %v2117
        %2150 = vst [vmem:[%s686 + $0x60] sm:$0xff] %v2118
        %2151 = vst [vmem:[%s686 + $0x68] sm:$0xff] %v2119
        %2152 = vst [vmem:[%s686 + $0x70] sm:$0xff] %v2120
        %2153 = vst [vmem:[%s686 + $0x78] sm:$0xff] %v2121
        %2154 = vst [vmem:[%s686 + $0x80] sm:$0xff] %v2122
        %2155 = vst [vmem:[%s686 + $0x88] sm:$0xff] %v2123
        %2156 = vst [vmem:[%s686 + $0x90] sm:$0xff] %v2124
        %2157 = vst [vmem:[%s686 + $0x98] sm:$0xff] %v2125
        %2158 = vst [vmem:[%s686 + $0xa0] sm:$0xff] %v2126
        %2159 = vst [vmem:[%s686 + $0xa8] sm:$0xff] %v2127
        %2160 = vst [vmem:[%s686 + $0xb0] sm:$0xff] %v2128
        %2161 = vst [vmem:[%s686 + $0xb8] sm:$0xff] %v2129
        %2162 = vst [vmem:[%s686 + $0xc0] sm:$0xff] %v2130
        %2163 = vst [vmem:[%s686 + $0xc8] sm:$0xff] %v2131
        %2164 = vst [vmem:[%s686 + $0xd0] sm:$0xff] %v2132
        %2165 = vst [vmem:[%s686 + $0xd8] sm:$0xff] %v2133
        %2166 = vst [vmem:[%s686 + $0xe0] sm:$0xff] %v2134
        %2167 = vst [vmem:[%s686 + $0xe8] sm:$0xff] %v2135
        %2168 = vst [vmem:[%s686 + $0xf0] sm:$0xff] %v2136
        %2169 = vst [vmem:[%s686 + $0xf8] sm:$0xff] %v2137
        %v2170 = vld [vmem:[#allocation4] sm:$0x1]
        %v2171 = vld [vmem:[#allocation4 + $0x1] sm:$0x1]
        %v2172 = vld [vmem:[#allocation4 + $0x2] sm:$0x1]
        %v2173 = vld [vmem:[#allocation4 + $0x3] sm:$0x1]
        %v2174 = vld [vmem:[#allocation4 + $0x4] sm:$0x1]
        %v2175 = vld [vmem:[#allocation4 + $0x5] sm:$0x1]
        %v2176 = vld [vmem:[#allocation4 + $0x6] sm:$0x1]
        %v2177 = vld [vmem:[#allocation4 + $0x7] sm:$0x1]
        %v2178 = vld [vmem:[#allocation4 + $0x8] sm:$0x1]
        %v2179 = vld [vmem:[#allocation4 + $0x9] sm:$0x1]
        %v2180 = vld [vmem:[#allocation4 + $0xa] sm:$0x1]
        %v2181 = vld [vmem:[#allocation4 + $0xb] sm:$0x1]
        %v2182 = vld [vmem:[#allocation4 + $0xc] sm:$0x1]
        %v2183 = vld [vmem:[#allocation4 + $0xd] sm:$0x1]
        %v2184 = vld [vmem:[#allocation4 + $0xe] sm:$0x1]
        %v2185 = vld [vmem:[#allocation4 + $0xf] sm:$0x1]
        %v2202 = vlaneseq
        %v2203 = vshrl.u32 %v2202, 7
        %v2204 = vsub.s32 0, %v2203
        %v2205 = vrot.slane %v2170, %v2204
        %v2206 = vlaneseq
        %v2207 = vshrl.u32 %v2206, 7
        %v2208 = vsub.s32 0, %v2207
        %v2209 = vrot.slane %v2171, %v2208
        %v2210 = vlaneseq
        %v2211 = vshrl.u32 %v2210, 7
        %v2212 = vsub.s32 0, %v2211
        %v2213 = vrot.slane %v2172, %v2212
        %v2214 = vlaneseq
        %v2215 = vshrl.u32 %v2214, 7
        %v2216 = vsub.s32 0, %v2215
        %v2217 = vrot.slane %v2173, %v2216
        %v2218 = vlaneseq
        %v2219 = vshrl.u32 %v2218, 7
        %v2220 = vsub.s32 0, %v2219
        %v2221 = vrot.slane %v2174, %v2220
        %v2222 = vlaneseq
        %v2223 = vshrl.u32 %v2222, 7
        %v2224 = vsub.s32 0, %v2223
        %v2225 = vrot.slane %v2175, %v2224
        %v2226 = vlaneseq
        %v2227 = vshrl.u32 %v2226, 7
        %v2228 = vsub.s32 0, %v2227
        %v2229 = vrot.slane %v2176, %v2228
        %v2230 = vlaneseq
        %v2231 = vshrl.u32 %v2230, 7
        %v2232 = vsub.s32 0, %v2231
        %v2233 = vrot.slane %v2177, %v2232
        %v2234 = vlaneseq
        %v2235 = vshrl.u32 %v2234, 7
        %v2236 = vsub.s32 0, %v2235
        %v2237 = vrot.slane %v2178, %v2236
        %v2238 = vlaneseq
        %v2239 = vshrl.u32 %v2238, 7
        %v2240 = vsub.s32 0, %v2239
        %v2241 = vrot.slane %v2179, %v2240
        %v2242 = vlaneseq
        %v2243 = vshrl.u32 %v2242, 7
        %v2244 = vsub.s32 0, %v2243
        %v2245 = vrot.slane %v2180, %v2244
        %v2246 = vlaneseq
        %v2247 = vshrl.u32 %v2246, 7
        %v2248 = vsub.s32 0, %v2247
        %v2249 = vrot.slane %v2181, %v2248
        %v2250 = vlaneseq
        %v2251 = vshrl.u32 %v2250, 7
        %v2252 = vsub.s32 0, %v2251
        %v2253 = vrot.slane %v2182, %v2252
        %v2254 = vlaneseq
        %v2255 = vshrl.u32 %v2254, 7
        %v2256 = vsub.s32 0, %v2255
        %v2257 = vrot.slane %v2183, %v2256
        %v2258 = vlaneseq
        %v2259 = vshrl.u32 %v2258, 7
        %v2260 = vsub.s32 0, %v2259
        %v2261 = vrot.slane %v2184, %v2260
        %v2262 = vlaneseq
        %v2263 = vshrl.u32 %v2262, 7
        %v2264 = vsub.s32 0, %v2263
        %v2265 = vrot.slane %v2185, %v2264
        %2266 = vset.pattern.permute.xlu0 0
        %2267 = vperm.xlu0 %2266, %v2205
        %v2268 = vpop.permute.xlu0 %2267
        %2270 = vset.pattern.permute.xlu0 0
        %2271 = vperm.xlu0 %2270, %v2209
        %v2272 = vpop.permute.xlu0 %2271
        %2274 = vset.pattern.permute.xlu0 0
        %2275 = vperm.xlu0 %2274, %v2213
        %v2276 = vpop.permute.xlu0 %2275
        %2278 = vset.pattern.permute.xlu0 0
        %2279 = vperm.xlu0 %2278, %v2217
        %v2280 = vpop.permute.xlu0 %2279
        %2282 = vset.pattern.permute.xlu0 0
        %2283 = vperm.xlu0 %2282, %v2221
        %v2284 = vpop.permute.xlu0 %2283
        %2286 = vset.pattern.permute.xlu0 0
        %2287 = vperm.xlu0 %2286, %v2225
        %v2288 = vpop.permute.xlu0 %2287
        %2290 = vset.pattern.permute.xlu0 0
        %2291 = vperm.xlu0 %2290, %v2229
        %v2292 = vpop.permute.xlu0 %2291
        %2294 = vset.pattern.permute.xlu0 0
        %2295 = vperm.xlu0 %2294, %v2233
        %v2296 = vpop.permute.xlu0 %2295
        %2298 = vset.pattern.permute.xlu0 0
        %2299 = vperm.xlu0 %2298, %v2237
        %v2300 = vpop.permute.xlu0 %2299
        %2302 = vset.pattern.permute.xlu0 0
        %2303 = vperm.xlu0 %2302, %v2241
        %v2304 = vpop.permute.xlu0 %2303
        %2306 = vset.pattern.permute.xlu0 0
        %2307 = vperm.xlu0 %2306, %v2245
        %v2308 = vpop.permute.xlu0 %2307
        %2310 = vset.pattern.permute.xlu0 0
        %2311 = vperm.xlu0 %2310, %v2249
        %v2312 = vpop.permute.xlu0 %2311
        %2314 = vset.pattern.permute.xlu0 0
        %2315 = vperm.xlu0 %2314, %v2253
        %v2316 = vpop.permute.xlu0 %2315
        %2318 = vset.pattern.permute.xlu0 0
        %2319 = vperm.xlu0 %2318, %v2257
        %v2320 = vpop.permute.xlu0 %2319
        %2322 = vset.pattern.permute.xlu0 0
        %2323 = vperm.xlu0 %2322, %v2261
        %v2324 = vpop.permute.xlu0 %2323
        %2326 = vset.pattern.permute.xlu0 0
        %2327 = vperm.xlu0 %2326, %v2265
        %v2328 = vpop.permute.xlu0 %2327
        %v2330 = vmul.f32 %v1626, %v2268
        %v2331 = vmul.f32 %v1627, %v2268
        %v2332 = vmul.f32 %v1628, %v2272
        %v2333 = vmul.f32 %v1629, %v2272
        %v2334 = vmul.f32 %v1630, %v2276
        %v2335 = vmul.f32 %v1631, %v2276
        %v2336 = vmul.f32 %v1632, %v2280
        %v2337 = vmul.f32 %v1633, %v2280
        %v2338 = vmul.f32 %v1634, %v2284
        %v2339 = vmul.f32 %v1635, %v2284
        %v2340 = vmul.f32 %v1636, %v2288
        %v2341 = vmul.f32 %v1637, %v2288
        %v2342 = vmul.f32 %v1638, %v2292
        %v2343 = vmul.f32 %v1639, %v2292
        %v2344 = vmul.f32 %v1640, %v2296
        %v2345 = vmul.f32 %v1641, %v2296
        %v2346 = vmul.f32 %v1642, %v2300
        %v2347 = vmul.f32 %v1643, %v2300
        %v2348 = vmul.f32 %v1644, %v2304
        %v2349 = vmul.f32 %v1645, %v2304
        %v2350 = vmul.f32 %v1646, %v2308
        %v2351 = vmul.f32 %v1647, %v2308
        %v2352 = vmul.f32 %v1648, %v2312
        %v2353 = vmul.f32 %v1649, %v2312
        %v2354 = vmul.f32 %v1650, %v2316
        %v2355 = vmul.f32 %v1651, %v2316
        %v2356 = vmul.f32 %v1652, %v2320
        %v2357 = vmul.f32 %v1653, %v2320
        %v2358 = vmul.f32 %v1654, %v2324
        %v2359 = vmul.f32 %v1655, %v2324
        %v2360 = vmul.f32 %v1656, %v2328
        %v2361 = vmul.f32 %v1657, %v2328
        %v2362 = vld [vmem:[#allocation5] sm:$0x1]
        %v2363 = vld [vmem:[#allocation5 + $0x1] sm:$0x1]
        %v2364 = vld [vmem:[#allocation5 + $0x2] sm:$0x1]
        %v2365 = vld [vmem:[#allocation5 + $0x3] sm:$0x1]
        %v2366 = vld [vmem:[#allocation5 + $0x4] sm:$0x1]
        %v2367 = vld [vmem:[#allocation5 + $0x5] sm:$0x1]
        %v2368 = vld [vmem:[#allocation5 + $0x6] sm:$0x1]
        %v2369 = vld [vmem:[#allocation5 + $0x7] sm:$0x1]
        %v2370 = vld [vmem:[#allocation5 + $0x8] sm:$0x1]
        %v2371 = vld [vmem:[#allocation5 + $0x9] sm:$0x1]
        %v2372 = vld [vmem:[#allocation5 + $0xa] sm:$0x1]
        %v2373 = vld [vmem:[#allocation5 + $0xb] sm:$0x1]
        %v2374 = vld [vmem:[#allocation5 + $0xc] sm:$0x1]
        %v2375 = vld [vmem:[#allocation5 + $0xd] sm:$0x1]
        %v2376 = vld [vmem:[#allocation5 + $0xe] sm:$0x1]
        %v2377 = vld [vmem:[#allocation5 + $0xf] sm:$0x1]
        %v2394 = vlaneseq
        %v2395 = vshrl.u32 %v2394, 7
        %v2396 = vsub.s32 0, %v2395
        %v2397 = vrot.slane %v2362, %v2396
        %v2398 = vlaneseq
        %v2399 = vshrl.u32 %v2398, 7
        %v2400 = vsub.s32 0, %v2399
        %v2401 = vrot.slane %v2363, %v2400
        %v2402 = vlaneseq
        %v2403 = vshrl.u32 %v2402, 7
        %v2404 = vsub.s32 0, %v2403
        %v2405 = vrot.slane %v2364, %v2404
        %v2406 = vlaneseq
        %v2407 = vshrl.u32 %v2406, 7
        %v2408 = vsub.s32 0, %v2407
        %v2409 = vrot.slane %v2365, %v2408
        %v2410 = vlaneseq
        %v2411 = vshrl.u32 %v2410, 7
        %v2412 = vsub.s32 0, %v2411
        %v2413 = vrot.slane %v2366, %v2412
        %v2414 = vlaneseq
        %v2415 = vshrl.u32 %v2414, 7
        %v2416 = vsub.s32 0, %v2415
        %v2417 = vrot.slane %v2367, %v2416
        %v2418 = vlaneseq
        %v2419 = vshrl.u32 %v2418, 7
        %v2420 = vsub.s32 0, %v2419
        %v2421 = vrot.slane %v2368, %v2420
        %v2422 = vlaneseq
        %v2423 = vshrl.u32 %v2422, 7
        %v2424 = vsub.s32 0, %v2423
        %v2425 = vrot.slane %v2369, %v2424
        %v2426 = vlaneseq
        %v2427 = vshrl.u32 %v2426, 7
        %v2428 = vsub.s32 0, %v2427
        %v2429 = vrot.slane %v2370, %v2428
        %v2430 = vlaneseq
        %v2431 = vshrl.u32 %v2430, 7
        %v2432 = vsub.s32 0, %v2431
        %v2433 = vrot.slane %v2371, %v2432
        %v2434 = vlaneseq
        %v2435 = vshrl.u32 %v2434, 7
        %v2436 = vsub.s32 0, %v2435
        %v2437 = vrot.slane %v2372, %v2436
        %v2438 = vlaneseq
        %v2439 = vshrl.u32 %v2438, 7
        %v2440 = vsub.s32 0, %v2439
        %v2441 = vrot.slane %v2373, %v2440
        %v2442 = vlaneseq
        %v2443 = vshrl.u32 %v2442, 7
        %v2444 = vsub.s32 0, %v2443
        %v2445 = vrot.slane %v2374, %v2444
        %v2446 = vlaneseq
        %v2447 = vshrl.u32 %v2446, 7
        %v2448 = vsub.s32 0, %v2447
        %v2449 = vrot.slane %v2375, %v2448
        %v2450 = vlaneseq
        %v2451 = vshrl.u32 %v2450, 7
        %v2452 = vsub.s32 0, %v2451
        %v2453 = vrot.slane %v2376, %v2452
        %v2454 = vlaneseq
        %v2455 = vshrl.u32 %v2454, 7
        %v2456 = vsub.s32 0, %v2455
        %v2457 = vrot.slane %v2377, %v2456
        %2458 = vset.pattern.permute.xlu0 0
        %2459 = vperm.xlu0 %2458, %v2397
        %v2460 = vpop.permute.xlu0 %2459
        %2462 = vset.pattern.permute.xlu0 0
        %2463 = vperm.xlu0 %2462, %v2401
        %v2464 = vpop.permute.xlu0 %2463
        %2466 = vset.pattern.permute.xlu0 0
        %2467 = vperm.xlu0 %2466, %v2405
        %v2468 = vpop.permute.xlu0 %2467
        %2470 = vset.pattern.permute.xlu0 0
        %2471 = vperm.xlu0 %2470, %v2409
        %v2472 = vpop.permute.xlu0 %2471
        %2474 = vset.pattern.permute.xlu0 0
        %2475 = vperm.xlu0 %2474, %v2413
        %v2476 = vpop.permute.xlu0 %2475
        %2478 = vset.pattern.permute.xlu0 0
        %2479 = vperm.xlu0 %2478, %v2417
        %v2480 = vpop.permute.xlu0 %2479
        %2482 = vset.pattern.permute.xlu0 0
        %2483 = vperm.xlu0 %2482, %v2421
        %v2484 = vpop.permute.xlu0 %2483
        %2486 = vset.pattern.permute.xlu0 0
        %2487 = vperm.xlu0 %2486, %v2425
        %v2488 = vpop.permute.xlu0 %2487
        %2490 = vset.pattern.permute.xlu0 0
        %2491 = vperm.xlu0 %2490, %v2429
        %v2492 = vpop.permute.xlu0 %2491
        %2494 = vset.pattern.permute.xlu0 0
        %2495 = vperm.xlu0 %2494, %v2433
        %v2496 = vpop.permute.xlu0 %2495
        %2498 = vset.pattern.permute.xlu0 0
        %2499 = vperm.xlu0 %2498, %v2437
        %v2500 = vpop.permute.xlu0 %2499
        %2502 = vset.pattern.permute.xlu0 0
        %2503 = vperm.xlu0 %2502, %v2441
        %v2504 = vpop.permute.xlu0 %2503
        %2506 = vset.pattern.permute.xlu0 0
        %2507 = vperm.xlu0 %2506, %v2445
        %v2508 = vpop.permute.xlu0 %2507
        %2510 = vset.pattern.permute.xlu0 0
        %2511 = vperm.xlu0 %2510, %v2449
        %v2512 = vpop.permute.xlu0 %2511
        %2514 = vset.pattern.permute.xlu0 0
        %2515 = vperm.xlu0 %2514, %v2453
        %v2516 = vpop.permute.xlu0 %2515
        %2518 = vset.pattern.permute.xlu0 0
        %2519 = vperm.xlu0 %2518, %v2457
        %v2520 = vpop.permute.xlu0 %2519
        %v2522 = vadd.f32 %v2330, %v2460
        %v2523 = vadd.f32 %v2331, %v2460
        %v2524 = vadd.f32 %v2332, %v2464
        %v2525 = vadd.f32 %v2333, %v2464
        %v2526 = vadd.f32 %v2334, %v2468
        %v2527 = vadd.f32 %v2335, %v2468
        %v2528 = vadd.f32 %v2336, %v2472
        %v2529 = vadd.f32 %v2337, %v2472
        %v2530 = vadd.f32 %v2338, %v2476
        %v2531 = vadd.f32 %v2339, %v2476
        %v2532 = vadd.f32 %v2340, %v2480
        %v2533 = vadd.f32 %v2341, %v2480
        %v2534 = vadd.f32 %v2342, %v2484
        %v2535 = vadd.f32 %v2343, %v2484
        %v2536 = vadd.f32 %v2344, %v2488
        %v2537 = vadd.f32 %v2345, %v2488
        %v2538 = vadd.f32 %v2346, %v2492
        %v2539 = vadd.f32 %v2347, %v2492
        %v2540 = vadd.f32 %v2348, %v2496
        %v2541 = vadd.f32 %v2349, %v2496
        %v2542 = vadd.f32 %v2350, %v2500
        %v2543 = vadd.f32 %v2351, %v2500
        %v2544 = vadd.f32 %v2352, %v2504
        %v2545 = vadd.f32 %v2353, %v2504
        %v2546 = vadd.f32 %v2354, %v2508
        %v2547 = vadd.f32 %v2355, %v2508
        %v2548 = vadd.f32 %v2356, %v2512
        %v2549 = vadd.f32 %v2357, %v2512
        %v2550 = vadd.f32 %v2358, %v2516
        %v2551 = vadd.f32 %v2359, %v2516
        %v2552 = vadd.f32 %v2360, %v2520
        %v2553 = vadd.f32 %v2361, %v2520
        %2554 = vst [vmem:[%s693] sm:$0xff] %v2522
        %2555 = vst [vmem:[%s693 + $0x8] sm:$0xff] %v2523
        %2556 = vst [vmem:[%s693 + $0x10] sm:$0xff] %v2524
        %2557 = vst [vmem:[%s693 + $0x18] sm:$0xff] %v2525
        %2558 = vst [vmem:[%s693 + $0x20] sm:$0xff] %v2526
        %2559 = vst [vmem:[%s693 + $0x28] sm:$0xff] %v2527
        %2560 = vst [vmem:[%s693 + $0x30] sm:$0xff] %v2528
        %2561 = vst [vmem:[%s693 + $0x38] sm:$0xff] %v2529
        %2562 = vst [vmem:[%s693 + $0x40] sm:$0xff] %v2530
        %2563 = vst [vmem:[%s693 + $0x48] sm:$0xff] %v2531
        %2564 = vst [vmem:[%s693 + $0x50] sm:$0xff] %v2532
        %2565 = vst [vmem:[%s693 + $0x58] sm:$0xff] %v2533
        %2566 = vst [vmem:[%s693 + $0x60] sm:$0xff] %v2534
        %2567 = vst [vmem:[%s693 + $0x68] sm:$0xff] %v2535
        %2568 = vst [vmem:[%s693 + $0x70] sm:$0xff] %v2536
        %2569 = vst [vmem:[%s693 + $0x78] sm:$0xff] %v2537
        %2570 = vst [vmem:[%s693 + $0x80] sm:$0xff] %v2538
        %2571 = vst [vmem:[%s693 + $0x88] sm:$0xff] %v2539
        %2572 = vst [vmem:[%s693 + $0x90] sm:$0xff] %v2540
        %2573 = vst [vmem:[%s693 + $0x98] sm:$0xff] %v2541
        %2574 = vst [vmem:[%s693 + $0xa0] sm:$0xff] %v2542
        %2575 = vst [vmem:[%s693 + $0xa8] sm:$0xff] %v2543
        %2576 = vst [vmem:[%s693 + $0xb0] sm:$0xff] %v2544
        %2577 = vst [vmem:[%s693 + $0xb8] sm:$0xff] %v2545
        %2578 = vst [vmem:[%s693 + $0xc0] sm:$0xff] %v2546
        %2579 = vst [vmem:[%s693 + $0xc8] sm:$0xff] %v2547
        %2580 = vst [vmem:[%s693 + $0xd0] sm:$0xff] %v2548
        %2581 = vst [vmem:[%s693 + $0xd8] sm:$0xff] %v2549
        %2582 = vst [vmem:[%s693 + $0xe0] sm:$0xff] %v2550
        %2583 = vst [vmem:[%s693 + $0xe8] sm:$0xff] %v2551
        %2584 = vst [vmem:[%s693 + $0xf0] sm:$0xff] %v2552
        %2585 = vst [vmem:[%s693 + $0xf8] sm:$0xff] %v2553
        %v2586 = vld [vmem:[#allocation6] sm:$0x1]
        %v2587 = vld [vmem:[#allocation6 + $0x1] sm:$0x1]
        %v2588 = vld [vmem:[#allocation6 + $0x2] sm:$0x1]
        %v2589 = vld [vmem:[#allocation6 + $0x3] sm:$0x1]
        %v2590 = vld [vmem:[#allocation6 + $0x4] sm:$0x1]
        %v2591 = vld [vmem:[#allocation6 + $0x5] sm:$0x1]
        %v2592 = vld [vmem:[#allocation6 + $0x6] sm:$0x1]
        %v2593 = vld [vmem:[#allocation6 + $0x7] sm:$0x1]
        %v2594 = vld [vmem:[#allocation6 + $0x8] sm:$0x1]
        %v2595 = vld [vmem:[#allocation6 + $0x9] sm:$0x1]
        %v2596 = vld [vmem:[#allocation6 + $0xa] sm:$0x1]
        %v2597 = vld [vmem:[#allocation6 + $0xb] sm:$0x1]
        %v2598 = vld [vmem:[#allocation6 + $0xc] sm:$0x1]
        %v2599 = vld [vmem:[#allocation6 + $0xd] sm:$0x1]
        %v2600 = vld [vmem:[#allocation6 + $0xe] sm:$0x1]
        %v2601 = vld [vmem:[#allocation6 + $0xf] sm:$0x1]
        %v2618 = vlaneseq
        %v2619 = vshrl.u32 %v2618, 7
        %v2620 = vsub.s32 0, %v2619
        %v2621 = vrot.slane %v2586, %v2620
        %v2622 = vlaneseq
        %v2623 = vshrl.u32 %v2622, 7
        %v2624 = vsub.s32 0, %v2623
        %v2625 = vrot.slane %v2587, %v2624
        %v2626 = vlaneseq
        %v2627 = vshrl.u32 %v2626, 7
        %v2628 = vsub.s32 0, %v2627
        %v2629 = vrot.slane %v2588, %v2628
        %v2630 = vlaneseq
        %v2631 = vshrl.u32 %v2630, 7
        %v2632 = vsub.s32 0, %v2631
        %v2633 = vrot.slane %v2589, %v2632
        %v2634 = vlaneseq
        %v2635 = vshrl.u32 %v2634, 7
        %v2636 = vsub.s32 0, %v2635
        %v2637 = vrot.slane %v2590, %v2636
        %v2638 = vlaneseq
        %v2639 = vshrl.u32 %v2638, 7
        %v2640 = vsub.s32 0, %v2639
        %v2641 = vrot.slane %v2591, %v2640
        %v2642 = vlaneseq
        %v2643 = vshrl.u32 %v2642, 7
        %v2644 = vsub.s32 0, %v2643
        %v2645 = vrot.slane %v2592, %v2644
        %v2646 = vlaneseq
        %v2647 = vshrl.u32 %v2646, 7
        %v2648 = vsub.s32 0, %v2647
        %v2649 = vrot.slane %v2593, %v2648
        %v2650 = vlaneseq
        %v2651 = vshrl.u32 %v2650, 7
        %v2652 = vsub.s32 0, %v2651
        %v2653 = vrot.slane %v2594, %v2652
        %v2654 = vlaneseq
        %v2655 = vshrl.u32 %v2654, 7
        %v2656 = vsub.s32 0, %v2655
        %v2657 = vrot.slane %v2595, %v2656
        %v2658 = vlaneseq
        %v2659 = vshrl.u32 %v2658, 7
        %v2660 = vsub.s32 0, %v2659
        %v2661 = vrot.slane %v2596, %v2660
        %v2662 = vlaneseq
        %v2663 = vshrl.u32 %v2662, 7
        %v2664 = vsub.s32 0, %v2663
        %v2665 = vrot.slane %v2597, %v2664
        %v2666 = vlaneseq
        %v2667 = vshrl.u32 %v2666, 7
        %v2668 = vsub.s32 0, %v2667
        %v2669 = vrot.slane %v2598, %v2668
        %v2670 = vlaneseq
        %v2671 = vshrl.u32 %v2670, 7
        %v2672 = vsub.s32 0, %v2671
        %v2673 = vrot.slane %v2599, %v2672
        %v2674 = vlaneseq
        %v2675 = vshrl.u32 %v2674, 7
        %v2676 = vsub.s32 0, %v2675
        %v2677 = vrot.slane %v2600, %v2676
        %v2678 = vlaneseq
        %v2679 = vshrl.u32 %v2678, 7
        %v2680 = vsub.s32 0, %v2679
        %v2681 = vrot.slane %v2601, %v2680
        %2682 = vset.pattern.permute.xlu0 0
        %2683 = vperm.xlu0 %2682, %v2621
        %v2684 = vpop.permute.xlu0 %2683
        %2686 = vset.pattern.permute.xlu0 0
        %2687 = vperm.xlu0 %2686, %v2625
        %v2688 = vpop.permute.xlu0 %2687
        %2690 = vset.pattern.permute.xlu0 0
        %2691 = vperm.xlu0 %2690, %v2629
        %v2692 = vpop.permute.xlu0 %2691
        %2694 = vset.pattern.permute.xlu0 0
        %2695 = vperm.xlu0 %2694, %v2633
        %v2696 = vpop.permute.xlu0 %2695
        %2698 = vset.pattern.permute.xlu0 0
        %2699 = vperm.xlu0 %2698, %v2637
        %v2700 = vpop.permute.xlu0 %2699
        %2702 = vset.pattern.permute.xlu0 0
        %2703 = vperm.xlu0 %2702, %v2641
        %v2704 = vpop.permute.xlu0 %2703
        %2706 = vset.pattern.permute.xlu0 0
        %2707 = vperm.xlu0 %2706, %v2645
        %v2708 = vpop.permute.xlu0 %2707
        %2710 = vset.pattern.permute.xlu0 0
        %2711 = vperm.xlu0 %2710, %v2649
        %v2712 = vpop.permute.xlu0 %2711
        %2714 = vset.pattern.permute.xlu0 0
        %2715 = vperm.xlu0 %2714, %v2653
        %v2716 = vpop.permute.xlu0 %2715
        %2718 = vset.pattern.permute.xlu0 0
        %2719 = vperm.xlu0 %2718, %v2657
        %v2720 = vpop.permute.xlu0 %2719
        %2722 = vset.pattern.permute.xlu0 0
        %2723 = vperm.xlu0 %2722, %v2661
        %v2724 = vpop.permute.xlu0 %2723
        %2726 = vset.pattern.permute.xlu0 0
        %2727 = vperm.xlu0 %2726, %v2665
        %v2728 = vpop.permute.xlu0 %2727
        %2730 = vset.pattern.permute.xlu0 0
        %2731 = vperm.xlu0 %2730, %v2669
        %v2732 = vpop.permute.xlu0 %2731
        %2734 = vset.pattern.permute.xlu0 0
        %2735 = vperm.xlu0 %2734, %v2673
        %v2736 = vpop.permute.xlu0 %2735
        %2738 = vset.pattern.permute.xlu0 0
        %2739 = vperm.xlu0 %2738, %v2677
        %v2740 = vpop.permute.xlu0 %2739
        %2742 = vset.pattern.permute.xlu0 0
        %2743 = vperm.xlu0 %2742, %v2681
        %v2744 = vpop.permute.xlu0 %2743
        %v2746 = vmul.f32 %v1626, %v2684
        %v2747 = vmul.f32 %v1627, %v2684
        %v2748 = vmul.f32 %v1628, %v2688
        %v2749 = vmul.f32 %v1629, %v2688
        %v2750 = vmul.f32 %v1630, %v2692
        %v2751 = vmul.f32 %v1631, %v2692
        %v2752 = vmul.f32 %v1632, %v2696
        %v2753 = vmul.f32 %v1633, %v2696
        %v2754 = vmul.f32 %v1634, %v2700
        %v2755 = vmul.f32 %v1635, %v2700
        %v2756 = vmul.f32 %v1636, %v2704
        %v2757 = vmul.f32 %v1637, %v2704
        %v2758 = vmul.f32 %v1638, %v2708
        %v2759 = vmul.f32 %v1639, %v2708
        %v2760 = vmul.f32 %v1640, %v2712
        %v2761 = vmul.f32 %v1641, %v2712
        %v2762 = vmul.f32 %v1642, %v2716
        %v2763 = vmul.f32 %v1643, %v2716
        %v2764 = vmul.f32 %v1644, %v2720
        %v2765 = vmul.f32 %v1645, %v2720
        %v2766 = vmul.f32 %v1646, %v2724
        %v2767 = vmul.f32 %v1647, %v2724
        %v2768 = vmul.f32 %v1648, %v2728
        %v2769 = vmul.f32 %v1649, %v2728
        %v2770 = vmul.f32 %v1650, %v2732
        %v2771 = vmul.f32 %v1651, %v2732
        %v2772 = vmul.f32 %v1652, %v2736
        %v2773 = vmul.f32 %v1653, %v2736
        %v2774 = vmul.f32 %v1654, %v2740
        %v2775 = vmul.f32 %v1655, %v2740
        %v2776 = vmul.f32 %v1656, %v2744
        %v2777 = vmul.f32 %v1657, %v2744
        %v2778 = vld [vmem:[#allocation7] sm:$0x1]
        %v2779 = vld [vmem:[#allocation7 + $0x1] sm:$0x1]
        %v2780 = vld [vmem:[#allocation7 + $0x2] sm:$0x1]
        %v2781 = vld [vmem:[#allocation7 + $0x3] sm:$0x1]
        %v2782 = vld [vmem:[#allocation7 + $0x4] sm:$0x1]
        %v2783 = vld [vmem:[#allocation7 + $0x5] sm:$0x1]
        %v2784 = vld [vmem:[#allocation7 + $0x6] sm:$0x1]
        %v2785 = vld [vmem:[#allocation7 + $0x7] sm:$0x1]
        %v2786 = vld [vmem:[#allocation7 + $0x8] sm:$0x1]
        %v2787 = vld [vmem:[#allocation7 + $0x9] sm:$0x1]
        %v2788 = vld [vmem:[#allocation7 + $0xa] sm:$0x1]
        %v2789 = vld [vmem:[#allocation7 + $0xb] sm:$0x1]
        %v2790 = vld [vmem:[#allocation7 + $0xc] sm:$0x1]
        %v2791 = vld [vmem:[#allocation7 + $0xd] sm:$0x1]
        %v2792 = vld [vmem:[#allocation7 + $0xe] sm:$0x1]
        %v2793 = vld [vmem:[#allocation7 + $0xf] sm:$0x1]
        %v2810 = vlaneseq
        %v2811 = vshrl.u32 %v2810, 7
        %v2812 = vsub.s32 0, %v2811
        %v2813 = vrot.slane %v2778, %v2812
        %v2814 = vlaneseq
        %v2815 = vshrl.u32 %v2814, 7
        %v2816 = vsub.s32 0, %v2815
        %v2817 = vrot.slane %v2779, %v2816
        %v2818 = vlaneseq
        %v2819 = vshrl.u32 %v2818, 7
        %v2820 = vsub.s32 0, %v2819
        %v2821 = vrot.slane %v2780, %v2820
        %v2822 = vlaneseq
        %v2823 = vshrl.u32 %v2822, 7
        %v2824 = vsub.s32 0, %v2823
        %v2825 = vrot.slane %v2781, %v2824
        %v2826 = vlaneseq
        %v2827 = vshrl.u32 %v2826, 7
        %v2828 = vsub.s32 0, %v2827
        %v2829 = vrot.slane %v2782, %v2828
        %v2830 = vlaneseq
        %v2831 = vshrl.u32 %v2830, 7
        %v2832 = vsub.s32 0, %v2831
        %v2833 = vrot.slane %v2783, %v2832
        %v2834 = vlaneseq
        %v2835 = vshrl.u32 %v2834, 7
        %v2836 = vsub.s32 0, %v2835
        %v2837 = vrot.slane %v2784, %v2836
        %v2838 = vlaneseq
        %v2839 = vshrl.u32 %v2838, 7
        %v2840 = vsub.s32 0, %v2839
        %v2841 = vrot.slane %v2785, %v2840
        %v2842 = vlaneseq
        %v2843 = vshrl.u32 %v2842, 7
        %v2844 = vsub.s32 0, %v2843
        %v2845 = vrot.slane %v2786, %v2844
        %v2846 = vlaneseq
        %v2847 = vshrl.u32 %v2846, 7
        %v2848 = vsub.s32 0, %v2847
        %v2849 = vrot.slane %v2787, %v2848
        %v2850 = vlaneseq
        %v2851 = vshrl.u32 %v2850, 7
        %v2852 = vsub.s32 0, %v2851
        %v2853 = vrot.slane %v2788, %v2852
        %v2854 = vlaneseq
        %v2855 = vshrl.u32 %v2854, 7
        %v2856 = vsub.s32 0, %v2855
        %v2857 = vrot.slane %v2789, %v2856
        %v2858 = vlaneseq
        %v2859 = vshrl.u32 %v2858, 7
        %v2860 = vsub.s32 0, %v2859
        %v2861 = vrot.slane %v2790, %v2860
        %v2862 = vlaneseq
        %v2863 = vshrl.u32 %v2862, 7
        %v2864 = vsub.s32 0, %v2863
        %v2865 = vrot.slane %v2791, %v2864
        %v2866 = vlaneseq
        %v2867 = vshrl.u32 %v2866, 7
        %v2868 = vsub.s32 0, %v2867
        %v2869 = vrot.slane %v2792, %v2868
        %v2870 = vlaneseq
        %v2871 = vshrl.u32 %v2870, 7
        %v2872 = vsub.s32 0, %v2871
        %v2873 = vrot.slane %v2793, %v2872
        %2874 = vset.pattern.permute.xlu0 0
        %2875 = vperm.xlu0 %2874, %v2813
        %v2876 = vpop.permute.xlu0 %2875
        %2878 = vset.pattern.permute.xlu0 0
        %2879 = vperm.xlu0 %2878, %v2817
        %v2880 = vpop.permute.xlu0 %2879
        %2882 = vset.pattern.permute.xlu0 0
        %2883 = vperm.xlu0 %2882, %v2821
        %v2884 = vpop.permute.xlu0 %2883
        %2886 = vset.pattern.permute.xlu0 0
        %2887 = vperm.xlu0 %2886, %v2825
        %v2888 = vpop.permute.xlu0 %2887
        %2890 = vset.pattern.permute.xlu0 0
        %2891 = vperm.xlu0 %2890, %v2829
        %v2892 = vpop.permute.xlu0 %2891
        %2894 = vset.pattern.permute.xlu0 0
        %2895 = vperm.xlu0 %2894, %v2833
        %v2896 = vpop.permute.xlu0 %2895
        %2898 = vset.pattern.permute.xlu0 0
        %2899 = vperm.xlu0 %2898, %v2837
        %v2900 = vpop.permute.xlu0 %2899
        %2902 = vset.pattern.permute.xlu0 0
        %2903 = vperm.xlu0 %2902, %v2841
        %v2904 = vpop.permute.xlu0 %2903
        %2906 = vset.pattern.permute.xlu0 0
        %2907 = vperm.xlu0 %2906, %v2845
        %v2908 = vpop.permute.xlu0 %2907
        %2910 = vset.pattern.permute.xlu0 0
        %2911 = vperm.xlu0 %2910, %v2849
        %v2912 = vpop.permute.xlu0 %2911
        %2914 = vset.pattern.permute.xlu0 0
        %2915 = vperm.xlu0 %2914, %v2853
        %v2916 = vpop.permute.xlu0 %2915
        %2918 = vset.pattern.permute.xlu0 0
        %2919 = vperm.xlu0 %2918, %v2857
        %v2920 = vpop.permute.xlu0 %2919
        %2922 = vset.pattern.permute.xlu0 0
        %2923 = vperm.xlu0 %2922, %v2861
        %v2924 = vpop.permute.xlu0 %2923
        %2926 = vset.pattern.permute.xlu0 0
        %2927 = vperm.xlu0 %2926, %v2865
        %v2928 = vpop.permute.xlu0 %2927
        %2930 = vset.pattern.permute.xlu0 0
        %2931 = vperm.xlu0 %2930, %v2869
        %v2932 = vpop.permute.xlu0 %2931
        %2934 = vset.pattern.permute.xlu0 0
        %2935 = vperm.xlu0 %2934, %v2873
        %v2936 = vpop.permute.xlu0 %2935
        %v2938 = vadd.f32 %v2746, %v2876
        %v2939 = vadd.f32 %v2747, %v2876
        %v2940 = vadd.f32 %v2748, %v2880
        %v2941 = vadd.f32 %v2749, %v2880
        %v2942 = vadd.f32 %v2750, %v2884
        %v2943 = vadd.f32 %v2751, %v2884
        %v2944 = vadd.f32 %v2752, %v2888
        %v2945 = vadd.f32 %v2753, %v2888
        %v2946 = vadd.f32 %v2754, %v2892
        %v2947 = vadd.f32 %v2755, %v2892
        %v2948 = vadd.f32 %v2756, %v2896
        %v2949 = vadd.f32 %v2757, %v2896
        %v2950 = vadd.f32 %v2758, %v2900
        %v2951 = vadd.f32 %v2759, %v2900
        %v2952 = vadd.f32 %v2760, %v2904
        %v2953 = vadd.f32 %v2761, %v2904
        %v2954 = vadd.f32 %v2762, %v2908
        %v2955 = vadd.f32 %v2763, %v2908
        %v2956 = vadd.f32 %v2764, %v2912
        %v2957 = vadd.f32 %v2765, %v2912
        %v2958 = vadd.f32 %v2766, %v2916
        %v2959 = vadd.f32 %v2767, %v2916
        %v2960 = vadd.f32 %v2768, %v2920
        %v2961 = vadd.f32 %v2769, %v2920
        %v2962 = vadd.f32 %v2770, %v2924
        %v2963 = vadd.f32 %v2771, %v2924
        %v2964 = vadd.f32 %v2772, %v2928
        %v2965 = vadd.f32 %v2773, %v2928
        %v2966 = vadd.f32 %v2774, %v2932
        %v2967 = vadd.f32 %v2775, %v2932
        %v2968 = vadd.f32 %v2776, %v2936
        %v2969 = vadd.f32 %v2777, %v2936
        %2970 = vst [vmem:[%s700] sm:$0xff] %v2938
        %2971 = vst [vmem:[%s700 + $0x8] sm:$0xff] %v2939
        %2972 = vst [vmem:[%s700 + $0x10] sm:$0xff] %v2940
        %2973 = vst [vmem:[%s700 + $0x18] sm:$0xff] %v2941
        %2974 = vst [vmem:[%s700 + $0x20] sm:$0xff] %v2942
        %2975 = vst [vmem:[%s700 + $0x28] sm:$0xff] %v2943
        %2976 = vst [vmem:[%s700 + $0x30] sm:$0xff] %v2944
        %2977 = vst [vmem:[%s700 + $0x38] sm:$0xff] %v2945
        %2978 = vst [vmem:[%s700 + $0x40] sm:$0xff] %v2946
        %2979 = vst [vmem:[%s700 + $0x48] sm:$0xff] %v2947
        %2980 = vst [vmem:[%s700 + $0x50] sm:$0xff] %v2948
        %2981 = vst [vmem:[%s700 + $0x58] sm:$0xff] %v2949
        %2982 = vst [vmem:[%s700 + $0x60] sm:$0xff] %v2950
        %2983 = vst [vmem:[%s700 + $0x68] sm:$0xff] %v2951
        %2984 = vst [vmem:[%s700 + $0x70] sm:$0xff] %v2952
        %2985 = vst [vmem:[%s700 + $0x78] sm:$0xff] %v2953
        %2986 = vst [vmem:[%s700 + $0x80] sm:$0xff] %v2954
        %2987 = vst [vmem:[%s700 + $0x88] sm:$0xff] %v2955
        %2988 = vst [vmem:[%s700 + $0x90] sm:$0xff] %v2956
        %2989 = vst [vmem:[%s700 + $0x98] sm:$0xff] %v2957
        %2990 = vst [vmem:[%s700 + $0xa0] sm:$0xff] %v2958
        %2991 = vst [vmem:[%s700 + $0xa8] sm:$0xff] %v2959
        %2992 = vst [vmem:[%s700 + $0xb0] sm:$0xff] %v2960
        %2993 = vst [vmem:[%s700 + $0xb8] sm:$0xff] %v2961
        %2994 = vst [vmem:[%s700 + $0xc0] sm:$0xff] %v2962
        %2995 = vst [vmem:[%s700 + $0xc8] sm:$0xff] %v2963
        %2996 = vst [vmem:[%s700 + $0xd0] sm:$0xff] %v2964
        %2997 = vst [vmem:[%s700 + $0xd8] sm:$0xff] %v2965
        %2998 = vst [vmem:[%s700 + $0xe0] sm:$0xff] %v2966
        %2999 = vst [vmem:[%s700 + $0xe8] sm:$0xff] %v2967
        %3000 = vst [vmem:[%s700 + $0xf0] sm:$0xff] %v2968
        %3001 = vst [vmem:[%s700 + $0xf8] sm:$0xff] %v2969
        %v3002 = vadd.f32 %v1626, %v1627
        %3003 = vadd.xlane.f32.xlu0 %v3002
        %v3004 = vpop.xlane.xlu0 %3003
        %v3005 = vadd.f32 %v1628, %v1629
        %3006 = vadd.xlane.f32.xlu0 %v3005
        %v3007 = vpop.xlane.xlu0 %3006
        %v3008 = vadd.f32 %v1630, %v1631
        %3009 = vadd.xlane.f32.xlu0 %v3008
        %v3010 = vpop.xlane.xlu0 %3009
        %v3011 = vadd.f32 %v1632, %v1633
        %3012 = vadd.xlane.f32.xlu0 %v3011
        %v3013 = vpop.xlane.xlu0 %3012
        %v3014 = vadd.f32 %v1634, %v1635
        %3015 = vadd.xlane.f32.xlu0 %v3014
        %v3016 = vpop.xlane.xlu0 %3015
        %v3017 = vadd.f32 %v1636, %v1637
        %3018 = vadd.xlane.f32.xlu0 %v3017
        %v3019 = vpop.xlane.xlu0 %3018
        %v3020 = vadd.f32 %v1638, %v1639
        %3021 = vadd.xlane.f32.xlu0 %v3020
        %v3022 = vpop.xlane.xlu0 %3021
        %v3023 = vadd.f32 %v1640, %v1641
        %3024 = vadd.xlane.f32.xlu0 %v3023
        %v3025 = vpop.xlane.xlu0 %3024
        %v3026 = vadd.f32 %v1642, %v1643
        %3027 = vadd.xlane.f32.xlu0 %v3026
        %v3028 = vpop.xlane.xlu0 %3027
        %v3029 = vadd.f32 %v1644, %v1645
        %3030 = vadd.xlane.f32.xlu0 %v3029
        %v3031 = vpop.xlane.xlu0 %3030
        %v3032 = vadd.f32 %v1646, %v1647
        %3033 = vadd.xlane.f32.xlu0 %v3032
        %v3034 = vpop.xlane.xlu0 %3033
        %v3035 = vadd.f32 %v1648, %v1649
        %3036 = vadd.xlane.f32.xlu0 %v3035
        %v3037 = vpop.xlane.xlu0 %3036
        %v3038 = vadd.f32 %v1650, %v1651
        %3039 = vadd.xlane.f32.xlu0 %v3038
        %v3040 = vpop.xlane.xlu0 %3039
        %v3041 = vadd.f32 %v1652, %v1653
        %3042 = vadd.xlane.f32.xlu0 %v3041
        %v3043 = vpop.xlane.xlu0 %3042
        %v3044 = vadd.f32 %v1654, %v1655
        %3045 = vadd.xlane.f32.xlu0 %v3044
        %v3046 = vpop.xlane.xlu0 %3045
        %v3047 = vadd.f32 %v1656, %v1657
        %3048 = vadd.xlane.f32.xlu0 %v3047
        %v3049 = vpop.xlane.xlu0 %3048
        %v3050 = vmul.f32 %v1626, %v1626
        %v3051 = vmul.f32 %v1627, %v1627
        %v3052 = vmul.f32 %v1628, %v1628
        %v3053 = vmul.f32 %v1629, %v1629
        %v3054 = vmul.f32 %v1630, %v1630
        %v3055 = vmul.f32 %v1631, %v1631
        %v3056 = vmul.f32 %v1632, %v1632
        %v3057 = vmul.f32 %v1633, %v1633
        %v3058 = vmul.f32 %v1634, %v1634
        %v3059 = vmul.f32 %v1635, %v1635
        %v3060 = vmul.f32 %v1636, %v1636
        %v3061 = vmul.f32 %v1637, %v1637
        %v3062 = vmul.f32 %v1638, %v1638
        %v3063 = vmul.f32 %v1639, %v1639
        %v3064 = vmul.f32 %v1640, %v1640
        %v3065 = vmul.f32 %v1641, %v1641
        %v3066 = vmul.f32 %v1642, %v1642
        %v3067 = vmul.f32 %v1643, %v1643
        %v3068 = vmul.f32 %v1644, %v1644
        %v3069 = vmul.f32 %v1645, %v1645
        %v3070 = vmul.f32 %v1646, %v1646
        %v3071 = vmul.f32 %v1647, %v1647
        %v3072 = vmul.f32 %v1648, %v1648
        %v3073 = vmul.f32 %v1649, %v1649
        %v3074 = vmul.f32 %v1650, %v1650
        %v3075 = vmul.f32 %v1651, %v1651
        %v3076 = vmul.f32 %v1652, %v1652
        %v3077 = vmul.f32 %v1653, %v1653
        %v3078 = vmul.f32 %v1654, %v1654
        %v3079 = vmul.f32 %v1655, %v1655
        %v3080 = vmul.f32 %v1656, %v1656
        %v3081 = vmul.f32 %v1657, %v1657
        %v3082 = vadd.f32 %v3050, %v3051
        %3083 = vadd.xlane.f32.xlu0 %v3082
        %v3084 = vpop.xlane.xlu0 %3083
        %v3085 = vadd.f32 %v3052, %v3053
        %3086 = vadd.xlane.f32.xlu0 %v3085
        %v3087 = vpop.xlane.xlu0 %3086
        %v3088 = vadd.f32 %v3054, %v3055
        %3089 = vadd.xlane.f32.xlu0 %v3088
        %v3090 = vpop.xlane.xlu0 %3089
        %v3091 = vadd.f32 %v3056, %v3057
        %3092 = vadd.xlane.f32.xlu0 %v3091
        %v3093 = vpop.xlane.xlu0 %3092
        %v3094 = vadd.f32 %v3058, %v3059
        %3095 = vadd.xlane.f32.xlu0 %v3094
        %v3096 = vpop.xlane.xlu0 %3095
        %v3097 = vadd.f32 %v3060, %v3061
        %3098 = vadd.xlane.f32.xlu0 %v3097
        %v3099 = vpop.xlane.xlu0 %3098
        %v3100 = vadd.f32 %v3062, %v3063
        %3101 = vadd.xlane.f32.xlu0 %v3100
        %v3102 = vpop.xlane.xlu0 %3101
        %v3103 = vadd.f32 %v3064, %v3065
        %3104 = vadd.xlane.f32.xlu0 %v3103
        %v3105 = vpop.xlane.xlu0 %3104
        %v3106 = vadd.f32 %v3066, %v3067
        %3107 = vadd.xlane.f32.xlu0 %v3106
        %v3108 = vpop.xlane.xlu0 %3107
        %v3109 = vadd.f32 %v3068, %v3069
        %3110 = vadd.xlane.f32.xlu0 %v3109
        %v3111 = vpop.xlane.xlu0 %3110
        %v3112 = vadd.f32 %v3070, %v3071
        %3113 = vadd.xlane.f32.xlu0 %v3112
        %v3114 = vpop.xlane.xlu0 %3113
        %v3115 = vadd.f32 %v3072, %v3073
        %3116 = vadd.xlane.f32.xlu0 %v3115
        %v3117 = vpop.xlane.xlu0 %3116
        %v3118 = vadd.f32 %v3074, %v3075
        %3119 = vadd.xlane.f32.xlu0 %v3118
        %v3120 = vpop.xlane.xlu0 %3119
        %v3121 = vadd.f32 %v3076, %v3077
        %3122 = vadd.xlane.f32.xlu0 %v3121
        %v3123 = vpop.xlane.xlu0 %3122
        %v3124 = vadd.f32 %v3078, %v3079
        %3125 = vadd.xlane.f32.xlu0 %v3124
        %v3126 = vpop.xlane.xlu0 %3125
        %v3127 = vadd.f32 %v3080, %v3081
        %3128 = vadd.xlane.f32.xlu0 %v3127
        %v3129 = vpop.xlane.xlu0 %3128
        %v3130 = vmul.f32 %v3004, 0.00390625
        %v3131 = vmul.f32 %v3007, 0.00390625
        %v3132 = vmul.f32 %v3010, 0.00390625
        %v3133 = vmul.f32 %v3013, 0.00390625
        %v3134 = vmul.f32 %v3016, 0.00390625
        %v3135 = vmul.f32 %v3019, 0.00390625
        %v3136 = vmul.f32 %v3022, 0.00390625
        %v3137 = vmul.f32 %v3025, 0.00390625
        %v3138 = vmul.f32 %v3028, 0.00390625
        %v3139 = vmul.f32 %v3031, 0.00390625
        %v3140 = vmul.f32 %v3034, 0.00390625
        %v3141 = vmul.f32 %v3037, 0.00390625
        %v3142 = vmul.f32 %v3040, 0.00390625
        %v3143 = vmul.f32 %v3043, 0.00390625
        %v3144 = vmul.f32 %v3046, 0.00390625
        %v3145 = vmul.f32 %v3049, 0.00390625
        %v3146 = vmul.f32 %v3084, 0.00390625
        %v3147 = vmul.f32 %v3087, 0.00390625
        %v3148 = vmul.f32 %v3090, 0.00390625
        %v3149 = vmul.f32 %v3093, 0.00390625
        %v3150 = vmul.f32 %v3096, 0.00390625
        %v3151 = vmul.f32 %v3099, 0.00390625
        %v3152 = vmul.f32 %v3102, 0.00390625
        %v3153 = vmul.f32 %v3105, 0.00390625
        %v3154 = vmul.f32 %v3108, 0.00390625
        %v3155 = vmul.f32 %v3111, 0.00390625
        %v3156 = vmul.f32 %v3114, 0.00390625
        %v3157 = vmul.f32 %v3117, 0.00390625
        %v3158 = vmul.f32 %v3120, 0.00390625
        %v3159 = vmul.f32 %v3123, 0.00390625
        %v3160 = vmul.f32 %v3126, 0.00390625
        %v3161 = vmul.f32 %v3129, 0.00390625
        %v3162 = vmul.f32 %v3130, %v3130
        %v3163 = vmul.f32 %v3131, %v3131
        %v3164 = vmul.f32 %v3132, %v3132
        %v3165 = vmul.f32 %v3133, %v3133
        %v3166 = vmul.f32 %v3134, %v3134
        %v3167 = vmul.f32 %v3135, %v3135
        %v3168 = vmul.f32 %v3136, %v3136
        %v3169 = vmul.f32 %v3137, %v3137
        %v3170 = vmul.f32 %v3138, %v3138
        %v3171 = vmul.f32 %v3139, %v3139
        %v3172 = vmul.f32 %v3140, %v3140
        %v3173 = vmul.f32 %v3141, %v3141
        %v3174 = vmul.f32 %v3142, %v3142
        %v3175 = vmul.f32 %v3143, %v3143
        %v3176 = vmul.f32 %v3144, %v3144
        %v3177 = vmul.f32 %v3145, %v3145
        %v3178 = vsub.f32 %v3146, %v3162
        %v3179 = vsub.f32 %v3147, %v3163
        %v3180 = vsub.f32 %v3148, %v3164
        %v3181 = vsub.f32 %v3149, %v3165
        %v3182 = vsub.f32 %v3150, %v3166
        %v3183 = vsub.f32 %v3151, %v3167
        %v3184 = vsub.f32 %v3152, %v3168
        %v3185 = vsub.f32 %v3153, %v3169
        %v3186 = vsub.f32 %v3154, %v3170
        %v3187 = vsub.f32 %v3155, %v3171
        %v3188 = vsub.f32 %v3156, %v3172
        %v3189 = vsub.f32 %v3157, %v3173
        %v3190 = vsub.f32 %v3158, %v3174
        %v3191 = vsub.f32 %v3159, %v3175
        %v3192 = vsub.f32 %v3160, %v3176
        %v3193 = vsub.f32 %v3161, %v3177
        %v3194 = vmax.f32 %v3178, 0.0
        %v3195 = vmax.f32 %v3179, 0.0
        %v3196 = vmax.f32 %v3180, 0.0
        %v3197 = vmax.f32 %v3181, 0.0
        %v3198 = vmax.f32 %v3182, 0.0
        %v3199 = vmax.f32 %v3183, 0.0
        %v3200 = vmax.f32 %v3184, 0.0
        %v3201 = vmax.f32 %v3185, 0.0
        %v3202 = vmax.f32 %v3186, 0.0
        %v3203 = vmax.f32 %v3187, 0.0
        %v3204 = vmax.f32 %v3188, 0.0
        %v3205 = vmax.f32 %v3189, 0.0
        %v3206 = vmax.f32 %v3190, 0.0
        %v3207 = vmax.f32 %v3191, 0.0
        %v3208 = vmax.f32 %v3192, 0.0
        %v3209 = vmax.f32 %v3193, 0.0
        %v3210 = vadd.f32 %v3194, 1e-05
        %v3211 = vadd.f32 %v3195, 1e-05
        %v3212 = vadd.f32 %v3196, 1e-05
        %v3213 = vadd.f32 %v3197, 1e-05
        %v3214 = vadd.f32 %v3198, 1e-05
        %v3215 = vadd.f32 %v3199, 1e-05
        %v3216 = vadd.f32 %v3200, 1e-05
        %v3217 = vadd.f32 %v3201, 1e-05
        %v3218 = vadd.f32 %v3202, 1e-05
        %v3219 = vadd.f32 %v3203, 1e-05
        %v3220 = vadd.f32 %v3204, 1e-05
        %v3221 = vadd.f32 %v3205, 1e-05
        %v3222 = vadd.f32 %v3206, 1e-05
        %v3223 = vadd.f32 %v3207, 1e-05
        %v3224 = vadd.f32 %v3208, 1e-05
        %v3225 = vadd.f32 %v3209, 1e-05
        %v3226 = vrsqrt.pop %v3210
        %v3227 = vrsqrt.pop %v3211
        %v3228 = vrsqrt.pop %v3212
        %v3229 = vrsqrt.pop %v3213
        %v3230 = vrsqrt.pop %v3214
        %v3231 = vrsqrt.pop %v3215
        %v3232 = vrsqrt.pop %v3216
        %v3233 = vrsqrt.pop %v3217
        %v3234 = vrsqrt.pop %v3218
        %v3235 = vrsqrt.pop %v3219
        %v3236 = vrsqrt.pop %v3220
        %v3237 = vrsqrt.pop %v3221
        %v3238 = vrsqrt.pop %v3222
        %v3239 = vrsqrt.pop %v3223
        %v3240 = vrsqrt.pop %v3224
        %v3241 = vrsqrt.pop %v3225
        %v3242 = vsub.f32 %v1626, %v3130
        %v3243 = vsub.f32 %v1627, %v3130
        %v3244 = vsub.f32 %v1628, %v3131
        %v3245 = vsub.f32 %v1629, %v3131
        %v3246 = vsub.f32 %v1630, %v3132
        %v3247 = vsub.f32 %v1631, %v3132
        %v3248 = vsub.f32 %v1632, %v3133
        %v3249 = vsub.f32 %v1633, %v3133
        %v3250 = vsub.f32 %v1634, %v3134
        %v3251 = vsub.f32 %v1635, %v3134
        %v3252 = vsub.f32 %v1636, %v3135
        %v3253 = vsub.f32 %v1637, %v3135
        %v3254 = vsub.f32 %v1638, %v3136
        %v3255 = vsub.f32 %v1639, %v3136
        %v3256 = vsub.f32 %v1640, %v3137
        %v3257 = vsub.f32 %v1641, %v3137
        %v3258 = vsub.f32 %v1642, %v3138
        %v3259 = vsub.f32 %v1643, %v3138
        %v3260 = vsub.f32 %v1644, %v3139
        %v3261 = vsub.f32 %v1645, %v3139
        %v3262 = vsub.f32 %v1646, %v3140
        %v3263 = vsub.f32 %v1647, %v3140
        %v3264 = vsub.f32 %v1648, %v3141
        %v3265 = vsub.f32 %v1649, %v3141
        %v3266 = vsub.f32 %v1650, %v3142
        %v3267 = vsub.f32 %v1651, %v3142
        %v3268 = vsub.f32 %v1652, %v3143
        %v3269 = vsub.f32 %v1653, %v3143
        %v3270 = vsub.f32 %v1654, %v3144
        %v3271 = vsub.f32 %v1655, %v3144
        %v3272 = vsub.f32 %v1656, %v3145
        %v3273 = vsub.f32 %v1657, %v3145
        %v3274 = vmul.f32 %v3242, %v3226
        %v3275 = vmul.f32 %v3243, %v3226
        %v3276 = vmul.f32 %v3244, %v3227
        %v3277 = vmul.f32 %v3245, %v3227
        %v3278 = vmul.f32 %v3246, %v3228
        %v3279 = vmul.f32 %v3247, %v3228
        %v3280 = vmul.f32 %v3248, %v3229
        %v3281 = vmul.f32 %v3249, %v3229
        %v3282 = vmul.f32 %v3250, %v3230
        %v3283 = vmul.f32 %v3251, %v3230
        %v3284 = vmul.f32 %v3252, %v3231
        %v3285 = vmul.f32 %v3253, %v3231
        %v3286 = vmul.f32 %v3254, %v3232
        %v3287 = vmul.f32 %v3255, %v3232
        %v3288 = vmul.f32 %v3256, %v3233
        %v3289 = vmul.f32 %v3257, %v3233
        %v3290 = vmul.f32 %v3258, %v3234
        %v3291 = vmul.f32 %v3259, %v3234
        %v3292 = vmul.f32 %v3260, %v3235
        %v3293 = vmul.f32 %v3261, %v3235
        %v3294 = vmul.f32 %v3262, %v3236
        %v3295 = vmul.f32 %v3263, %v3236
        %v3296 = vmul.f32 %v3264, %v3237
        %v3297 = vmul.f32 %v3265, %v3237
        %v3298 = vmul.f32 %v3266, %v3238
        %v3299 = vmul.f32 %v3267, %v3238
        %v3300 = vmul.f32 %v3268, %v3239
        %v3301 = vmul.f32 %v3269, %v3239
        %v3302 = vmul.f32 %v3270, %v3240
        %v3303 = vmul.f32 %v3271, %v3240
        %v3304 = vmul.f32 %v3272, %v3241
        %v3305 = vmul.f32 %v3273, %v3241
        %v3306 = vld [vmem:[%s9] sm:$0x3]
        %v3308 = vlaneseq
        %v3309 = vshrl.u32 %v3308, 7
        %v3310 = vsub.s32 0, %v3309
        %v3311 = vrot.slane %v3306, %v3310
        %v3312 = vlaneseq
        %v3313 = vshrl.u32 %v3312, 7
        %v3314 = vsub.s32 1, %v3313
        %v3315 = vrot.slane %v3306, %v3314
        %v3318 = vmul.f32 %v3274, %v3311
        %v3319 = vmul.f32 %v3275, %v3315
        %v3320 = vmul.f32 %v3276, %v3311
        %v3321 = vmul.f32 %v3277, %v3315
        %v3322 = vmul.f32 %v3278, %v3311
        %v3323 = vmul.f32 %v3279, %v3315
        %v3324 = vmul.f32 %v3280, %v3311
        %v3325 = vmul.f32 %v3281, %v3315
        %v3326 = vmul.f32 %v3282, %v3311
        %v3327 = vmul.f32 %v3283, %v3315
        %v3328 = vmul.f32 %v3284, %v3311
        %v3329 = vmul.f32 %v3285, %v3315
        %v3330 = vmul.f32 %v3286, %v3311
        %v3331 = vmul.f32 %v3287, %v3315
        %v3332 = vmul.f32 %v3288, %v3311
        %v3333 = vmul.f32 %v3289, %v3315
        %v3334 = vmul.f32 %v3290, %v3311
        %v3335 = vmul.f32 %v3291, %v3315
        %v3336 = vmul.f32 %v3292, %v3311
        %v3337 = vmul.f32 %v3293, %v3315
        %v3338 = vmul.f32 %v3294, %v3311
        %v3339 = vmul.f32 %v3295, %v3315
        %v3340 = vmul.f32 %v3296, %v3311
        %v3341 = vmul.f32 %v3297, %v3315
        %v3342 = vmul.f32 %v3298, %v3311
        %v3343 = vmul.f32 %v3299, %v3315
        %v3344 = vmul.f32 %v3300, %v3311
        %v3345 = vmul.f32 %v3301, %v3315
        %v3346 = vmul.f32 %v3302, %v3311
        %v3347 = vmul.f32 %v3303, %v3315
        %v3348 = vmul.f32 %v3304, %v3311
        %v3349 = vmul.f32 %v3305, %v3315
        %v3350 = vld [vmem:[%s10] sm:$0x3]
        %v3352 = vlaneseq
        %v3353 = vshrl.u32 %v3352, 7
        %v3354 = vsub.s32 0, %v3353
        %v3355 = vrot.slane %v3350, %v3354
        %v3356 = vlaneseq
        %v3357 = vshrl.u32 %v3356, 7
        %v3358 = vsub.s32 1, %v3357
        %v3359 = vrot.slane %v3350, %v3358
        %v3362 = vadd.f32 %v3318, %v3355
        %v3363 = vadd.f32 %v3319, %v3359
        %v3364 = vadd.f32 %v3320, %v3355
        %v3365 = vadd.f32 %v3321, %v3359
        %v3366 = vadd.f32 %v3322, %v3355
        %v3367 = vadd.f32 %v3323, %v3359
        %v3368 = vadd.f32 %v3324, %v3355
        %v3369 = vadd.f32 %v3325, %v3359
        %v3370 = vadd.f32 %v3326, %v3355
        %v3371 = vadd.f32 %v3327, %v3359
        %v3372 = vadd.f32 %v3328, %v3355
        %v3373 = vadd.f32 %v3329, %v3359
        %v3374 = vadd.f32 %v3330, %v3355
        %v3375 = vadd.f32 %v3331, %v3359
        %v3376 = vadd.f32 %v3332, %v3355
        %v3377 = vadd.f32 %v3333, %v3359
        %v3378 = vadd.f32 %v3334, %v3355
        %v3379 = vadd.f32 %v3335, %v3359
        %v3380 = vadd.f32 %v3336, %v3355
        %v3381 = vadd.f32 %v3337, %v3359
        %v3382 = vadd.f32 %v3338, %v3355
        %v3383 = vadd.f32 %v3339, %v3359
        %v3384 = vadd.f32 %v3340, %v3355
        %v3385 = vadd.f32 %v3341, %v3359
        %v3386 = vadd.f32 %v3342, %v3355
        %v3387 = vadd.f32 %v3343, %v3359
        %v3388 = vadd.f32 %v3344, %v3355
        %v3389 = vadd.f32 %v3345, %v3359
        %v3390 = vadd.f32 %v3346, %v3355
        %v3391 = vadd.f32 %v3347, %v3359
        %v3392 = vadd.f32 %v3348, %v3355
        %v3393 = vadd.f32 %v3349, %v3359
        %3394 = vst [vmem:[%s707] sm:$0xff] %v3362
        %3395 = vst [vmem:[%s707 + $0x8] sm:$0xff] %v3363
        %3396 = vst [vmem:[%s707 + $0x10] sm:$0xff] %v3364
        %3397 = vst [vmem:[%s707 + $0x18] sm:$0xff] %v3365
        %3398 = vst [vmem:[%s707 + $0x20] sm:$0xff] %v3366
        %3399 = vst [vmem:[%s707 + $0x28] sm:$0xff] %v3367
        %3400 = vst [vmem:[%s707 + $0x30] sm:$0xff] %v3368
        %3401 = vst [vmem:[%s707 + $0x38] sm:$0xff] %v3369
        %3402 = vst [vmem:[%s707 + $0x40] sm:$0xff] %v3370
        %3403 = vst [vmem:[%s707 + $0x48] sm:$0xff] %v3371
        %3404 = vst [vmem:[%s707 + $0x50] sm:$0xff] %v3372
        %3405 = vst [vmem:[%s707 + $0x58] sm:$0xff] %v3373
        %3406 = vst [vmem:[%s707 + $0x60] sm:$0xff] %v3374
        %3407 = vst [vmem:[%s707 + $0x68] sm:$0xff] %v3375
        %3408 = vst [vmem:[%s707 + $0x70] sm:$0xff] %v3376
        %3409 = vst [vmem:[%s707 + $0x78] sm:$0xff] %v3377
        %3410 = vst [vmem:[%s707 + $0x80] sm:$0xff] %v3378
        %3411 = vst [vmem:[%s707 + $0x88] sm:$0xff] %v3379
        %3412 = vst [vmem:[%s707 + $0x90] sm:$0xff] %v3380
        %3413 = vst [vmem:[%s707 + $0x98] sm:$0xff] %v3381
        %3414 = vst [vmem:[%s707 + $0xa0] sm:$0xff] %v3382
        %3415 = vst [vmem:[%s707 + $0xa8] sm:$0xff] %v3383
        %3416 = vst [vmem:[%s707 + $0xb0] sm:$0xff] %v3384
        %3417 = vst [vmem:[%s707 + $0xb8] sm:$0xff] %v3385
        %3418 = vst [vmem:[%s707 + $0xc0] sm:$0xff] %v3386
        %3419 = vst [vmem:[%s707 + $0xc8] sm:$0xff] %v3387
        %3420 = vst [vmem:[%s707 + $0xd0] sm:$0xff] %v3388
        %3421 = vst [vmem:[%s707 + $0xd8] sm:$0xff] %v3389
        %3422 = vst [vmem:[%s707 + $0xe0] sm:$0xff] %v3390
        %3423 = vst [vmem:[%s707 + $0xe8] sm:$0xff] %v3391
        %3424 = vst [vmem:[%s707 + $0xf0] sm:$0xff] %v3392
        %3425 = vst [vmem:[%s707 + $0xf8] sm:$0xff] %v3393
        %s3426 = sand.u32 %s337, 1
        %s3427 = scalar_lea.sflag [#allocation10], %s3426
        %s3428 = sand.u32 %s337, 1
        %s3429 = smul.addr %s3428, 256
        %s3430 = scalar_lea.vmem [#allocation11], %s3429
        %s3431 = sand.u32 %s39, 1
        %s3432 = scalar_lea.sflag [#allocation13], %s3431
        %s3433 = sand.u32 %s365, 1
        %s3434 = smul.addr %s3433, 256
        %s3435 = scalar_lea.vmem [#allocation12], %s3434
        %s3436 = sand.u32 %s39, 1
        %s3437 = scalar_lea.sflag [#allocation13], %s3436
        %s3438 = sand.u32 %s393, 1
        %s3439 = smul.addr %s3438, 256
        %s3440 = scalar_lea.vmem [#allocation14], %s3439
        %s3441 = sand.u32 %s39, 1
        %s3442 = scalar_lea.sflag [#allocation16], %s3441
        %s3443 = sand.u32 %s421, 1
        %s3444 = smul.addr %s3443, 256
        %s3445 = scalar_lea.vmem [#allocation15], %s3444
        %s3446 = sand.u32 %s39, 1
        %s3447 = scalar_lea.sflag [#allocation16], %s3446
        %s3448 = sand.u32 %s449, 1
        %s3449 = smul.addr %s3448, 256
        %s3450 = scalar_lea.vmem [#allocation17], %s3449
        // Predicated region
        $region73: #{dummy_model_forward.1} parent=63 // pred_check
          %p3451 = pneg %p347
        $region74: #{dummy_model_forward.1} parent=63 // pred_check_branch
          %3453 = sbr.rel (%p3451) target = $region76
        $region75: #{dummy_model_forward.1} parent=63 // pred_region
          #allocation21 [shape = 'u32[6]{0}', space=smem, size = 0x18, scoped, tag = 'DMA stride descriptor']
          %s3454 = smul.u32 8, %s43
          %s3456 = ssub.s32 4096, 4096
          %3457 = vsyncadd %s3427, %s3456
          %s3458 = smul.addr %s44, 2
          %s3459 = smul.addr %s3454, 2
          %s3460 = sadd.s32 %s3458, %s3459
          %s3461 = smul.addr %s3460, 128
          %s3462 = scalar_lea.hbm %s11, %s3461
          %s3464 = sshll.u32 1, 14
          %s3465 = sxor.u32 4294967295, %s3464
          %s3468 = sshll.u32 7, 18
          %s3469 = sxor.u32 4294967295, %s3468
          %s3470 = sand.u32 0, %s3469
          %s3472 = sor.u32 %s3470, 0
          %s3473 = sshll.u32 %s3430, 4
          %s3474 = int_to_ptr.vmem [resolvable:$true] %s3473
          %3480 = sst [smem:[#allocation21]] 2048
          %s3481 = scalar_lea.smem [#allocation21], 1
          %3482 = sst [smem:[%s3481]] 8192
          %s3483 = scalar_lea.smem [#allocation21], 2
          %3484 = sst [smem:[%s3483]] 8
          %s3485 = scalar_lea.smem [#allocation21], 3
          %3486 = sst [smem:[%s3485]] 256
          %s3487 = scalar_lea.smem [#allocation21], 4
          %3488 = sst [smem:[%s3487]] 256
          %s3489 = scalar_lea.smem [#allocation21], 5
          %3490 = sst [smem:[%s3489]] 16
          %3492 = dma.general %s3474, 4096, %s3462, %s3427, 131072, [#allocation21], %s3472, 0
        $region76: #{dummy_model_forward.1} parent=63 // pred_fallthru
          _
        // Predicated region
        $region77: #{dummy_model_forward.1} parent=63 // pred_check
          %p3493 = pneg %p375
        $region78: #{dummy_model_forward.1} parent=63 // pred_check_branch
          %3495 = sbr.rel (%p3493) target = $region80
        $region79: #{dummy_model_forward.1} parent=63 // pred_region
          #allocation23 [shape = 'u32[6]{0}', space=smem, size = 0x18, scoped, tag = 'DMA stride descriptor']
          %s3496 = smul.u32 8, %s43
          %s3498 = ssub.s32 4096, 4096
          %3499 = vsyncadd %s3432, %s3498
          %s3500 = smul.addr %s44, 2
          %s3501 = smul.addr %s3496, 2
          %s3502 = sadd.s32 %s3500, %s3501
          %s3503 = smul.addr %s3502, 128
          %s3504 = scalar_lea.hbm %s12, %s3503
          %s3506 = sshll.u32 1, 14
          %s3507 = sxor.u32 4294967295, %s3506
          %s3510 = sshll.u32 7, 18
          %s3511 = sxor.u32 4294967295, %s3510
          %s3512 = sand.u32 0, %s3511
          %s3514 = sor.u32 %s3512, 0
          %s3515 = sshll.u32 %s3435, 4
          %s3516 = int_to_ptr.vmem [resolvable:$true] %s3515
          %3522 = sst [smem:[#allocation23]] 2048
          %s3523 = scalar_lea.smem [#allocation23], 1
          %3524 = sst [smem:[%s3523]] 8192
          %s3525 = scalar_lea.smem [#allocation23], 2
          %3526 = sst [smem:[%s3525]] 8
          %s3527 = scalar_lea.smem [#allocation23], 3
          %3528 = sst [smem:[%s3527]] 256
          %s3529 = scalar_lea.smem [#allocation23], 4
          %3530 = sst [smem:[%s3529]] 256
          %s3531 = scalar_lea.smem [#allocation23], 5
          %3532 = sst [smem:[%s3531]] 16
          %3534 = dma.general %s3516, 4096, %s3504, %s3432, 131072, [#allocation23], %s3514, 0
        $region80: #{dummy_model_forward.1} parent=63 // pred_fallthru
          _
        // Predicated region
        $region81: #{dummy_model_forward.1} parent=63 // pred_check
          %p3535 = pneg %p403
        $region82: #{dummy_model_forward.1} parent=63 // pred_check_branch
          %3537 = sbr.rel (%p3535) target = $region84
        $region83: #{dummy_model_forward.1} parent=63 // pred_region
          #allocation25 [shape = 'u32[6]{0}', space=smem, size = 0x18, scoped, tag = 'DMA stride descriptor']
          %s3538 = smul.u32 8, %s43
          %s3540 = ssub.s32 4096, 4096
          %3541 = vsyncadd %s3437, %s3540
          %s3542 = smul.addr %s44, 2
          %s3543 = smul.addr %s3538, 2
          %s3544 = sadd.s32 %s3542, %s3543
          %s3545 = smul.addr %s3544, 128
          %s3546 = scalar_lea.hbm %s13, %s3545
          %s3548 = sshll.u32 1, 14
          %s3549 = sxor.u32 4294967295, %s3548
          %s3552 = sshll.u32 7, 18
          %s3553 = sxor.u32 4294967295, %s3552
          %s3554 = sand.u32 0, %s3553
          %s3556 = sor.u32 %s3554, 0
          %s3557 = sshll.u32 %s3440, 4
          %s3558 = int_to_ptr.vmem [resolvable:$true] %s3557
          %3564 = sst [smem:[#allocation25]] 2048
          %s3565 = scalar_lea.smem [#allocation25], 1
          %3566 = sst [smem:[%s3565]] 8192
          %s3567 = scalar_lea.smem [#allocation25], 2
          %3568 = sst [smem:[%s3567]] 8
          %s3569 = scalar_lea.smem [#allocation25], 3
          %3570 = sst [smem:[%s3569]] 256
          %s3571 = scalar_lea.smem [#allocation25], 4
          %3572 = sst [smem:[%s3571]] 256
          %s3573 = scalar_lea.smem [#allocation25], 5
          %3574 = sst [smem:[%s3573]] 16
          %3576 = dma.general %s3558, 4096, %s3546, %s3437, 131072, [#allocation25], %s3556, 0
        $region84: #{dummy_model_forward.1} parent=63 // pred_fallthru
          _
        // Predicated region
        $region85: #{dummy_model_forward.1} parent=63 // pred_check
          %p3577 = pneg %p431
        $region86: #{dummy_model_forward.1} parent=63 // pred_check_branch
          %3579 = sbr.rel (%p3577) target = $region88
        $region87: #{dummy_model_forward.1} parent=63 // pred_region
          #allocation27 [shape = 'u32[6]{0}', space=smem, size = 0x18, scoped, tag = 'DMA stride descriptor']
          %s3580 = smul.u32 8, %s43
          %s3582 = ssub.s32 4096, 4096
          %3583 = vsyncadd %s3442, %s3582
          %s3584 = smul.addr %s44, 2
          %s3585 = smul.addr %s3580, 2
          %s3586 = sadd.s32 %s3584, %s3585
          %s3587 = smul.addr %s3586, 128
          %s3588 = scalar_lea.hbm %s14, %s3587
          %s3590 = sshll.u32 1, 14
          %s3591 = sxor.u32 4294967295, %s3590
          %s3594 = sshll.u32 7, 18
          %s3595 = sxor.u32 4294967295, %s3594
          %s3596 = sand.u32 0, %s3595
          %s3598 = sor.u32 %s3596, 0
          %s3599 = sshll.u32 %s3445, 4
          %s3600 = int_to_ptr.vmem [resolvable:$true] %s3599
          %3606 = sst [smem:[#allocation27]] 2048
          %s3607 = scalar_lea.smem [#allocation27], 1
          %3608 = sst [smem:[%s3607]] 8192
          %s3609 = scalar_lea.smem [#allocation27], 2
          %3610 = sst [smem:[%s3609]] 8
          %s3611 = scalar_lea.smem [#allocation27], 3
          %3612 = sst [smem:[%s3611]] 256
          %s3613 = scalar_lea.smem [#allocation27], 4
          %3614 = sst [smem:[%s3613]] 256
          %s3615 = scalar_lea.smem [#allocation27], 5
          %3616 = sst [smem:[%s3615]] 16
          %3618 = dma.general %s3600, 4096, %s3588, %s3442, 131072, [#allocation27], %s3598, 0
        $region88: #{dummy_model_forward.1} parent=63 // pred_fallthru
          _
        // Predicated region
        $region89: #{dummy_model_forward.1} parent=63 // pred_check
          %p3619 = pneg %p459
        $region90: #{dummy_model_forward.1} parent=63 // pred_check_branch
          %3621 = sbr.rel (%p3619) target = $region92
        $region91: #{dummy_model_forward.1} parent=63 // pred_region
          #allocation29 [shape = 'u32[6]{0}', space=smem, size = 0x18, scoped, tag = 'DMA stride descriptor']
          %s3622 = smul.u32 8, %s43
          %s3624 = ssub.s32 4096, 4096
          %3625 = vsyncadd %s3447, %s3624
          %s3626 = smul.addr %s44, 2
          %s3627 = smul.addr %s3622, 2
          %s3628 = sadd.s32 %s3626, %s3627
          %s3629 = smul.addr %s3628, 128
          %s3630 = scalar_lea.hbm %s15, %s3629
          %s3632 = sshll.u32 1, 14
          %s3633 = sxor.u32 4294967295, %s3632
          %s3636 = sshll.u32 7, 18
          %s3637 = sxor.u32 4294967295, %s3636
          %s3638 = sand.u32 0, %s3637
          %s3640 = sor.u32 %s3638, 0
          %s3641 = sshll.u32 %s3450, 4
          %s3642 = int_to_ptr.vmem [resolvable:$true] %s3641
          %3648 = sst [smem:[#allocation29]] 2048
          %s3649 = scalar_lea.smem [#allocation29], 1
          %3650 = sst [smem:[%s3649]] 8192
          %s3651 = scalar_lea.smem [#allocation29], 2
          %3652 = sst [smem:[%s3651]] 8
          %s3653 = scalar_lea.smem [#allocation29], 3
          %3654 = sst [smem:[%s3653]] 256
          %s3655 = scalar_lea.smem [#allocation29], 4
          %3656 = sst [smem:[%s3655]] 256
          %s3657 = scalar_lea.smem [#allocation29], 5
          %3658 = sst [smem:[%s3657]] 16
          %3660 = dma.general %s3642, 4096, %s3630, %s3447, 131072, [#allocation29], %s3640, 0
        $region92: #{dummy_model_forward.1} parent=63 // pred_fallthru
          _
      $region64: #{dummy_model_forward.1} parent=5 // pred_fallthru
        _
      %p3661 = scmp.le.s32.totalorder 2, %s34
      // Predicated region
      $region93: #{dummy_model_forward.1} parent=5 // pred_check
        %p3662 = pneg %p3661
      $region94: #{dummy_model_forward.1} parent=5 // pred_check_branch
        %3664 = sbr.rel (%p3662) target = $region96
      $region95: #{dummy_model_forward.1} parent=5 // pred_region
        %s3665 = ssub.s32 %s34, 2
        // Predicated region
        $region97: #{dummy_model_forward.1} parent=95 // pred_check
          %p3666 = pneg %p353
        $region98: #{dummy_model_forward.1} parent=95 // pred_check_branch
          %3668 = sbr.rel (%p3666) target = $region100
        $region99: #{dummy_model_forward.1} parent=95 // pred_region
          %s3669 = sand.u32 %s338, 1
          %s3670 = scalar_lea.sflag [#allocation10], %s3669
          %s3671 = sand.u32 %s338, 1
          %s3672 = smul.addr %s3671, 256
          %s3673 = scalar_lea.vmem [#allocation11], %s3672
          %3674 = dma.done %s3670, 4096
        $region100: #{dummy_model_forward.1} parent=95 // pred_fallthru
          _
        // Predicated region
        $region101: #{dummy_model_forward.1} parent=95 // pred_check
          %p3675 = pneg %p381
        $region102: #{dummy_model_forward.1} parent=95 // pred_check_branch
          %3677 = sbr.rel (%p3675) target = $region104
        $region103: #{dummy_model_forward.1} parent=95 // pred_region
          %s3678 = sand.u32 %s40, 1
          %s3679 = scalar_lea.sflag [#allocation13], %s3678
          %s3680 = sand.u32 %s366, 1
          %s3681 = smul.addr %s3680, 256
          %s3682 = scalar_lea.vmem [#allocation12], %s3681
          %3683 = dma.done %s3679, 4096
        $region104: #{dummy_model_forward.1} parent=95 // pred_fallthru
          _
        // Predicated region
        $region105: #{dummy_model_forward.1} parent=95 // pred_check
          %p3684 = pneg %p409
        $region106: #{dummy_model_forward.1} parent=95 // pred_check_branch
          %3686 = sbr.rel (%p3684) target = $region108
        $region107: #{dummy_model_forward.1} parent=95 // pred_region
          %s3687 = sand.u32 %s40, 1
          %s3688 = scalar_lea.sflag [#allocation13], %s3687
          %s3689 = sand.u32 %s394, 1
          %s3690 = smul.addr %s3689, 256
          %s3691 = scalar_lea.vmem [#allocation14], %s3690
          %3692 = dma.done %s3688, 4096
        $region108: #{dummy_model_forward.1} parent=95 // pred_fallthru
          _
        // Predicated region
        $region109: #{dummy_model_forward.1} parent=95 // pred_check
          %p3693 = pneg %p437
        $region110: #{dummy_model_forward.1} parent=95 // pred_check_branch
          %3695 = sbr.rel (%p3693) target = $region112
        $region111: #{dummy_model_forward.1} parent=95 // pred_region
          %s3696 = sand.u32 %s40, 1
          %s3697 = scalar_lea.sflag [#allocation16], %s3696
          %s3698 = sand.u32 %s422, 1
          %s3699 = smul.addr %s3698, 256
          %s3700 = scalar_lea.vmem [#allocation15], %s3699
          %3701 = dma.done %s3697, 4096
        $region112: #{dummy_model_forward.1} parent=95 // pred_fallthru
          _
        // Predicated region
        $region113: #{dummy_model_forward.1} parent=95 // pred_check
          %p3702 = pneg %p465
        $region114: #{dummy_model_forward.1} parent=95 // pred_check_branch
          %3704 = sbr.rel (%p3702) target = $region116
        $region115: #{dummy_model_forward.1} parent=95 // pred_region
          %s3705 = sand.u32 %s40, 1
          %s3706 = scalar_lea.sflag [#allocation16], %s3705
          %s3707 = sand.u32 %s450, 1
          %s3708 = smul.addr %s3707, 256
          %s3709 = scalar_lea.vmem [#allocation17], %s3708
          %3710 = dma.done %s3706, 4096
        $region116: #{dummy_model_forward.1} parent=95 // pred_fallthru
          _
      $region96: #{dummy_model_forward.1} parent=5 // pred_fallthru
        _
    $region6: #{dummy_model_forward.1} parent=1 // loop_footer
      %s38 = sadd.s32 1, %s34
    $region7: #{dummy_model_forward.1} parent=1 // loop_footer_branch
      %33 = sbr.rel target = $region3
    $region8: #{dummy_model_forward.1} parent=1 // loop_exit
      _
    %3711 = vsyncpa [#allocation9], 1
    %s3712 = scalar_lea.sflag [#allocation9], 1
    %3713 = vsyncpa %s3712, 1
    %3714 = vsyncpa [#allocation10], 1
    %s3715 = scalar_lea.sflag [#allocation10], 1
    %3716 = vsyncpa %s3715, 1
    %3717 = vsyncpa [#allocation13], 1
    %s3718 = scalar_lea.sflag [#allocation13], 1
    %3719 = vsyncpa %s3718, 1
    %3720 = vsyncpa [#allocation16], 1
    %s3721 = scalar_lea.sflag [#allocation16], 1
    %3722 = vsyncpa %s3721, 1

</llo_original>
